<compile_context>
chip_gen: v5e
topology: v5e:2x2
jax: 0.10.0
libtpu: 0.0.40
codegen_flags: <defaults>
</compile_context>

<pallas_src>
import functools

import jax
import jax.numpy as jnp
from jax import lax
from jax.experimental import pallas as pl
from jax.experimental.pallas import tpu as pltpu


# ----------------------------------------------------------------------------
# Fused kernel: conv1+bn+relu -> inception1 -> inception2 -> avgpool+fc
# ----------------------------------------------------------------------------
def _fused_kernel(
    x_ref,                                    # (S*L, 2) f32 stacked raw input
    w1_ref, b1_ref,                           # conv1 (BN folded): (14,64) bf16, (1,64) f32
    i1_w1_ref, i1_b1_ref, i1_w3_ref, i1_b3_ref,
    i1_w5_ref, i1_b5_ref, i1_wp_ref, i1_bp_ref,
    i2_w1_ref, i2_b1_ref, i2_w3_ref, i2_b3_ref,
    i2_w5_ref, i2_b5_ref, i2_wp_ref, i2_bp_ref,
    fc_w_ref, fc_b_ref,                       # (512,128) bf16, (1,128) f32 (padded)
    o_ref,                                    # (S, 128) f32; only [:, :2] meaningful
    *, S, L,
):
    SL = S * L
    # Row position within each sample; masks conv/pool taps at per-sample
    # boundaries (zero padding for convs, neutral fill for max-pool).
    row = lax.broadcasted_iota(jnp.int32, (SL, 1), 0) % L

    def tap(v, d, fill):
        """result[i] = v[i + d] within the same sample, else `fill`."""
        if d == 0:
            return v
        shifted = pltpu.roll(v, (-d) % SL, axis=0)   # shifted[i] = v[(i + d) % SL]
        ok = row < (L - d) if d > 0 else row >= (-d)
        return jnp.where(ok, shifted, fill)

    def conv_same(v, K, pad, w_ref, b_ref):
        """'same' K-tap conv over rows via per-tap MXU accumulation (no im2col)."""
        c = v.shape[-1]
        out = None
        for k in range(K):
            col = tap(v, k - pad, 0.0).astype(jnp.bfloat16)
            part = jnp.dot(col, w_ref[k * c:(k + 1) * c, :],
                           preferred_element_type=jnp.float32)
            out = part if out is None else out + part
        return out + b_ref[...]

    def maxpool3(v):
        """MaxPool1d(kernel=3, stride=1, padding=1); filling edge taps with the
        center value is equivalent to torch's -inf padding."""
        return jnp.maximum(jnp.maximum(tap(v, -1, v), v), tap(v, 1, v))

    def inception(xin, c, w1, bb1, w3, b3, w5, b5, wp, bp):
        xin_bf = xin.astype(jnp.bfloat16)
        # Branches 1 / 2a / 3a share the block input: one (SL, Cin) @ (Cin, 3c) matmul.
        t = jnp.dot(xin_bf, w1[...], preferred_element_type=jnp.float32) + bb1[...]
        p1 = t[:, 0:c]
        p2 = conv_same(t[:, c:2 * c], 3, 1, w3, b3)           # branch2 (3-tap)
        p3 = conv_same(t[:, 2 * c:3 * c], 5, 2, w5, b5)       # branch3 (5-tap)
        p4 = jnp.dot(maxpool3(xin).astype(jnp.bfloat16), wp[...],
                     preferred_element_type=jnp.float32) + bp[...]  # branch4
        return jnp.concatenate([p1, p2, p3, p4], axis=-1)     # torch.cat(dim=1)

    # conv1 + folded bn1 + relu: im2col built in-kernel from 7 shifted
    # 2-channel views -> (SL, 14), one MXU matmul.
    x = x_ref[...]                                             # (SL, 2) f32
    im = jnp.concatenate([tap(x, k - 3, 0.0) for k in range(7)], axis=-1)
    h0 = jnp.dot(im.astype(jnp.bfloat16), w1_ref[...],
                 preferred_element_type=jnp.float32) + b1_ref[...]
    h0 = jnp.maximum(h0, 0.0)                                  # (SL, 64) f32

    h1 = inception(h0, 64, i1_w1_ref, i1_b1_ref, i1_w3_ref, i1_b3_ref,
                   i1_w5_ref, i1_b5_ref, i1_wp_ref, i1_bp_ref)       # (SL, 256)
    h2 = inception(h1, 128, i2_w1_ref, i2_b1_ref, i2_w3_ref, i2_b3_ref,
                   i2_w5_ref, i2_b5_ref, i2_wp_ref, i2_bp_ref)       # (SL, 512)

    # AdaptiveAvgPool1d(1) per sample + flatten + Linear (Dropout identity in eval).
    parts = [jnp.mean(h2[s * L:(s + 1) * L, :], axis=0, keepdims=True)
             for s in range(S)]
    pooled = parts[0] if S == 1 else jnp.concatenate(parts, axis=0)   # (S, 512)
    o_ref[...] = jnp.dot(pooled.astype(jnp.bfloat16), fc_w_ref[...],
                         preferred_element_type=jnp.float32) + fc_b_ref[...]


# ----------------------------------------------------------------------------
# Host-side weight preparation (layout / folding done once, outside the kernel)
# ----------------------------------------------------------------------------
def _im2col_weight(w):
    """Torch conv weight (Cout, Cin, K) -> (K*Cin, Cout), tap-major / channel-minor."""
    cout, cin, k = w.shape
    return jnp.transpose(w, (2, 1, 0)).reshape(k * cin, cout)


def _prep_conv1(params):
    w, b = params["conv1"]                                  # (64, 2, 7), (64,)
    eps = 1e-5                                              # torch BatchNorm1d default
    scale = params["bn1_gamma"] * jax.lax.rsqrt(params["bn1_var"] + eps)
    shift = params["bn1_beta"] - params["bn1_mean"] * scale
    w_im = _im2col_weight(w) * scale[None, :]               # fold BN into conv
    b_fold = b * scale + shift
    return w_im.astype(jnp.bfloat16), b_fold.reshape(1, 64)


def _prep_inception(p, c):
    w_b1, b_b1 = p["b1"]
    w_b2a, b_b2a = p["b2a"]
    w_b2b, b_b2b = p["b2b"]
    w_b3a, b_b3a = p["b3a"]
    w_b3b, b_b3b = p["b3b"]
    w_b4, b_b4 = p["b4"]
    w1 = jnp.concatenate([_im2col_weight(w_b1), _im2col_weight(w_b2a),
                          _im2col_weight(w_b3a)], axis=-1)   # (Cin, 3c)
    b1 = jnp.concatenate([b_b1, b_b2a, b_b3a])
    return (
        w1.astype(jnp.bfloat16), b1.reshape(1, 3 * c),
        _im2col_weight(w_b2b).astype(jnp.bfloat16), b_b2b.reshape(1, c),
        _im2col_weight(w_b3b).astype(jnp.bfloat16), b_b3b.reshape(1, c),
        _im2col_weight(w_b4).astype(jnp.bfloat16), b_b4.reshape(1, c),
    )


def _prep_fc(params):
    w, b = params["fc"]                                      # torch Linear: (2, 512), (2,)
    w_p = jnp.zeros((512, 128), jnp.float32).at[:, :2].set(jnp.transpose(w))
    b_p = jnp.zeros((128,), jnp.float32).at[:2].set(b)
    return w_p.astype(jnp.bfloat16), b_p.reshape(1, 128)


# ----------------------------------------------------------------------------
# Forward pass
# ----------------------------------------------------------------------------
def inception_classifier(params, x1, x2):
    B, L = x1.shape
    # Samples per grid step (stacked along the row/sublane axis).  S=2 keeps
    # per-step activations ~10 MB at L=768, safe on v7x (64 MiB VMEM) while
    # amortizing per-step overhead; falls back to 1 for odd B / unaligned L.
    S = 2 if (B % 2 == 0 and L % 8 == 0 and L <= 1024) else 1
    nblk = B // S

    # torch.stack([x1, x2], dim=1) builds the channel axis -> channels-last rows.
    x = jnp.stack([x1, x2], axis=-1).reshape(B * L, 2).astype(jnp.float32)

    w1, b1 = _prep_conv1(params)
    inc1 = _prep_inception(params["inc1"], 64)
    inc2 = _prep_inception(params["inc2"], 128)
    fc_w, fc_b = _prep_fc(params)
    weights = (w1, b1) + inc1 + inc2 + (fc_w, fc_b)

    w_specs = [pl.BlockSpec(w.shape, lambda i: (0, 0)) for w in weights]  # all 2-D

    out = pl.pallas_call(
        functools.partial(_fused_kernel, S=S, L=L),
        out_shape=jax.ShapeDtypeStruct((nblk, S, 128), jnp.float32),
        grid=(nblk,),
        in_specs=[pl.BlockSpec((S * L, 2), lambda i: (i, 0))] + w_specs,
        out_specs=pl.BlockSpec((None, S, 128), lambda i: (i, 0, 0)),
        compiler_params=pltpu.CompilerParams(
            dimension_semantics=("parallel",),          # batch axis -> both TCs on v7x
            vmem_limit_bytes=40 * 1024 * 1024,
        ),
    )(x, *weights)
    return out.reshape(B, 128)[:, :2]                          # (B, 2)


# ----------------------------------------------------------------------------
# Deterministic parameter init (PyTorch-like fan-in uniform), torch layouts
# ----------------------------------------------------------------------------
def _conv_params(key, cout, cin, k):
    kw, kb = jax.random.split(key)
    bound = 1.0 / (cin * k) ** 0.5
    w = jax.random.uniform(kw, (cout, cin, k), jnp.float32, -bound, bound)
    b = jax.random.uniform(kb, (cout,), jnp.float32, -bound, bound)
    return w, b


def _inception_params(key, cin, cout):
    c = cout // 4
    ks = jax.random.split(key, 6)
    return dict(
        b1=_conv_params(ks[0], c, cin, 1),
        b2a=_conv_params(ks[1], c, cin, 1),
        b2b=_conv_params(ks[2], c, c, 3),
        b3a=_conv_params(ks[3], c, cin, 1),
        b3b=_conv_params(ks[4], c, c, 5),
        b4=_conv_params(ks[5], c, cin, 1),
    )


def init_params(key):
    keys = jax.random.split(key, 6)
    p = {}
    p["conv1"] = _conv_params(keys[0], 64, 2, 7)
    p["bn1_gamma"] = jax.random.uniform(keys[1], (64,), jnp.float32, 0.5, 1.5)
    p["bn1_beta"] = jax.random.uniform(keys[2], (64,), jnp.float32, -0.5, 0.5)
    p["bn1_mean"] = jnp.zeros((64,), jnp.float32)   # eval-mode running stats
    p["bn1_var"] = jnp.ones((64,), jnp.float32)
    p["inc1"] = _inception_params(keys[3], 64, 256)
    p["inc2"] = _inception_params(keys[4], 256, 512)
    kw, kb = jax.random.split(keys[5])
    bound = 1.0 / 512 ** 0.5
    fw = jax.random.uniform(kw, (2, 512), jnp.float32, -bound, bound)
    fb = jax.random.uniform(kb, (2,), jnp.float32, -bound, bound)
    p["fc"] = (fw, fb)
    return p


if __name__ == "__main__":
    key = jax.random.PRNGKey(0)
    kp, k1, k2 = jax.random.split(key, 3)
    B, L = 2, 64  # small stand-in for input_dim=768 sequence length
    params = init_params(kp)
    x1 = jax.random.normal(k1, (B, L), jnp.float32)
    x2 = jax.random.normal(k2, (B, L), jnp.float32)

    out = jax.jit(functools.partial(inception_classifier, params))(x1, x2)
    out = jax.block_until_ready(out)
    assert out.shape == (B, 2) and out.dtype == jnp.float32
    print("KERNEL_OK")
</pallas_src>

<mosaic_0001>
module attributes {stable_mosaic.version = 11 : i64} {
  func.func @_fused_kernel(%arg0: i32, %arg1: memref<128x2xf32, #tpu.memory_space<vmem>>, %arg2: memref<14x64xbf16, #tpu.memory_space<vmem>>, %arg3: memref<1x64xf32, #tpu.memory_space<vmem>>, %arg4: memref<64x192xbf16, #tpu.memory_space<vmem>>, %arg5: memref<1x192xf32, #tpu.memory_space<vmem>>, %arg6: memref<192x64xbf16, #tpu.memory_space<vmem>>, %arg7: memref<1x64xf32, #tpu.memory_space<vmem>>, %arg8: memref<320x64xbf16, #tpu.memory_space<vmem>>, %arg9: memref<1x64xf32, #tpu.memory_space<vmem>>, %arg10: memref<64x64xbf16, #tpu.memory_space<vmem>>, %arg11: memref<1x64xf32, #tpu.memory_space<vmem>>, %arg12: memref<256x384xbf16, #tpu.memory_space<vmem>>, %arg13: memref<1x384xf32, #tpu.memory_space<vmem>>, %arg14: memref<384x128xbf16, #tpu.memory_space<vmem>>, %arg15: memref<1x128xf32, #tpu.memory_space<vmem>>, %arg16: memref<640x128xbf16, #tpu.memory_space<vmem>>, %arg17: memref<1x128xf32, #tpu.memory_space<vmem>>, %arg18: memref<256x128xbf16, #tpu.memory_space<vmem>>, %arg19: memref<1x128xf32, #tpu.memory_space<vmem>>, %arg20: memref<512x128xbf16, #tpu.memory_space<vmem>>, %arg21: memref<1x128xf32, #tpu.memory_space<vmem>>, %arg22: memref<1x2x128xf32, #tpu.memory_space<vmem>>) attributes {dimension_semantics = [#tpu.dimension_semantics<parallel>], iteration_bounds = array<i64: 1>, scalar_prefetch = 0 : i64, scratch_operands = 0 : i64, tpu.core_type = #tpu.core_type<tc>, window_params = [{transform_indices = @transform_0, window_bounds = array<i64: 128, 2>}, {pipeline_mode = #tpu.pipeline_mode<synchronous>, transform_indices = @transform_1, window_bounds = array<i64: 14, 64>}, {pipeline_mode = #tpu.pipeline_mode<synchronous>, transform_indices = @transform_2, window_bounds = array<i64: 1, 64>}, {pipeline_mode = #tpu.pipeline_mode<synchronous>, transform_indices = @transform_3, window_bounds = array<i64: 64, 192>}, {pipeline_mode = #tpu.pipeline_mode<synchronous>, transform_indices = @transform_4, window_bounds = array<i64: 1, 192>}, {pipeline_mode = #tpu.pipeline_mode<synchronous>, transform_indices = @transform_5, window_bounds = array<i64: 192, 64>}, {pipeline_mode = #tpu.pipeline_mode<synchronous>, transform_indices = @transform_6, window_bounds = array<i64: 1, 64>}, {pipeline_mode = #tpu.pipeline_mode<synchronous>, transform_indices = @transform_7, window_bounds = array<i64: 320, 64>}, {pipeline_mode = #tpu.pipeline_mode<synchronous>, transform_indices = @transform_8, window_bounds = array<i64: 1, 64>}, {pipeline_mode = #tpu.pipeline_mode<synchronous>, transform_indices = @transform_9, window_bounds = array<i64: 64, 64>}, {pipeline_mode = #tpu.pipeline_mode<synchronous>, transform_indices = @transform_10, window_bounds = array<i64: 1, 64>}, {pipeline_mode = #tpu.pipeline_mode<synchronous>, transform_indices = @transform_11, window_bounds = array<i64: 256, 384>}, {pipeline_mode = #tpu.pipeline_mode<synchronous>, transform_indices = @transform_12, window_bounds = array<i64: 1, 384>}, {pipeline_mode = #tpu.pipeline_mode<synchronous>, transform_indices = @transform_13, window_bounds = array<i64: 384, 128>}, {pipeline_mode = #tpu.pipeline_mode<synchronous>, transform_indices = @transform_14, window_bounds = array<i64: 1, 128>}, {pipeline_mode = #tpu.pipeline_mode<synchronous>, transform_indices = @transform_15, window_bounds = array<i64: 640, 128>}, {pipeline_mode = #tpu.pipeline_mode<synchronous>, transform_indices = @transform_16, window_bounds = array<i64: 1, 128>}, {pipeline_mode = #tpu.pipeline_mode<synchronous>, transform_indices = @transform_17, window_bounds = array<i64: 256, 128>}, {pipeline_mode = #tpu.pipeline_mode<synchronous>, transform_indices = @transform_18, window_bounds = array<i64: 1, 128>}, {pipeline_mode = #tpu.pipeline_mode<synchronous>, transform_indices = @transform_19, window_bounds = array<i64: 512, 128>}, {pipeline_mode = #tpu.pipeline_mode<synchronous>, transform_indices = @transform_20, window_bounds = array<i64: 1, 128>}, {transform_indices = @transform_21, window_bounds = array<i64: 1, 2, 128>}]} {
    %0 = tpu.iota {dimensions = array<i32: 0>} : vector<128x1xi32>
    %c64_i32 = arith.constant 64 : i32
    %c0_i32 = arith.constant 0 : i32
    %1 = arith.cmpi eq, %c64_i32, %c0_i32 : i32
    %c1_i32 = arith.constant 1 : i32
    %2 = arith.select %1, %c1_i32, %c64_i32 : i32
    %3 = vector.broadcast %2 : i32 to vector<128x1xi32>
    %4 = arith.remsi %0, %3 : vector<128x1xi32>
    %c0_i32_0 = arith.constant 0 : i32
    %5 = vector.broadcast %c0_i32_0 : i32 to vector<128x1xi32>
    %6 = arith.cmpi ne, %4, %5 : vector<128x1xi32>
    %c0_i32_1 = arith.constant 0 : i32
    %7 = vector.broadcast %c0_i32_1 : i32 to vector<128x1xi32>
    %8 = arith.cmpi slt, %4, %7 : vector<128x1xi32>
    %c0_i32_2 = arith.constant 0 : i32
    %9 = arith.cmpi slt, %2, %c0_i32_2 : i32
    %10 = vector.broadcast %9 : i1 to vector<128x1xi1>
    %11 = vector.broadcast %10 : vector<128x1xi1> to vector<128x1xi1>
    %12 = arith.xori %8, %11 : vector<128x1xi1>
    %13 = arith.andi %12, %6 : vector<128x1xi1>
    %14 = vector.broadcast %2 : i32 to vector<128x1xi32>
    %15 = arith.addi %4, %14 : vector<128x1xi32>
    %16 = arith.select %13, %15, %4 : vector<128x1xi1>, vector<128x1xi32>
    %c0 = arith.constant 0 : index
    %c0_3 = arith.constant 0 : index
    %17 = vector.load %arg1[%c0, %c0_3] : memref<128x2xf32, #tpu.memory_space<vmem>>, vector<128x2xf32>
    %c3_i32 = arith.constant 3 : i32
    %18 = tpu.dynamic_rotate %17 by %c3_i32 dim 0 : vector<128x2xf32>, i32 -> vector<128x2xf32>
    %c3_i32_4 = arith.constant 3 : i32
    %19 = vector.broadcast %c3_i32_4 : i32 to vector<128x1xi32>
    %20 = arith.cmpi sge, %16, %19 : vector<128x1xi32>
    %cst = arith.constant 0.000000e+00 : f32
    %21 = vector.shape_cast %20 : vector<128x1xi1> to vector<128x1xi1>
    %22 = vector.broadcast %21 : vector<128x1xi1> to vector<128x2xi1>
    %23 = vector.broadcast %cst : f32 to vector<128x2xf32>
    %24 = arith.select %22, %18, %23 : vector<128x2xi1>, vector<128x2xf32>
    %c2_i32 = arith.constant 2 : i32
    %25 = tpu.dynamic_rotate %17 by %c2_i32 dim 0 : vector<128x2xf32>, i32 -> vector<128x2xf32>
    %c2_i32_5 = arith.constant 2 : i32
    %26 = vector.broadcast %c2_i32_5 : i32 to vector<128x1xi32>
    %27 = arith.cmpi sge, %16, %26 : vector<128x1xi32>
    %cst_6 = arith.constant 0.000000e+00 : f32
    %28 = vector.shape_cast %27 : vector<128x1xi1> to vector<128x1xi1>
    %29 = vector.broadcast %28 : vector<128x1xi1> to vector<128x2xi1>
    %30 = vector.broadcast %cst_6 : f32 to vector<128x2xf32>
    %31 = arith.select %29, %25, %30 : vector<128x2xi1>, vector<128x2xf32>
    %c1_i32_7 = arith.constant 1 : i32
    %32 = tpu.dynamic_rotate %17 by %c1_i32_7 dim 0 : vector<128x2xf32>, i32 -> vector<128x2xf32>
    %c1_i32_8 = arith.constant 1 : i32
    %33 = vector.broadcast %c1_i32_8 : i32 to vector<128x1xi32>
    %34 = arith.cmpi sge, %16, %33 : vector<128x1xi32>
    %cst_9 = arith.constant 0.000000e+00 : f32
    %35 = vector.shape_cast %34 : vector<128x1xi1> to vector<128x1xi1>
    %36 = vector.broadcast %35 : vector<128x1xi1> to vector<128x2xi1>
    %37 = vector.broadcast %cst_9 : f32 to vector<128x2xf32>
    %38 = arith.select %36, %32, %37 : vector<128x2xi1>, vector<128x2xf32>
    %c127_i32 = arith.constant 127 : i32
    %39 = tpu.dynamic_rotate %17 by %c127_i32 dim 0 : vector<128x2xf32>, i32 -> vector<128x2xf32>
    %c63_i32 = arith.constant 63 : i32
    %40 = vector.broadcast %c63_i32 : i32 to vector<128x1xi32>
    %41 = arith.cmpi slt, %16, %40 : vector<128x1xi32>
    %cst_10 = arith.constant 0.000000e+00 : f32
    %42 = vector.shape_cast %41 : vector<128x1xi1> to vector<128x1xi1>
    %43 = vector.broadcast %42 : vector<128x1xi1> to vector<128x2xi1>
    %44 = vector.broadcast %cst_10 : f32 to vector<128x2xf32>
    %45 = arith.select %43, %39, %44 : vector<128x2xi1>, vector<128x2xf32>
    %c126_i32 = arith.constant 126 : i32
    %46 = tpu.dynamic_rotate %17 by %c126_i32 dim 0 : vector<128x2xf32>, i32 -> vector<128x2xf32>
    %c62_i32 = arith.constant 62 : i32
    %47 = vector.broadcast %c62_i32 : i32 to vector<128x1xi32>
    %48 = arith.cmpi slt, %16, %47 : vector<128x1xi32>
    %cst_11 = arith.constant 0.000000e+00 : f32
    %49 = vector.shape_cast %48 : vector<128x1xi1> to vector<128x1xi1>
    %50 = vector.broadcast %49 : vector<128x1xi1> to vector<128x2xi1>
    %51 = vector.broadcast %cst_11 : f32 to vector<128x2xf32>
    %52 = arith.select %50, %46, %51 : vector<128x2xi1>, vector<128x2xf32>
    %c125_i32 = arith.constant 125 : i32
    %53 = tpu.dynamic_rotate %17 by %c125_i32 dim 0 : vector<128x2xf32>, i32 -> vector<128x2xf32>
    %c61_i32 = arith.constant 61 : i32
    %54 = vector.broadcast %c61_i32 : i32 to vector<128x1xi32>
    %55 = arith.cmpi slt, %16, %54 : vector<128x1xi32>
    %cst_12 = arith.constant 0.000000e+00 : f32
    %56 = vector.shape_cast %55 : vector<128x1xi1> to vector<128x1xi1>
    %57 = vector.broadcast %56 : vector<128x1xi1> to vector<128x2xi1>
    %58 = vector.broadcast %cst_12 : f32 to vector<128x2xf32>
    %59 = arith.select %57, %53, %58 : vector<128x2xi1>, vector<128x2xf32>
    %60 = tpu.concatenate %24, %31, %38, %17, %45, %52, %59 in 1 : vector<128x2xf32>, vector<128x2xf32>, vector<128x2xf32>, vector<128x2xf32>, vector<128x2xf32>, vector<128x2xf32>, vector<128x2xf32> -> vector<128x14xf32>
    %61 = arith.truncf %60 : vector<128x14xf32> to vector<128x14xbf16>
    %c0_13 = arith.constant 0 : index
    %c0_14 = arith.constant 0 : index
    %62 = vector.load %arg2[%c0_13, %c0_14] : memref<14x64xbf16, #tpu.memory_space<vmem>>, vector<14x64xbf16>
    %cst_15 = arith.constant dense<0.000000e+00> : vector<128x64xf32>
    %63 = tpu.matmul %61, %62, %cst_15 {dimension_numbers = #tpu.dot_dimension_numbers<[1], [0], [0], [1], [0, 0, 1, 1], [], []>} : vector<128x14xbf16>, vector<14x64xbf16>, vector<128x64xf32> -> vector<128x64xf32>
    %c0_16 = arith.constant 0 : index
    %c0_17 = arith.constant 0 : index
    %64 = vector.load %arg3[%c0_16, %c0_17] : memref<1x64xf32, #tpu.memory_space<vmem>>, vector<1x64xf32>
    %65 = vector.broadcast %64 : vector<1x64xf32> to vector<128x64xf32>
    %66 = arith.addf %63, %65 : vector<128x64xf32>
    %cst_18 = arith.constant 0.000000e+00 : f32
    %67 = vector.broadcast %cst_18 : f32 to vector<128x64xf32>
    %68 = arith.maximumf %66, %67 : vector<128x64xf32>
    %69 = arith.truncf %68 : vector<128x64xf32> to vector<128x64xbf16>
    %c0_19 = arith.constant 0 : index
    %c0_20 = arith.constant 0 : index
    %70 = vector.load %arg4[%c0_19, %c0_20] : memref<64x192xbf16, #tpu.memory_space<vmem>>, vector<64x192xbf16>
    %cst_21 = arith.constant dense<0.000000e+00> : vector<128x192xf32>
    %71 = tpu.matmul %69, %70, %cst_21 {dimension_numbers = #tpu.dot_dimension_numbers<[1], [0], [0], [1], [0, 0, 1, 1], [], []>} : vector<128x64xbf16>, vector<64x192xbf16>, vector<128x192xf32> -> vector<128x192xf32>
    %c0_22 = arith.constant 0 : index
    %c0_23 = arith.constant 0 : index
    %72 = vector.load %arg5[%c0_22, %c0_23] : memref<1x192xf32, #tpu.memory_space<vmem>>, vector<1x192xf32>
    %73 = vector.broadcast %72 : vector<1x192xf32> to vector<128x192xf32>
    %74 = arith.addf %71, %73 : vector<128x192xf32>
    %75 = vector.extract_strided_slice %74 {offsets = [0, 0], sizes = [128, 64], strides = [1, 1]} : vector<128x192xf32> to vector<128x64xf32>
    %76 = vector.extract_strided_slice %74 {offsets = [0, 64], sizes = [128, 64], strides = [1, 1]} : vector<128x192xf32> to vector<128x64xf32>
    %c1_i32_24 = arith.constant 1 : i32
    %77 = tpu.dynamic_rotate %76 by %c1_i32_24 dim 0 : vector<128x64xf32>, i32 -> vector<128x64xf32>
    %c1_i32_25 = arith.constant 1 : i32
    %78 = vector.broadcast %c1_i32_25 : i32 to vector<128x1xi32>
    %79 = arith.cmpi sge, %16, %78 : vector<128x1xi32>
    %cst_26 = arith.constant 0.000000e+00 : f32
    %80 = vector.shape_cast %79 : vector<128x1xi1> to vector<128x1xi1>
    %81 = vector.broadcast %80 : vector<128x1xi1> to vector<128x64xi1>
    %82 = vector.broadcast %cst_26 : f32 to vector<128x64xf32>
    %83 = arith.select %81, %77, %82 : vector<128x64xi1>, vector<128x64xf32>
    %84 = arith.truncf %83 : vector<128x64xf32> to vector<128x64xbf16>
    %c0_27 = arith.constant 0 : index
    %c0_28 = arith.constant 0 : index
    %85 = vector.load %arg6[%c0_27, %c0_28] : memref<192x64xbf16, #tpu.memory_space<vmem>>, vector<64x64xbf16>
    %cst_29 = arith.constant dense<0.000000e+00> : vector<128x64xf32>
    %86 = tpu.matmul %84, %85, %cst_29 {dimension_numbers = #tpu.dot_dimension_numbers<[1], [0], [0], [1], [0, 0, 1, 1], [], []>} : vector<128x64xbf16>, vector<64x64xbf16>, vector<128x64xf32> -> vector<128x64xf32>
    %87 = arith.truncf %76 : vector<128x64xf32> to vector<128x64xbf16>
    %c64 = arith.constant 64 : index
    %c0_30 = arith.constant 0 : index
    %88 = vector.load %arg6[%c64, %c0_30] : memref<192x64xbf16, #tpu.memory_space<vmem>>, vector<64x64xbf16>
    %cst_31 = arith.constant dense<0.000000e+00> : vector<128x64xf32>
    %89 = tpu.matmul %87, %88, %cst_31 {dimension_numbers = #tpu.dot_dimension_numbers<[1], [0], [0], [1], [0, 0, 1, 1], [], []>} : vector<128x64xbf16>, vector<64x64xbf16>, vector<128x64xf32> -> vector<128x64xf32>
    %90 = arith.addf %86, %89 : vector<128x64xf32>
    %c127_i32_32 = arith.constant 127 : i32
    %91 = tpu.dynamic_rotate %76 by %c127_i32_32 dim 0 : vector<128x64xf32>, i32 -> vector<128x64xf32>
    %c63_i32_33 = arith.constant 63 : i32
    %92 = vector.broadcast %c63_i32_33 : i32 to vector<128x1xi32>
    %93 = arith.cmpi slt, %16, %92 : vector<128x1xi32>
    %cst_34 = arith.constant 0.000000e+00 : f32
    %94 = vector.shape_cast %93 : vector<128x1xi1> to vector<128x1xi1>
    %95 = vector.broadcast %94 : vector<128x1xi1> to vector<128x64xi1>
    %96 = vector.broadcast %cst_34 : f32 to vector<128x64xf32>
    %97 = arith.select %95, %91, %96 : vector<128x64xi1>, vector<128x64xf32>
    %98 = arith.truncf %97 : vector<128x64xf32> to vector<128x64xbf16>
    %c128 = arith.constant 128 : index
    %c0_35 = arith.constant 0 : index
    %99 = vector.load %arg6[%c128, %c0_35] : memref<192x64xbf16, #tpu.memory_space<vmem>>, vector<64x64xbf16>
    %cst_36 = arith.constant dense<0.000000e+00> : vector<128x64xf32>
    %100 = tpu.matmul %98, %99, %cst_36 {dimension_numbers = #tpu.dot_dimension_numbers<[1], [0], [0], [1], [0, 0, 1, 1], [], []>} : vector<128x64xbf16>, vector<64x64xbf16>, vector<128x64xf32> -> vector<128x64xf32>
    %101 = arith.addf %90, %100 : vector<128x64xf32>
    %c0_37 = arith.constant 0 : index
    %c0_38 = arith.constant 0 : index
    %102 = vector.load %arg7[%c0_37, %c0_38] : memref<1x64xf32, #tpu.memory_space<vmem>>, vector<1x64xf32>
    %103 = vector.broadcast %102 : vector<1x64xf32> to vector<128x64xf32>
    %104 = arith.addf %101, %103 : vector<128x64xf32>
    %105 = vector.extract_strided_slice %74 {offsets = [0, 128], sizes = [128, 64], strides = [1, 1]} : vector<128x192xf32> to vector<128x64xf32>
    %c2_i32_39 = arith.constant 2 : i32
    %106 = tpu.dynamic_rotate %105 by %c2_i32_39 dim 0 : vector<128x64xf32>, i32 -> vector<128x64xf32>
    %c2_i32_40 = arith.constant 2 : i32
    %107 = vector.broadcast %c2_i32_40 : i32 to vector<128x1xi32>
    %108 = arith.cmpi sge, %16, %107 : vector<128x1xi32>
    %cst_41 = arith.constant 0.000000e+00 : f32
    %109 = vector.shape_cast %108 : vector<128x1xi1> to vector<128x1xi1>
    %110 = vector.broadcast %109 : vector<128x1xi1> to vector<128x64xi1>
    %111 = vector.broadcast %cst_41 : f32 to vector<128x64xf32>
    %112 = arith.select %110, %106, %111 : vector<128x64xi1>, vector<128x64xf32>
    %113 = arith.truncf %112 : vector<128x64xf32> to vector<128x64xbf16>
    %c0_42 = arith.constant 0 : index
    %c0_43 = arith.constant 0 : index
    %114 = vector.load %arg8[%c0_42, %c0_43] : memref<320x64xbf16, #tpu.memory_space<vmem>>, vector<64x64xbf16>
    %cst_44 = arith.constant dense<0.000000e+00> : vector<128x64xf32>
    %115 = tpu.matmul %113, %114, %cst_44 {dimension_numbers = #tpu.dot_dimension_numbers<[1], [0], [0], [1], [0, 0, 1, 1], [], []>} : vector<128x64xbf16>, vector<64x64xbf16>, vector<128x64xf32> -> vector<128x64xf32>
    %c1_i32_45 = arith.constant 1 : i32
    %116 = tpu.dynamic_rotate %105 by %c1_i32_45 dim 0 : vector<128x64xf32>, i32 -> vector<128x64xf32>
    %c1_i32_46 = arith.constant 1 : i32
    %117 = vector.broadcast %c1_i32_46 : i32 to vector<128x1xi32>
    %118 = arith.cmpi sge, %16, %117 : vector<128x1xi32>
    %cst_47 = arith.constant 0.000000e+00 : f32
    %119 = vector.shape_cast %118 : vector<128x1xi1> to vector<128x1xi1>
    %120 = vector.broadcast %119 : vector<128x1xi1> to vector<128x64xi1>
    %121 = vector.broadcast %cst_47 : f32 to vector<128x64xf32>
    %122 = arith.select %120, %116, %121 : vector<128x64xi1>, vector<128x64xf32>
    %123 = arith.truncf %122 : vector<128x64xf32> to vector<128x64xbf16>
    %c64_48 = arith.constant 64 : index
    %c0_49 = arith.constant 0 : index
    %124 = vector.load %arg8[%c64_48, %c0_49] : memref<320x64xbf16, #tpu.memory_space<vmem>>, vector<64x64xbf16>
    %cst_50 = arith.constant dense<0.000000e+00> : vector<128x64xf32>
    %125 = tpu.matmul %123, %124, %cst_50 {dimension_numbers = #tpu.dot_dimension_numbers<[1], [0], [0], [1], [0, 0, 1, 1], [], []>} : vector<128x64xbf16>, vector<64x64xbf16>, vector<128x64xf32> -> vector<128x64xf32>
    %126 = arith.addf %115, %125 : vector<128x64xf32>
    %127 = arith.truncf %105 : vector<128x64xf32> to vector<128x64xbf16>
    %c128_51 = arith.constant 128 : index
    %c0_52 = arith.constant 0 : index
    %128 = vector.load %arg8[%c128_51, %c0_52] : memref<320x64xbf16, #tpu.memory_space<vmem>>, vector<64x64xbf16>
    %cst_53 = arith.constant dense<0.000000e+00> : vector<128x64xf32>
    %129 = tpu.matmul %127, %128, %cst_53 {dimension_numbers = #tpu.dot_dimension_numbers<[1], [0], [0], [1], [0, 0, 1, 1], [], []>} : vector<128x64xbf16>, vector<64x64xbf16>, vector<128x64xf32> -> vector<128x64xf32>
    %130 = arith.addf %126, %129 : vector<128x64xf32>
    %c127_i32_54 = arith.constant 127 : i32
    %131 = tpu.dynamic_rotate %105 by %c127_i32_54 dim 0 : vector<128x64xf32>, i32 -> vector<128x64xf32>
    %c63_i32_55 = arith.constant 63 : i32
    %132 = vector.broadcast %c63_i32_55 : i32 to vector<128x1xi32>
    %133 = arith.cmpi slt, %16, %132 : vector<128x1xi32>
    %cst_56 = arith.constant 0.000000e+00 : f32
    %134 = vector.shape_cast %133 : vector<128x1xi1> to vector<128x1xi1>
    %135 = vector.broadcast %134 : vector<128x1xi1> to vector<128x64xi1>
    %136 = vector.broadcast %cst_56 : f32 to vector<128x64xf32>
    %137 = arith.select %135, %131, %136 : vector<128x64xi1>, vector<128x64xf32>
    %138 = arith.truncf %137 : vector<128x64xf32> to vector<128x64xbf16>
    %c192 = arith.constant 192 : index
    %c0_57 = arith.constant 0 : index
    %139 = vector.load %arg8[%c192, %c0_57] : memref<320x64xbf16, #tpu.memory_space<vmem>>, vector<64x64xbf16>
    %cst_58 = arith.constant dense<0.000000e+00> : vector<128x64xf32>
    %140 = tpu.matmul %138, %139, %cst_58 {dimension_numbers = #tpu.dot_dimension_numbers<[1], [0], [0], [1], [0, 0, 1, 1], [], []>} : vector<128x64xbf16>, vector<64x64xbf16>, vector<128x64xf32> -> vector<128x64xf32>
    %141 = arith.addf %130, %140 : vector<128x64xf32>
    %c126_i32_59 = arith.constant 126 : i32
    %142 = tpu.dynamic_rotate %105 by %c126_i32_59 dim 0 : vector<128x64xf32>, i32 -> vector<128x64xf32>
    %c62_i32_60 = arith.constant 62 : i32
    %143 = vector.broadcast %c62_i32_60 : i32 to vector<128x1xi32>
    %144 = arith.cmpi slt, %16, %143 : vector<128x1xi32>
    %cst_61 = arith.constant 0.000000e+00 : f32
    %145 = vector.shape_cast %144 : vector<128x1xi1> to vector<128x1xi1>
    %146 = vector.broadcast %145 : vector<128x1xi1> to vector<128x64xi1>
    %147 = vector.broadcast %cst_61 : f32 to vector<128x64xf32>
    %148 = arith.select %146, %142, %147 : vector<128x64xi1>, vector<128x64xf32>
    %149 = arith.truncf %148 : vector<128x64xf32> to vector<128x64xbf16>
    %c256 = arith.constant 256 : index
    %c0_62 = arith.constant 0 : index
    %150 = vector.load %arg8[%c256, %c0_62] : memref<320x64xbf16, #tpu.memory_space<vmem>>, vector<64x64xbf16>
    %cst_63 = arith.constant dense<0.000000e+00> : vector<128x64xf32>
    %151 = tpu.matmul %149, %150, %cst_63 {dimension_numbers = #tpu.dot_dimension_numbers<[1], [0], [0], [1], [0, 0, 1, 1], [], []>} : vector<128x64xbf16>, vector<64x64xbf16>, vector<128x64xf32> -> vector<128x64xf32>
    %152 = arith.addf %141, %151 : vector<128x64xf32>
    %c0_64 = arith.constant 0 : index
    %c0_65 = arith.constant 0 : index
    %153 = vector.load %arg9[%c0_64, %c0_65] : memref<1x64xf32, #tpu.memory_space<vmem>>, vector<1x64xf32>
    %154 = vector.broadcast %153 : vector<1x64xf32> to vector<128x64xf32>
    %155 = arith.addf %152, %154 : vector<128x64xf32>
    %c1_i32_66 = arith.constant 1 : i32
    %156 = tpu.dynamic_rotate %68 by %c1_i32_66 dim 0 : vector<128x64xf32>, i32 -> vector<128x64xf32>
    %c1_i32_67 = arith.constant 1 : i32
    %157 = vector.broadcast %c1_i32_67 : i32 to vector<128x1xi32>
    %158 = arith.cmpi sge, %16, %157 : vector<128x1xi32>
    %159 = vector.shape_cast %158 : vector<128x1xi1> to vector<128x1xi1>
    %160 = vector.broadcast %159 : vector<128x1xi1> to vector<128x64xi1>
    %161 = arith.select %160, %156, %68 : vector<128x64xi1>, vector<128x64xf32>
    %162 = arith.maximumf %161, %68 : vector<128x64xf32>
    %c127_i32_68 = arith.constant 127 : i32
    %163 = tpu.dynamic_rotate %68 by %c127_i32_68 dim 0 : vector<128x64xf32>, i32 -> vector<128x64xf32>
    %c63_i32_69 = arith.constant 63 : i32
    %164 = vector.broadcast %c63_i32_69 : i32 to vector<128x1xi32>
    %165 = arith.cmpi slt, %16, %164 : vector<128x1xi32>
    %166 = vector.shape_cast %165 : vector<128x1xi1> to vector<128x1xi1>
    %167 = vector.broadcast %166 : vector<128x1xi1> to vector<128x64xi1>
    %168 = arith.select %167, %163, %68 : vector<128x64xi1>, vector<128x64xf32>
    %169 = arith.maximumf %162, %168 : vector<128x64xf32>
    %170 = arith.truncf %169 : vector<128x64xf32> to vector<128x64xbf16>
    %c0_70 = arith.constant 0 : index
    %c0_71 = arith.constant 0 : index
    %171 = vector.load %arg10[%c0_70, %c0_71] : memref<64x64xbf16, #tpu.memory_space<vmem>>, vector<64x64xbf16>
    %cst_72 = arith.constant dense<0.000000e+00> : vector<128x64xf32>
    %172 = tpu.matmul %170, %171, %cst_72 {dimension_numbers = #tpu.dot_dimension_numbers<[1], [0], [0], [1], [0, 0, 1, 1], [], []>} : vector<128x64xbf16>, vector<64x64xbf16>, vector<128x64xf32> -> vector<128x64xf32>
    %c0_73 = arith.constant 0 : index
    %c0_74 = arith.constant 0 : index
    %173 = vector.load %arg11[%c0_73, %c0_74] : memref<1x64xf32, #tpu.memory_space<vmem>>, vector<1x64xf32>
    %174 = vector.broadcast %173 : vector<1x64xf32> to vector<128x64xf32>
    %175 = arith.addf %172, %174 : vector<128x64xf32>
    %176 = tpu.concatenate %75, %104, %155, %175 in 1 : vector<128x64xf32>, vector<128x64xf32>, vector<128x64xf32>, vector<128x64xf32> -> vector<128x256xf32>
    %177 = arith.truncf %176 : vector<128x256xf32> to vector<128x256xbf16>
    %c0_75 = arith.constant 0 : index
    %c0_76 = arith.constant 0 : index
    %178 = vector.load %arg12[%c0_75, %c0_76] : memref<256x384xbf16, #tpu.memory_space<vmem>>, vector<256x384xbf16>
    %cst_77 = arith.constant dense<0.000000e+00> : vector<128x384xf32>
    %179 = tpu.matmul %177, %178, %cst_77 {dimension_numbers = #tpu.dot_dimension_numbers<[1], [0], [0], [1], [0, 0, 1, 1], [], []>} : vector<128x256xbf16>, vector<256x384xbf16>, vector<128x384xf32> -> vector<128x384xf32>
    %c0_78 = arith.constant 0 : index
    %c0_79 = arith.constant 0 : index
    %180 = vector.load %arg13[%c0_78, %c0_79] : memref<1x384xf32, #tpu.memory_space<vmem>>, vector<1x384xf32>
    %181 = vector.broadcast %180 : vector<1x384xf32> to vector<128x384xf32>
    %182 = arith.addf %179, %181 : vector<128x384xf32>
    %183 = vector.extract_strided_slice %182 {offsets = [0, 0], sizes = [128, 128], strides = [1, 1]} : vector<128x384xf32> to vector<128x128xf32>
    %184 = vector.extract_strided_slice %182 {offsets = [0, 128], sizes = [128, 128], strides = [1, 1]} : vector<128x384xf32> to vector<128x128xf32>
    %c1_i32_80 = arith.constant 1 : i32
    %185 = tpu.dynamic_rotate %184 by %c1_i32_80 dim 0 : vector<128x128xf32>, i32 -> vector<128x128xf32>
    %c1_i32_81 = arith.constant 1 : i32
    %186 = vector.broadcast %c1_i32_81 : i32 to vector<128x1xi32>
    %187 = arith.cmpi sge, %16, %186 : vector<128x1xi32>
    %cst_82 = arith.constant 0.000000e+00 : f32
    %188 = vector.shape_cast %187 : vector<128x1xi1> to vector<128x1xi1>
    %189 = vector.broadcast %188 : vector<128x1xi1> to vector<128x128xi1>
    %190 = vector.broadcast %cst_82 : f32 to vector<128x128xf32>
    %191 = arith.select %189, %185, %190 : vector<128x128xi1>, vector<128x128xf32>
    %192 = arith.truncf %191 : vector<128x128xf32> to vector<128x128xbf16>
    %c0_83 = arith.constant 0 : index
    %c0_84 = arith.constant 0 : index
    %193 = vector.load %arg14[%c0_83, %c0_84] : memref<384x128xbf16, #tpu.memory_space<vmem>>, vector<128x128xbf16>
    %cst_85 = arith.constant dense<0.000000e+00> : vector<128x128xf32>
    %194 = tpu.matmul %192, %193, %cst_85 {dimension_numbers = #tpu.dot_dimension_numbers<[1], [0], [0], [1], [0, 0, 1, 1], [], []>} : vector<128x128xbf16>, vector<128x128xbf16>, vector<128x128xf32> -> vector<128x128xf32>
    %195 = arith.truncf %184 : vector<128x128xf32> to vector<128x128xbf16>
    %c128_86 = arith.constant 128 : index
    %c0_87 = arith.constant 0 : index
    %196 = vector.load %arg14[%c128_86, %c0_87] : memref<384x128xbf16, #tpu.memory_space<vmem>>, vector<128x128xbf16>
    %cst_88 = arith.constant dense<0.000000e+00> : vector<128x128xf32>
    %197 = tpu.matmul %195, %196, %cst_88 {dimension_numbers = #tpu.dot_dimension_numbers<[1], [0], [0], [1], [0, 0, 1, 1], [], []>} : vector<128x128xbf16>, vector<128x128xbf16>, vector<128x128xf32> -> vector<128x128xf32>
    %198 = arith.addf %194, %197 : vector<128x128xf32>
    %c127_i32_89 = arith.constant 127 : i32
    %199 = tpu.dynamic_rotate %184 by %c127_i32_89 dim 0 : vector<128x128xf32>, i32 -> vector<128x128xf32>
    %c63_i32_90 = arith.constant 63 : i32
    %200 = vector.broadcast %c63_i32_90 : i32 to vector<128x1xi32>
    %201 = arith.cmpi slt, %16, %200 : vector<128x1xi32>
    %cst_91 = arith.constant 0.000000e+00 : f32
    %202 = vector.shape_cast %201 : vector<128x1xi1> to vector<128x1xi1>
    %203 = vector.broadcast %202 : vector<128x1xi1> to vector<128x128xi1>
    %204 = vector.broadcast %cst_91 : f32 to vector<128x128xf32>
    %205 = arith.select %203, %199, %204 : vector<128x128xi1>, vector<128x128xf32>
    %206 = arith.truncf %205 : vector<128x128xf32> to vector<128x128xbf16>
    %c256_92 = arith.constant 256 : index
    %c0_93 = arith.constant 0 : index
    %207 = vector.load %arg14[%c256_92, %c0_93] : memref<384x128xbf16, #tpu.memory_space<vmem>>, vector<128x128xbf16>
    %cst_94 = arith.constant dense<0.000000e+00> : vector<128x128xf32>
    %208 = tpu.matmul %206, %207, %cst_94 {dimension_numbers = #tpu.dot_dimension_numbers<[1], [0], [0], [1], [0, 0, 1, 1], [], []>} : vector<128x128xbf16>, vector<128x128xbf16>, vector<128x128xf32> -> vector<128x128xf32>
    %209 = arith.addf %198, %208 : vector<128x128xf32>
    %c0_95 = arith.constant 0 : index
    %c0_96 = arith.constant 0 : index
    %210 = vector.load %arg15[%c0_95, %c0_96] : memref<1x128xf32, #tpu.memory_space<vmem>>, vector<1x128xf32>
    %211 = vector.broadcast %210 : vector<1x128xf32> to vector<128x128xf32>
    %212 = arith.addf %209, %211 : vector<128x128xf32>
    %213 = vector.extract_strided_slice %182 {offsets = [0, 256], sizes = [128, 128], strides = [1, 1]} : vector<128x384xf32> to vector<128x128xf32>
    %c2_i32_97 = arith.constant 2 : i32
    %214 = tpu.dynamic_rotate %213 by %c2_i32_97 dim 0 : vector<128x128xf32>, i32 -> vector<128x128xf32>
    %c2_i32_98 = arith.constant 2 : i32
    %215 = vector.broadcast %c2_i32_98 : i32 to vector<128x1xi32>
    %216 = arith.cmpi sge, %16, %215 : vector<128x1xi32>
    %cst_99 = arith.constant 0.000000e+00 : f32
    %217 = vector.shape_cast %216 : vector<128x1xi1> to vector<128x1xi1>
    %218 = vector.broadcast %217 : vector<128x1xi1> to vector<128x128xi1>
    %219 = vector.broadcast %cst_99 : f32 to vector<128x128xf32>
    %220 = arith.select %218, %214, %219 : vector<128x128xi1>, vector<128x128xf32>
    %221 = arith.truncf %220 : vector<128x128xf32> to vector<128x128xbf16>
    %c0_100 = arith.constant 0 : index
    %c0_101 = arith.constant 0 : index
    %222 = vector.load %arg16[%c0_100, %c0_101] : memref<640x128xbf16, #tpu.memory_space<vmem>>, vector<128x128xbf16>
    %cst_102 = arith.constant dense<0.000000e+00> : vector<128x128xf32>
    %223 = tpu.matmul %221, %222, %cst_102 {dimension_numbers = #tpu.dot_dimension_numbers<[1], [0], [0], [1], [0, 0, 1, 1], [], []>} : vector<128x128xbf16>, vector<128x128xbf16>, vector<128x128xf32> -> vector<128x128xf32>
    %c1_i32_103 = arith.constant 1 : i32
    %224 = tpu.dynamic_rotate %213 by %c1_i32_103 dim 0 : vector<128x128xf32>, i32 -> vector<128x128xf32>
    %c1_i32_104 = arith.constant 1 : i32
    %225 = vector.broadcast %c1_i32_104 : i32 to vector<128x1xi32>
    %226 = arith.cmpi sge, %16, %225 : vector<128x1xi32>
    %cst_105 = arith.constant 0.000000e+00 : f32
    %227 = vector.shape_cast %226 : vector<128x1xi1> to vector<128x1xi1>
    %228 = vector.broadcast %227 : vector<128x1xi1> to vector<128x128xi1>
    %229 = vector.broadcast %cst_105 : f32 to vector<128x128xf32>
    %230 = arith.select %228, %224, %229 : vector<128x128xi1>, vector<128x128xf32>
    %231 = arith.truncf %230 : vector<128x128xf32> to vector<128x128xbf16>
    %c128_106 = arith.constant 128 : index
    %c0_107 = arith.constant 0 : index
    %232 = vector.load %arg16[%c128_106, %c0_107] : memref<640x128xbf16, #tpu.memory_space<vmem>>, vector<128x128xbf16>
    %cst_108 = arith.constant dense<0.000000e+00> : vector<128x128xf32>
    %233 = tpu.matmul %231, %232, %cst_108 {dimension_numbers = #tpu.dot_dimension_numbers<[1], [0], [0], [1], [0, 0, 1, 1], [], []>} : vector<128x128xbf16>, vector<128x128xbf16>, vector<128x128xf32> -> vector<128x128xf32>
    %234 = arith.addf %223, %233 : vector<128x128xf32>
    %235 = arith.truncf %213 : vector<128x128xf32> to vector<128x128xbf16>
    %c256_109 = arith.constant 256 : index
    %c0_110 = arith.constant 0 : index
    %236 = vector.load %arg16[%c256_109, %c0_110] : memref<640x128xbf16, #tpu.memory_space<vmem>>, vector<128x128xbf16>
    %cst_111 = arith.constant dense<0.000000e+00> : vector<128x128xf32>
    %237 = tpu.matmul %235, %236, %cst_111 {dimension_numbers = #tpu.dot_dimension_numbers<[1], [0], [0], [1], [0, 0, 1, 1], [], []>} : vector<128x128xbf16>, vector<128x128xbf16>, vector<128x128xf32> -> vector<128x128xf32>
    %238 = arith.addf %234, %237 : vector<128x128xf32>
    %c127_i32_112 = arith.constant 127 : i32
    %239 = tpu.dynamic_rotate %213 by %c127_i32_112 dim 0 : vector<128x128xf32>, i32 -> vector<128x128xf32>
    %c63_i32_113 = arith.constant 63 : i32
    %240 = vector.broadcast %c63_i32_113 : i32 to vector<128x1xi32>
    %241 = arith.cmpi slt, %16, %240 : vector<128x1xi32>
    %cst_114 = arith.constant 0.000000e+00 : f32
    %242 = vector.shape_cast %241 : vector<128x1xi1> to vector<128x1xi1>
    %243 = vector.broadcast %242 : vector<128x1xi1> to vector<128x128xi1>
    %244 = vector.broadcast %cst_114 : f32 to vector<128x128xf32>
    %245 = arith.select %243, %239, %244 : vector<128x128xi1>, vector<128x128xf32>
    %246 = arith.truncf %245 : vector<128x128xf32> to vector<128x128xbf16>
    %c384 = arith.constant 384 : index
    %c0_115 = arith.constant 0 : index
    %247 = vector.load %arg16[%c384, %c0_115] : memref<640x128xbf16, #tpu.memory_space<vmem>>, vector<128x128xbf16>
    %cst_116 = arith.constant dense<0.000000e+00> : vector<128x128xf32>
    %248 = tpu.matmul %246, %247, %cst_116 {dimension_numbers = #tpu.dot_dimension_numbers<[1], [0], [0], [1], [0, 0, 1, 1], [], []>} : vector<128x128xbf16>, vector<128x128xbf16>, vector<128x128xf32> -> vector<128x128xf32>
    %249 = arith.addf %238, %248 : vector<128x128xf32>
    %c126_i32_117 = arith.constant 126 : i32
    %250 = tpu.dynamic_rotate %213 by %c126_i32_117 dim 0 : vector<128x128xf32>, i32 -> vector<128x128xf32>
    %c62_i32_118 = arith.constant 62 : i32
    %251 = vector.broadcast %c62_i32_118 : i32 to vector<128x1xi32>
    %252 = arith.cmpi slt, %16, %251 : vector<128x1xi32>
    %cst_119 = arith.constant 0.000000e+00 : f32
    %253 = vector.shape_cast %252 : vector<128x1xi1> to vector<128x1xi1>
    %254 = vector.broadcast %253 : vector<128x1xi1> to vector<128x128xi1>
    %255 = vector.broadcast %cst_119 : f32 to vector<128x128xf32>
    %256 = arith.select %254, %250, %255 : vector<128x128xi1>, vector<128x128xf32>
    %257 = arith.truncf %256 : vector<128x128xf32> to vector<128x128xbf16>
    %c512 = arith.constant 512 : index
    %c0_120 = arith.constant 0 : index
    %258 = vector.load %arg16[%c512, %c0_120] : memref<640x128xbf16, #tpu.memory_space<vmem>>, vector<128x128xbf16>
    %cst_121 = arith.constant dense<0.000000e+00> : vector<128x128xf32>
    %259 = tpu.matmul %257, %258, %cst_121 {dimension_numbers = #tpu.dot_dimension_numbers<[1], [0], [0], [1], [0, 0, 1, 1], [], []>} : vector<128x128xbf16>, vector<128x128xbf16>, vector<128x128xf32> -> vector<128x128xf32>
    %260 = arith.addf %249, %259 : vector<128x128xf32>
    %c0_122 = arith.constant 0 : index
    %c0_123 = arith.constant 0 : index
    %261 = vector.load %arg17[%c0_122, %c0_123] : memref<1x128xf32, #tpu.memory_space<vmem>>, vector<1x128xf32>
    %262 = vector.broadcast %261 : vector<1x128xf32> to vector<128x128xf32>
    %263 = arith.addf %260, %262 : vector<128x128xf32>
    %c1_i32_124 = arith.constant 1 : i32
    %264 = tpu.dynamic_rotate %176 by %c1_i32_124 dim 0 : vector<128x256xf32>, i32 -> vector<128x256xf32>
    %c1_i32_125 = arith.constant 1 : i32
    %265 = vector.broadcast %c1_i32_125 : i32 to vector<128x1xi32>
    %266 = arith.cmpi sge, %16, %265 : vector<128x1xi32>
    %267 = vector.shape_cast %266 : vector<128x1xi1> to vector<128x1xi1>
    %268 = vector.broadcast %267 : vector<128x1xi1> to vector<128x256xi1>
    %269 = arith.select %268, %264, %176 : vector<128x256xi1>, vector<128x256xf32>
    %270 = arith.maximumf %269, %176 : vector<128x256xf32>
    %c127_i32_126 = arith.constant 127 : i32
    %271 = tpu.dynamic_rotate %176 by %c127_i32_126 dim 0 : vector<128x256xf32>, i32 -> vector<128x256xf32>
    %c63_i32_127 = arith.constant 63 : i32
    %272 = vector.broadcast %c63_i32_127 : i32 to vector<128x1xi32>
    %273 = arith.cmpi slt, %16, %272 : vector<128x1xi32>
    %274 = vector.shape_cast %273 : vector<128x1xi1> to vector<128x1xi1>
    %275 = vector.broadcast %274 : vector<128x1xi1> to vector<128x256xi1>
    %276 = arith.select %275, %271, %176 : vector<128x256xi1>, vector<128x256xf32>
    %277 = arith.maximumf %270, %276 : vector<128x256xf32>
    %278 = arith.truncf %277 : vector<128x256xf32> to vector<128x256xbf16>
    %c0_128 = arith.constant 0 : index
    %c0_129 = arith.constant 0 : index
    %279 = vector.load %arg18[%c0_128, %c0_129] : memref<256x128xbf16, #tpu.memory_space<vmem>>, vector<256x128xbf16>
    %cst_130 = arith.constant dense<0.000000e+00> : vector<128x128xf32>
    %280 = tpu.matmul %278, %279, %cst_130 {dimension_numbers = #tpu.dot_dimension_numbers<[1], [0], [0], [1], [0, 0, 1, 1], [], []>} : vector<128x256xbf16>, vector<256x128xbf16>, vector<128x128xf32> -> vector<128x128xf32>
    %c0_131 = arith.constant 0 : index
    %c0_132 = arith.constant 0 : index
    %281 = vector.load %arg19[%c0_131, %c0_132] : memref<1x128xf32, #tpu.memory_space<vmem>>, vector<1x128xf32>
    %282 = vector.broadcast %281 : vector<1x128xf32> to vector<128x128xf32>
    %283 = arith.addf %280, %282 : vector<128x128xf32>
    %284 = tpu.concatenate %183, %212, %263, %283 in 1 : vector<128x128xf32>, vector<128x128xf32>, vector<128x128xf32>, vector<128x128xf32> -> vector<128x512xf32>
    %285 = vector.extract_strided_slice %284 {offsets = [0, 0], sizes = [64, 512], strides = [1, 1]} : vector<128x512xf32> to vector<64x512xf32>
    %cst_133 = arith.constant dense<0.000000e+00> : vector<512xf32>
    %286 = vector.multi_reduction <add>, %285, %cst_133 [0] : vector<64x512xf32> to vector<512xf32>
    %287 = vector.shape_cast %286 : vector<512xf32> to vector<1x512xf32>
    %cst_134 = arith.constant 6.400000e+01 : f32
    %288 = vector.broadcast %cst_134 : f32 to vector<1x512xf32>
    %289 = arith.divf %287, %288 : vector<1x512xf32>
    %290 = vector.extract_strided_slice %284 {offsets = [64, 0], sizes = [64, 512], strides = [1, 1]} : vector<128x512xf32> to vector<64x512xf32>
    %cst_135 = arith.constant dense<0.000000e+00> : vector<512xf32>
    %291 = vector.multi_reduction <add>, %290, %cst_135 [0] : vector<64x512xf32> to vector<512xf32>
    %292 = vector.shape_cast %291 : vector<512xf32> to vector<1x512xf32>
    %cst_136 = arith.constant 6.400000e+01 : f32
    %293 = vector.broadcast %cst_136 : f32 to vector<1x512xf32>
    %294 = arith.divf %292, %293 : vector<1x512xf32>
    %295 = tpu.concatenate %289, %294 in 0 : vector<1x512xf32>, vector<1x512xf32> -> vector<2x512xf32>
    %296 = arith.truncf %295 : vector<2x512xf32> to vector<2x512xbf16>
    %c0_137 = arith.constant 0 : index
    %c0_138 = arith.constant 0 : index
    %297 = vector.load %arg20[%c0_137, %c0_138] : memref<512x128xbf16, #tpu.memory_space<vmem>>, vector<512x128xbf16>
    %cst_139 = arith.constant dense<0.000000e+00> : vector<2x128xf32>
    %298 = tpu.matmul %296, %297, %cst_139 {dimension_numbers = #tpu.dot_dimension_numbers<[1], [0], [0], [1], [0, 0, 1, 1], [], []>} : vector<2x512xbf16>, vector<512x128xbf16>, vector<2x128xf32> -> vector<2x128xf32>
    %c0_140 = arith.constant 0 : index
    %c0_141 = arith.constant 0 : index
    %299 = vector.load %arg21[%c0_140, %c0_141] : memref<1x128xf32, #tpu.memory_space<vmem>>, vector<1x128xf32>
    %300 = vector.broadcast %299 : vector<1x128xf32> to vector<2x128xf32>
    %301 = arith.addf %298, %300 : vector<2x128xf32>
    %c0_142 = arith.constant 0 : index
    %c0_143 = arith.constant 0 : index
    %c0_144 = arith.constant 0 : index
    %302 = vector.load %arg22[%c0_142, %c0_143, %c0_144] : memref<1x2x128xf32, #tpu.memory_space<vmem>>, vector<1x2x128xf32>
    %303 = vector.shape_cast %302 : vector<1x2x128xf32> to vector<2x128xf32>
    %304 = vector.shape_cast %301 : vector<2x128xf32> to vector<1x2x128xf32>
    tpu.vector_store %arg22[%c0_142, %c0_143, %c0_144], %304 {strides = array<i32>} : memref<1x2x128xf32, #tpu.memory_space<vmem>>, vector<1x2x128xf32>,
    return
  }
  func.func @transform_0(%arg0: i32) -> (i32, i32) {
    %c0_i32 = arith.constant 0 : i32
    %c0_i32_0 = arith.constant 0 : i32
    return %arg0, %c0_i32 : i32, i32
  }
  func.func @transform_1(%arg0: i32) -> (i32, i32) {
    %c0_i32 = arith.constant 0 : i32
    %c0_i32_0 = arith.constant 0 : i32
    %c0_i32_1 = arith.constant 0 : i32
    return %c0_i32, %c0_i32_0 : i32, i32
  }
  func.func @transform_2(%arg0: i32) -> (i32, i32) {
    %c0_i32 = arith.constant 0 : i32
    %c0_i32_0 = arith.constant 0 : i32
    %c0_i32_1 = arith.constant 0 : i32
    return %c0_i32, %c0_i32_0 : i32, i32
  }
  func.func @transform_3(%arg0: i32) -> (i32, i32) {
    %c0_i32 = arith.constant 0 : i32
    %c0_i32_0 = arith.constant 0 : i32
    %c0_i32_1 = arith.constant 0 : i32
    return %c0_i32, %c0_i32_0 : i32, i32
  }
  func.func @transform_4(%arg0: i32) -> (i32, i32) {
    %c0_i32 = arith.constant 0 : i32
    %c0_i32_0 = arith.constant 0 : i32
    %c0_i32_1 = arith.constant 0 : i32
    return %c0_i32, %c0_i32_0 : i32, i32
  }
  func.func @transform_5(%arg0: i32) -> (i32, i32) {
    %c0_i32 = arith.constant 0 : i32
    %c0_i32_0 = arith.constant 0 : i32
    %c0_i32_1 = arith.constant 0 : i32
    return %c0_i32, %c0_i32_0 : i32, i32
  }
  func.func @transform_6(%arg0: i32) -> (i32, i32) {
    %c0_i32 = arith.constant 0 : i32
    %c0_i32_0 = arith.constant 0 : i32
    %c0_i32_1 = arith.constant 0 : i32
    return %c0_i32, %c0_i32_0 : i32, i32
  }
  func.func @transform_7(%arg0: i32) -> (i32, i32) {
    %c0_i32 = arith.constant 0 : i32
    %c0_i32_0 = arith.constant 0 : i32
    %c0_i32_1 = arith.constant 0 : i32
    return %c0_i32, %c0_i32_0 : i32, i32
  }
  func.func @transform_8(%arg0: i32) -> (i32, i32) {
    %c0_i32 = arith.constant 0 : i32
    %c0_i32_0 = arith.constant 0 : i32
    %c0_i32_1 = arith.constant 0 : i32
    return %c0_i32, %c0_i32_0 : i32, i32
  }
  func.func @transform_9(%arg0: i32) -> (i32, i32) {
    %c0_i32 = arith.constant 0 : i32
    %c0_i32_0 = arith.constant 0 : i32
    %c0_i32_1 = arith.constant 0 : i32
    return %c0_i32, %c0_i32_0 : i32, i32
  }
  func.func @transform_10(%arg0: i32) -> (i32, i32) {
    %c0_i32 = arith.constant 0 : i32
    %c0_i32_0 = arith.constant 0 : i32
    %c0_i32_1 = arith.constant 0 : i32
    return %c0_i32, %c0_i32_0 : i32, i32
  }
  func.func @transform_11(%arg0: i32) -> (i32, i32) {
    %c0_i32 = arith.constant 0 : i32
    %c0_i32_0 = arith.constant 0 : i32
    %c0_i32_1 = arith.constant 0 : i32
    return %c0_i32, %c0_i32_0 : i32, i32
  }
  func.func @transform_12(%arg0: i32) -> (i32, i32) {
    %c0_i32 = arith.constant 0 : i32
    %c0_i32_0 = arith.constant 0 : i32
    %c0_i32_1 = arith.constant 0 : i32
    return %c0_i32, %c0_i32_0 : i32, i32
  }
  func.func @transform_13(%arg0: i32) -> (i32, i32) {
    %c0_i32 = arith.constant 0 : i32
    %c0_i32_0 = arith.constant 0 : i32
    %c0_i32_1 = arith.constant 0 : i32
    return %c0_i32, %c0_i32_0 : i32, i32
  }
  func.func @transform_14(%arg0: i32) -> (i32, i32) {
    %c0_i32 = arith.constant 0 : i32
    %c0_i32_0 = arith.constant 0 : i32
    %c0_i32_1 = arith.constant 0 : i32
    return %c0_i32, %c0_i32_0 : i32, i32
  }
  func.func @transform_15(%arg0: i32) -> (i32, i32) {
    %c0_i32 = arith.constant 0 : i32
    %c0_i32_0 = arith.constant 0 : i32
    %c0_i32_1 = arith.constant 0 : i32
    return %c0_i32, %c0_i32_0 : i32, i32
  }
  func.func @transform_16(%arg0: i32) -> (i32, i32) {
    %c0_i32 = arith.constant 0 : i32
    %c0_i32_0 = arith.constant 0 : i32
    %c0_i32_1 = arith.constant 0 : i32
    return %c0_i32, %c0_i32_0 : i32, i32
  }
  func.func @transform_17(%arg0: i32) -> (i32, i32) {
    %c0_i32 = arith.constant 0 : i32
    %c0_i32_0 = arith.constant 0 : i32
    %c0_i32_1 = arith.constant 0 : i32
    return %c0_i32, %c0_i32_0 : i32, i32
  }
  func.func @transform_18(%arg0: i32) -> (i32, i32) {
    %c0_i32 = arith.constant 0 : i32
    %c0_i32_0 = arith.constant 0 : i32
    %c0_i32_1 = arith.constant 0 : i32
    return %c0_i32, %c0_i32_0 : i32, i32
  }
  func.func @transform_19(%arg0: i32) -> (i32, i32) {
    %c0_i32 = arith.constant 0 : i32
    %c0_i32_0 = arith.constant 0 : i32
    %c0_i32_1 = arith.constant 0 : i32
    return %c0_i32, %c0_i32_0 : i32, i32
  }
  func.func @transform_20(%arg0: i32) -> (i32, i32) {
    %c0_i32 = arith.constant 0 : i32
    %c0_i32_0 = arith.constant 0 : i32
    %c0_i32_1 = arith.constant 0 : i32
    return %c0_i32, %c0_i32_0 : i32, i32
  }
  func.func @transform_21(%arg0: i32) -> (i32, i32, i32) {
    %c0_i32 = arith.constant 0 : i32
    %c0_i32_0 = arith.constant 0 : i32
    %c0_i32_1 = arith.constant 0 : i32
    return %arg0, %c0_i32, %c0_i32_0 : i32, i32, i32
  }
}

</mosaic_0001>

<llo_original>
// kernel: inception_classifier.1
$region0: #{inception_classifier.1}
  #allocation0 [shape = 'u32[]', space=smem, size = 0x4, offset = 0x4, fixed_abs, tag = 'smem constant byte address 0x4 - core index']
  #allocation1 [shape = 'u32[72,128]{1,0:T(1,128)}', space=vmem, size = 0x9000, scoped, tag = 'internal scratch']
  %s0 = inlined_call_operand.vmem [shape: f32[128,2], index: 0, kind: input, shape index: {}]
  %s1 = inlined_call_operand.vmem [shape: bf16[14,64], index: 1, kind: input, shape index: {}]
  %s2 = inlined_call_operand.hbm [shape: f32[1,64], index: 2, kind: input, shape index: {}]
  %s3 = inlined_call_operand.hbm [shape: bf16[64,192], index: 3, kind: input, shape index: {}]
  %s4 = inlined_call_operand.hbm [shape: f32[1,192], index: 4, kind: input, shape index: {}]
  %s5 = inlined_call_operand.vmem [shape: bf16[192,64], index: 5, kind: input, shape index: {}]
  %s6 = inlined_call_operand.hbm [shape: f32[1,64], index: 6, kind: input, shape index: {}]
  %s7 = inlined_call_operand.hbm [shape: bf16[320,64], index: 7, kind: input, shape index: {}]
  %s8 = inlined_call_operand.vmem [shape: f32[1,64], index: 8, kind: input, shape index: {}]
  %s9 = inlined_call_operand.vmem [shape: bf16[64,64], index: 9, kind: input, shape index: {}]
  %s10 = inlined_call_operand.vmem [shape: f32[1,64], index: 10, kind: input, shape index: {}]
  %s11 = inlined_call_operand.vmem [shape: bf16[256,384], index: 11, kind: input, shape index: {}]
  %s12 = inlined_call_operand.vmem [shape: f32[1,384], index: 12, kind: input, shape index: {}]
  %s13 = inlined_call_operand.vmem [shape: bf16[384,128], index: 13, kind: input, shape index: {}]
  %s14 = inlined_call_operand.vmem [shape: f32[1,128], index: 14, kind: input, shape index: {}]
  %s15 = inlined_call_operand.vmem [shape: bf16[640,128], index: 15, kind: input, shape index: {}]
  %s16 = inlined_call_operand.vmem [shape: f32[1,128], index: 16, kind: input, shape index: {}]
  %s17 = inlined_call_operand.vmem [shape: bf16[256,128], index: 17, kind: input, shape index: {}]
  %s18 = inlined_call_operand.vmem [shape: f32[1,128], index: 18, kind: input, shape index: {}]
  %s19 = inlined_call_operand.vmem [shape: bf16[512,128], index: 19, kind: input, shape index: {}]
  %s20 = inlined_call_operand.hbm [shape: f32[1,128], index: 20, kind: input, shape index: {}]
  %s21 = inlined_call_operand.hbm [shape: f32[1,2,128], index: 21, kind: output, shape index: {}]
  %s22 = sld [smem:[#allocation0]]
  $region118: #{inception_classifier.1} parent=0
    _
  %s24 = ssub.s32 1, %s22
  %s25 = scalar_select 0, %s24, %s22
  $region1: #{inception_classifier.1} parent=0
    #allocation2 [shape = 'u8[512]{0}', space=vmem, size = 0x400, scoped, tag = 'input window, operand 2, single buffered']
    #allocation3 [shape = 's32[1]{0}', space=sflag, size = 0x4, scoped, tag = 'scoped memory for inception_classifier.1']
    #allocation4 [shape = 's32[1]{0}', space=sflag, size = 0x4, scoped, tag = 'scoped memory for inception_classifier.1']
    #allocation5 [shape = 'u8[32768]{0}', space=vmem, size = 0x8000, scoped, tag = 'input window, operand 3, single buffered']
    #allocation6 [shape = 's32[1]{0}', space=sflag, size = 0x4, scoped, tag = 'scoped memory for inception_classifier.1']
    #allocation7 [shape = 'u8[1024]{0}', space=vmem, size = 0x400, scoped, tag = 'input window, operand 4, single buffered']
    #allocation8 [shape = 'u8[512]{0}', space=vmem, size = 0x400, scoped, tag = 'input window, operand 6, single buffered']
    #allocation9 [shape = 's32[1]{0}', space=sflag, size = 0x4, scoped, tag = 'scoped memory for inception_classifier.1']
    #allocation10 [shape = 'u8[81920]{0}', space=vmem, size = 0x14000, scoped, tag = 'input window, operand 7, single buffered']
    #allocation11 [shape = 'u8[512]{0}', space=vmem, size = 0x400, scoped, tag = 'input window, operand 20, single buffered']
    #allocation12 [shape = 's32[1]{0}', space=sflag, size = 0x4, scoped, tag = 'scoped memory for inception_classifier.1']
    #allocation13 [shape = 'u8[1024]{0}', space=vmem, size = 0x400, scoped, tag = 'output window, operand 0, single buffered']
    %26 = vsyncpa [#allocation3], 0
    %27 = vsyncpa [#allocation6], 0
    %28 = vsyncpa [#allocation9], 0
    %29 = vsyncpa [#allocation12], 0
    %30 = vsyncpa [#allocation4], 0
    // Predicated region
    $region2: #{inception_classifier.1} parent=1 // pred_check
      _
    $region3: #{inception_classifier.1} parent=1 // pred_check_branch
      %32 = sbr.rel (0) target = $region5
    $region4: #{inception_classifier.1} parent=1 // pred_region
      _
    $region5: #{inception_classifier.1} parent=1 // pred_fallthru
      _
    // Predicated region
    $region6: #{inception_classifier.1} parent=1 // pred_check
      _
    $region7: #{inception_classifier.1} parent=1 // pred_check_branch
      %34 = sbr.rel (0) target = $region9
    $region8: #{inception_classifier.1} parent=1 // pred_region
      _
    $region9: #{inception_classifier.1} parent=1 // pred_fallthru
      _
    // Predicated region
    $region10: #{inception_classifier.1} parent=1 // pred_check
      _
    $region11: #{inception_classifier.1} parent=1 // pred_check_branch
      %36 = sbr.rel (0) target = $region13
    $region12: #{inception_classifier.1} parent=1 // pred_region
      %38 = vsyncadd [#allocation3], 0
      %s40 = sshll.u32 %s2, 4
      %s41 = int_to_ptr.hbm [resolvable:$true] %s40
      %s42 = sshll.u32 [#allocation2], 4
      %s43 = int_to_ptr.vmem [resolvable:$true] %s42
      %45 = dma.hbm_to_vmem [thread:$0]  %s41, 16, %s43, [#allocation3]
    $region13: #{inception_classifier.1} parent=1 // pred_fallthru
      _
    // Predicated region
    $region14: #{inception_classifier.1} parent=1 // pred_check
      _
    $region15: #{inception_classifier.1} parent=1 // pred_check_branch
      %47 = sbr.rel (0) target = $region17
    $region16: #{inception_classifier.1} parent=1 // pred_region
      %49 = vsyncadd [#allocation6], 0
      %s50 = sshll.u32 %s3, 4
      %s51 = int_to_ptr.hbm [resolvable:$true] %s50
      %s52 = sshll.u32 [#allocation5], 4
      %s53 = int_to_ptr.vmem [resolvable:$true] %s52
      %58 = dma.hbm_to_vmem [thread:$0]  %s51, 1024, %s53, [#allocation6], 128, 128, 8
    $region17: #{inception_classifier.1} parent=1 // pred_fallthru
      _
    // Predicated region
    $region18: #{inception_classifier.1} parent=1 // pred_check
      _
    $region19: #{inception_classifier.1} parent=1 // pred_check_branch
      %60 = sbr.rel (0) target = $region21
    $region20: #{inception_classifier.1} parent=1 // pred_region
      %62 = vsyncadd [#allocation6], 0
      %s64 = sshll.u32 %s4, 4
      %s65 = int_to_ptr.hbm [resolvable:$true] %s64
      %s66 = sshll.u32 [#allocation7], 4
      %s67 = int_to_ptr.vmem [resolvable:$true] %s66
      %69 = dma.hbm_to_vmem [thread:$0]  %s65, 32, %s67, [#allocation6]
    $region21: #{inception_classifier.1} parent=1 // pred_fallthru
      _
    // Predicated region
    $region22: #{inception_classifier.1} parent=1 // pred_check
      _
    $region23: #{inception_classifier.1} parent=1 // pred_check_branch
      %71 = sbr.rel (0) target = $region25
    $region24: #{inception_classifier.1} parent=1 // pred_region
      _
    $region25: #{inception_classifier.1} parent=1 // pred_fallthru
      _
    // Predicated region
    $region26: #{inception_classifier.1} parent=1 // pred_check
      _
    $region27: #{inception_classifier.1} parent=1 // pred_check_branch
      %73 = sbr.rel (0) target = $region29
    $region28: #{inception_classifier.1} parent=1 // pred_region
      %75 = vsyncadd [#allocation9], 0
      %s77 = sshll.u32 %s6, 4
      %s78 = int_to_ptr.hbm [resolvable:$true] %s77
      %s79 = sshll.u32 [#allocation8], 4
      %s80 = int_to_ptr.vmem [resolvable:$true] %s79
      %82 = dma.hbm_to_vmem [thread:$0]  %s78, 16, %s80, [#allocation9]
    $region29: #{inception_classifier.1} parent=1 // pred_fallthru
      _
    // Predicated region
    $region30: #{inception_classifier.1} parent=1 // pred_check
      _
    $region31: #{inception_classifier.1} parent=1 // pred_check_branch
      %84 = sbr.rel (0) target = $region33
    $region32: #{inception_classifier.1} parent=1 // pred_region
      %86 = vsyncadd [#allocation9], 0
      %s87 = sshll.u32 %s7, 4
      %s88 = int_to_ptr.hbm [resolvable:$true] %s87
      %s89 = sshll.u32 [#allocation10], 4
      %s90 = int_to_ptr.vmem [resolvable:$true] %s89
      %95 = dma.hbm_to_vmem [thread:$0]  %s88, 2560, %s90, [#allocation9], 64, 64, 4
    $region33: #{inception_classifier.1} parent=1 // pred_fallthru
      _
    // Predicated region
    $region34: #{inception_classifier.1} parent=1 // pred_check
      _
    $region35: #{inception_classifier.1} parent=1 // pred_check_branch
      %97 = sbr.rel (0) target = $region37
    $region36: #{inception_classifier.1} parent=1 // pred_region
      _
    $region37: #{inception_classifier.1} parent=1 // pred_fallthru
      _
    // Predicated region
    $region38: #{inception_classifier.1} parent=1 // pred_check
      _
    $region39: #{inception_classifier.1} parent=1 // pred_check_branch
      %99 = sbr.rel (0) target = $region41
    $region40: #{inception_classifier.1} parent=1 // pred_region
      _
    $region41: #{inception_classifier.1} parent=1 // pred_fallthru
      _
    // Predicated region
    $region42: #{inception_classifier.1} parent=1 // pred_check
      _
    $region43: #{inception_classifier.1} parent=1 // pred_check_branch
      %101 = sbr.rel (0) target = $region45
    $region44: #{inception_classifier.1} parent=1 // pred_region
      _
    $region45: #{inception_classifier.1} parent=1 // pred_fallthru
      _
    // Predicated region
    $region46: #{inception_classifier.1} parent=1 // pred_check
      _
    $region47: #{inception_classifier.1} parent=1 // pred_check_branch
      %103 = sbr.rel (0) target = $region49
    $region48: #{inception_classifier.1} parent=1 // pred_region
      _
    $region49: #{inception_classifier.1} parent=1 // pred_fallthru
      _
    // Predicated region
    $region50: #{inception_classifier.1} parent=1 // pred_check
      _
    $region51: #{inception_classifier.1} parent=1 // pred_check_branch
      %105 = sbr.rel (0) target = $region53
    $region52: #{inception_classifier.1} parent=1 // pred_region
      _
    $region53: #{inception_classifier.1} parent=1 // pred_fallthru
      _
    // Predicated region
    $region54: #{inception_classifier.1} parent=1 // pred_check
      _
    $region55: #{inception_classifier.1} parent=1 // pred_check_branch
      %107 = sbr.rel (0) target = $region57
    $region56: #{inception_classifier.1} parent=1 // pred_region
      _
    $region57: #{inception_classifier.1} parent=1 // pred_fallthru
      _
    // Predicated region
    $region58: #{inception_classifier.1} parent=1 // pred_check
      _
    $region59: #{inception_classifier.1} parent=1 // pred_check_branch
      %109 = sbr.rel (0) target = $region61
    $region60: #{inception_classifier.1} parent=1 // pred_region
      _
    $region61: #{inception_classifier.1} parent=1 // pred_fallthru
      _
    // Predicated region
    $region62: #{inception_classifier.1} parent=1 // pred_check
      _
    $region63: #{inception_classifier.1} parent=1 // pred_check_branch
      %111 = sbr.rel (0) target = $region65
    $region64: #{inception_classifier.1} parent=1 // pred_region
      _
    $region65: #{inception_classifier.1} parent=1 // pred_fallthru
      _
    // Predicated region
    $region66: #{inception_classifier.1} parent=1 // pred_check
      _
    $region67: #{inception_classifier.1} parent=1 // pred_check_branch
      %113 = sbr.rel (0) target = $region69
    $region68: #{inception_classifier.1} parent=1 // pred_region
      _
    $region69: #{inception_classifier.1} parent=1 // pred_fallthru
      _
    // Predicated region
    $region70: #{inception_classifier.1} parent=1 // pred_check
      _
    $region71: #{inception_classifier.1} parent=1 // pred_check_branch
      %115 = sbr.rel (0) target = $region73
    $region72: #{inception_classifier.1} parent=1 // pred_region
      _
    $region73: #{inception_classifier.1} parent=1 // pred_fallthru
      _
    // Predicated region
    $region74: #{inception_classifier.1} parent=1 // pred_check
      _
    $region75: #{inception_classifier.1} parent=1 // pred_check_branch
      %117 = sbr.rel (0) target = $region77
    $region76: #{inception_classifier.1} parent=1 // pred_region
      _
    $region77: #{inception_classifier.1} parent=1 // pred_fallthru
      _
    // Predicated region
    $region78: #{inception_classifier.1} parent=1 // pred_check
      _
    $region79: #{inception_classifier.1} parent=1 // pred_check_branch
      %119 = sbr.rel (0) target = $region81
    $region80: #{inception_classifier.1} parent=1 // pred_region
      _
    $region81: #{inception_classifier.1} parent=1 // pred_fallthru
      _
    // Predicated region
    $region82: #{inception_classifier.1} parent=1 // pred_check
      _
    $region83: #{inception_classifier.1} parent=1 // pred_check_branch
      %121 = sbr.rel (0) target = $region85
    $region84: #{inception_classifier.1} parent=1 // pred_region
      %123 = vsyncadd [#allocation12], 0
      %s125 = sshll.u32 %s20, 4
      %s126 = int_to_ptr.hbm [resolvable:$true] %s125
      %s127 = sshll.u32 [#allocation11], 4
      %s128 = int_to_ptr.vmem [resolvable:$true] %s127
      %130 = dma.hbm_to_vmem [thread:$0]  %s126, 16, %s128, [#allocation12]
    $region85: #{inception_classifier.1} parent=1 // pred_fallthru
      _
    // Predicated region
    $region86: #{inception_classifier.1} parent=1 // pred_check
      _
    $region87: #{inception_classifier.1} parent=1 // pred_check_branch
      %132 = sbr.rel (0) target = $region89
    $region88: #{inception_classifier.1} parent=1 // pred_region
      %134 = dma.done [#allocation3], 16
    $region89: #{inception_classifier.1} parent=1 // pred_fallthru
      _
    // Predicated region
    $region90: #{inception_classifier.1} parent=1 // pred_check
      _
    $region91: #{inception_classifier.1} parent=1 // pred_check_branch
      %136 = sbr.rel (0) target = $region93
    $region92: #{inception_classifier.1} parent=1 // pred_region
      %138 = dma.done [#allocation6], 1024
    $region93: #{inception_classifier.1} parent=1 // pred_fallthru
      _
    // Predicated region
    $region94: #{inception_classifier.1} parent=1 // pred_check
      _
    $region95: #{inception_classifier.1} parent=1 // pred_check_branch
      %140 = sbr.rel (0) target = $region97
    $region96: #{inception_classifier.1} parent=1 // pred_region
      %142 = dma.done [#allocation6], 32
    $region97: #{inception_classifier.1} parent=1 // pred_fallthru
      _
    // Predicated region
    $region98: #{inception_classifier.1} parent=1 // pred_check
      _
    $region99: #{inception_classifier.1} parent=1 // pred_check_branch
      %144 = sbr.rel (0) target = $region101
    $region100: #{inception_classifier.1} parent=1 // pred_region
      %146 = dma.done [#allocation9], 16
    $region101: #{inception_classifier.1} parent=1 // pred_fallthru
      _
    // Predicated region
    $region102: #{inception_classifier.1} parent=1 // pred_check
      _
    $region103: #{inception_classifier.1} parent=1 // pred_check_branch
      %148 = sbr.rel (0) target = $region105
    $region104: #{inception_classifier.1} parent=1 // pred_region
      %150 = dma.done [#allocation9], 2560
    $region105: #{inception_classifier.1} parent=1 // pred_fallthru
      _
    // Predicated region
    $region106: #{inception_classifier.1} parent=1 // pred_check
      _
    $region107: #{inception_classifier.1} parent=1 // pred_check_branch
      %152 = sbr.rel (0) target = $region109
    $region108: #{inception_classifier.1} parent=1 // pred_region
      %154 = dma.done [#allocation12], 16
    $region109: #{inception_classifier.1} parent=1 // pred_fallthru
      _
    %v156 = vlaneseq
    %v157 = vshrl.u32 %v156, 7
    %v158 = vadd.s32 %v157, 8
    %v159 = vadd.s32 %v157, 16
    %v160 = vadd.s32 %v157, 24
    %v161 = vadd.s32 %v157, 32
    %v162 = vadd.s32 %v157, 40
    %v163 = vadd.s32 %v157, 48
    %v164 = vadd.s32 %v157, 56
    %v165 = vadd.s32 %v157, 64
    %v166 = vadd.s32 %v157, 72
    %v167 = vadd.s32 %v157, 80
    %v168 = vadd.s32 %v157, 88
    %v169 = vadd.s32 %v157, 96
    %v170 = vadd.s32 %v157, 104
    %v171 = vadd.s32 %v157, 112
    %v172 = vadd.s32 %v157, 120
    %vm173 = vcmp.lt.s32.totalorder %v157, 0
    %v174 = vsub.s32 0, %v157
    %v175 = vsel %vm173, %v174, %v157
    %v176 = vshrl.u32 %v175, 6
    %v177 = vand.u32 %v175, 63
    %v178 = vsub.s32 0, %v177
    %v179 = vsel %vm173, %v178, %v177
    %vm180 = vcmp.lt.s32.totalorder %v158, 0
    %v181 = vsub.s32 0, %v158
    %v182 = vsel %vm180, %v181, %v158
    %v183 = vshrl.u32 %v182, 6
    %v184 = vand.u32 %v182, 63
    %v185 = vsub.s32 0, %v184
    %v186 = vsel %vm180, %v185, %v184
    %vm187 = vcmp.lt.s32.totalorder %v159, 0
    %v188 = vsub.s32 0, %v159
    %v189 = vsel %vm187, %v188, %v159
    %v190 = vshrl.u32 %v189, 6
    %v191 = vand.u32 %v189, 63
    %v192 = vsub.s32 0, %v191
    %v193 = vsel %vm187, %v192, %v191
    %vm194 = vcmp.lt.s32.totalorder %v160, 0
    %v195 = vsub.s32 0, %v160
    %v196 = vsel %vm194, %v195, %v160
    %v197 = vshrl.u32 %v196, 6
    %v198 = vand.u32 %v196, 63
    %v199 = vsub.s32 0, %v198
    %v200 = vsel %vm194, %v199, %v198
    %vm201 = vcmp.lt.s32.totalorder %v161, 0
    %v202 = vsub.s32 0, %v161
    %v203 = vsel %vm201, %v202, %v161
    %v204 = vshrl.u32 %v203, 6
    %v205 = vand.u32 %v203, 63
    %v206 = vsub.s32 0, %v205
    %v207 = vsel %vm201, %v206, %v205
    %vm208 = vcmp.lt.s32.totalorder %v162, 0
    %v209 = vsub.s32 0, %v162
    %v210 = vsel %vm208, %v209, %v162
    %v211 = vshrl.u32 %v210, 6
    %v212 = vand.u32 %v210, 63
    %v213 = vsub.s32 0, %v212
    %v214 = vsel %vm208, %v213, %v212
    %vm215 = vcmp.lt.s32.totalorder %v163, 0
    %v216 = vsub.s32 0, %v163
    %v217 = vsel %vm215, %v216, %v163
    %v218 = vshrl.u32 %v217, 6
    %v219 = vand.u32 %v217, 63
    %v220 = vsub.s32 0, %v219
    %v221 = vsel %vm215, %v220, %v219
    %vm222 = vcmp.lt.s32.totalorder %v164, 0
    %v223 = vsub.s32 0, %v164
    %v224 = vsel %vm222, %v223, %v164
    %v225 = vshrl.u32 %v224, 6
    %v226 = vand.u32 %v224, 63
    %v227 = vsub.s32 0, %v226
    %v228 = vsel %vm222, %v227, %v226
    %vm229 = vcmp.lt.s32.totalorder %v165, 0
    %v230 = vsub.s32 0, %v165
    %v231 = vsel %vm229, %v230, %v165
    %v232 = vshrl.u32 %v231, 6
    %v233 = vand.u32 %v231, 63
    %v234 = vsub.s32 0, %v233
    %v235 = vsel %vm229, %v234, %v233
    %vm236 = vcmp.lt.s32.totalorder %v166, 0
    %v237 = vsub.s32 0, %v166
    %v238 = vsel %vm236, %v237, %v166
    %v239 = vshrl.u32 %v238, 6
    %v240 = vand.u32 %v238, 63
    %v241 = vsub.s32 0, %v240
    %v242 = vsel %vm236, %v241, %v240
    %vm243 = vcmp.lt.s32.totalorder %v167, 0
    %v244 = vsub.s32 0, %v167
    %v245 = vsel %vm243, %v244, %v167
    %v246 = vshrl.u32 %v245, 6
    %v247 = vand.u32 %v245, 63
    %v248 = vsub.s32 0, %v247
    %v249 = vsel %vm243, %v248, %v247
    %vm250 = vcmp.lt.s32.totalorder %v168, 0
    %v251 = vsub.s32 0, %v168
    %v252 = vsel %vm250, %v251, %v168
    %v253 = vshrl.u32 %v252, 6
    %v254 = vand.u32 %v252, 63
    %v255 = vsub.s32 0, %v254
    %v256 = vsel %vm250, %v255, %v254
    %vm257 = vcmp.lt.s32.totalorder %v169, 0
    %v258 = vsub.s32 0, %v169
    %v259 = vsel %vm257, %v258, %v169
    %v260 = vshrl.u32 %v259, 6
    %v261 = vand.u32 %v259, 63
    %v262 = vsub.s32 0, %v261
    %v263 = vsel %vm257, %v262, %v261
    %vm264 = vcmp.lt.s32.totalorder %v170, 0
    %v265 = vsub.s32 0, %v170
    %v266 = vsel %vm264, %v265, %v170
    %v267 = vshrl.u32 %v266, 6
    %v268 = vand.u32 %v266, 63
    %v269 = vsub.s32 0, %v268
    %v270 = vsel %vm264, %v269, %v268
    %vm271 = vcmp.lt.s32.totalorder %v171, 0
    %v272 = vsub.s32 0, %v171
    %v273 = vsel %vm271, %v272, %v171
    %v274 = vshrl.u32 %v273, 6
    %v275 = vand.u32 %v273, 63
    %v276 = vsub.s32 0, %v275
    %v277 = vsel %vm271, %v276, %v275
    %vm278 = vcmp.lt.s32.totalorder %v172, 0
    %v279 = vsub.s32 0, %v172
    %v280 = vsel %vm278, %v279, %v172
    %v281 = vshrl.u32 %v280, 6
    %v282 = vand.u32 %v280, 63
    %v283 = vsub.s32 0, %v282
    %v284 = vsel %vm278, %v283, %v282
    %vm285 = vcmp.ne.s32.totalorder %v179, 0
    %vm286 = vcmp.ne.s32.totalorder %v186, 0
    %vm287 = vcmp.ne.s32.totalorder %v193, 0
    %vm288 = vcmp.ne.s32.totalorder %v200, 0
    %vm289 = vcmp.ne.s32.totalorder %v207, 0
    %vm290 = vcmp.ne.s32.totalorder %v214, 0
    %vm291 = vcmp.ne.s32.totalorder %v221, 0
    %vm292 = vcmp.ne.s32.totalorder %v228, 0
    %vm293 = vcmp.ne.s32.totalorder %v235, 0
    %vm294 = vcmp.ne.s32.totalorder %v242, 0
    %vm295 = vcmp.ne.s32.totalorder %v249, 0
    %vm296 = vcmp.ne.s32.totalorder %v256, 0
    %vm297 = vcmp.ne.s32.totalorder %v263, 0
    %vm298 = vcmp.ne.s32.totalorder %v270, 0
    %vm299 = vcmp.ne.s32.totalorder %v277, 0
    %vm300 = vcmp.ne.s32.totalorder %v284, 0
    %vm301 = vcmp.lt.s32.totalorder %v179, 0
    %vm302 = vcmp.lt.s32.totalorder %v186, 0
    %vm303 = vcmp.lt.s32.totalorder %v193, 0
    %vm304 = vcmp.lt.s32.totalorder %v200, 0
    %vm305 = vcmp.lt.s32.totalorder %v207, 0
    %vm306 = vcmp.lt.s32.totalorder %v214, 0
    %vm307 = vcmp.lt.s32.totalorder %v221, 0
    %vm308 = vcmp.lt.s32.totalorder %v228, 0
    %vm309 = vcmp.lt.s32.totalorder %v235, 0
    %vm310 = vcmp.lt.s32.totalorder %v242, 0
    %vm311 = vcmp.lt.s32.totalorder %v249, 0
    %vm312 = vcmp.lt.s32.totalorder %v256, 0
    %vm313 = vcmp.lt.s32.totalorder %v263, 0
    %vm314 = vcmp.lt.s32.totalorder %v270, 0
    %vm315 = vcmp.lt.s32.totalorder %v277, 0
    %vm316 = vcmp.lt.s32.totalorder %v284, 0
    %vm317 = vmand %vm301, %vm285
    %vm318 = vmand %vm302, %vm286
    %vm319 = vmand %vm303, %vm287
    %vm320 = vmand %vm304, %vm288
    %vm321 = vmand %vm305, %vm289
    %vm322 = vmand %vm306, %vm290
    %vm323 = vmand %vm307, %vm291
    %vm324 = vmand %vm308, %vm292
    %vm325 = vmand %vm309, %vm293
    %vm326 = vmand %vm310, %vm294
    %vm327 = vmand %vm311, %vm295
    %vm328 = vmand %vm312, %vm296
    %vm329 = vmand %vm313, %vm297
    %vm330 = vmand %vm314, %vm298
    %vm331 = vmand %vm315, %vm299
    %vm332 = vmand %vm316, %vm300
    %v333 = vadd.s32 %v179, 64
    %v334 = vadd.s32 %v186, 64
    %v335 = vadd.s32 %v193, 64
    %v336 = vadd.s32 %v200, 64
    %v337 = vadd.s32 %v207, 64
    %v338 = vadd.s32 %v214, 64
    %v339 = vadd.s32 %v221, 64
    %v340 = vadd.s32 %v228, 64
    %v341 = vadd.s32 %v235, 64
    %v342 = vadd.s32 %v242, 64
    %v343 = vadd.s32 %v249, 64
    %v344 = vadd.s32 %v256, 64
    %v345 = vadd.s32 %v263, 64
    %v346 = vadd.s32 %v270, 64
    %v347 = vadd.s32 %v277, 64
    %v348 = vadd.s32 %v284, 64
    %v349 = vsel %vm317, %v333, %v179
    %v350 = vsel %vm318, %v334, %v186
    %v351 = vsel %vm319, %v335, %v193
    %v352 = vsel %vm320, %v336, %v200
    %v353 = vsel %vm321, %v337, %v207
    %v354 = vsel %vm322, %v338, %v214
    %v355 = vsel %vm323, %v339, %v221
    %v356 = vsel %vm324, %v340, %v228
    %v357 = vsel %vm325, %v341, %v235
    %v358 = vsel %vm326, %v342, %v242
    %v359 = vsel %vm327, %v343, %v249
    %v360 = vsel %vm328, %v344, %v256
    %v361 = vsel %vm329, %v345, %v263
    %v362 = vsel %vm330, %v346, %v270
    %v363 = vsel %vm331, %v347, %v277
    %v364 = vsel %vm332, %v348, %v284
    %v365 = vld [vmem:[%s0] sm:$0xff]
    %v366 = vld [vmem:[%s0 + $0x8] sm:$0xff]
    %v367 = vld [vmem:[%s0 + $0x10] sm:$0xff]
    %v368 = vld [vmem:[%s0 + $0x18] sm:$0xff]
    %v369 = vld [vmem:[%s0 + $0x20] sm:$0xff]
    %v370 = vld [vmem:[%s0 + $0x28] sm:$0xff]
    %v371 = vld [vmem:[%s0 + $0x30] sm:$0xff]
    %v372 = vld [vmem:[%s0 + $0x38] sm:$0xff]
    %v373 = vld [vmem:[%s0 + $0x40] sm:$0xff]
    %v374 = vld [vmem:[%s0 + $0x48] sm:$0xff]
    %v375 = vld [vmem:[%s0 + $0x50] sm:$0xff]
    %v376 = vld [vmem:[%s0 + $0x58] sm:$0xff]
    %v377 = vld [vmem:[%s0 + $0x60] sm:$0xff]
    %v378 = vld [vmem:[%s0 + $0x68] sm:$0xff]
    %v379 = vld [vmem:[%s0 + $0x70] sm:$0xff]
    %v380 = vld [vmem:[%s0 + $0x78] sm:$0xff]
    %v381 = vrot.slane %v365, 5
    %v382 = vrot.slane %v366, 5
    %v383 = vrot.slane %v367, 5
    %v384 = vrot.slane %v368, 5
    %v385 = vrot.slane %v369, 5
    %v386 = vrot.slane %v370, 5
    %v387 = vrot.slane %v371, 5
    %v388 = vrot.slane %v372, 5
    %v389 = vrot.slane %v373, 5
    %v390 = vrot.slane %v374, 5
    %v391 = vrot.slane %v375, 5
    %v392 = vrot.slane %v376, 5
    %v393 = vrot.slane %v377, 5
    %v394 = vrot.slane %v378, 5
    %v395 = vrot.slane %v379, 5
    %v396 = vrot.slane %v380, 5
    %vm397 = vcmp.lt.s32.totalorder %v157, 3
    %v398 = vsel %vm397, %v395, %v396
    %v399 = vsel %vm397, %v394, %v395
    %v400 = vsel %vm397, %v393, %v394
    %v401 = vsel %vm397, %v392, %v393
    %v402 = vsel %vm397, %v391, %v392
    %v403 = vsel %vm397, %v390, %v391
    %v404 = vsel %vm397, %v389, %v390
    %v405 = vsel %vm397, %v388, %v389
    %v406 = vsel %vm397, %v387, %v388
    %v407 = vsel %vm397, %v386, %v387
    %v408 = vsel %vm397, %v385, %v386
    %v409 = vsel %vm397, %v384, %v385
    %v410 = vsel %vm397, %v383, %v384
    %v411 = vsel %vm397, %v382, %v383
    %v412 = vsel %vm397, %v381, %v382
    %v413 = vsel %vm397, %v396, %v381
    %vm414 = vcmp.ge.s32.totalorder %v349, 3
    %vm415 = vcmp.ge.s32.totalorder %v350, 3
    %vm416 = vcmp.ge.s32.totalorder %v351, 3
    %vm417 = vcmp.ge.s32.totalorder %v352, 3
    %vm418 = vcmp.ge.s32.totalorder %v353, 3
    %vm419 = vcmp.ge.s32.totalorder %v354, 3
    %vm420 = vcmp.ge.s32.totalorder %v355, 3
    %vm421 = vcmp.ge.s32.totalorder %v356, 3
    %vm422 = vcmp.ge.s32.totalorder %v357, 3
    %vm423 = vcmp.ge.s32.totalorder %v358, 3
    %vm424 = vcmp.ge.s32.totalorder %v359, 3
    %vm425 = vcmp.ge.s32.totalorder %v360, 3
    %vm426 = vcmp.ge.s32.totalorder %v361, 3
    %vm427 = vcmp.ge.s32.totalorder %v362, 3
    %vm428 = vcmp.ge.s32.totalorder %v363, 3
    %vm429 = vcmp.ge.s32.totalorder %v364, 3
    %v430 = vsel %vm414, 1, 0
    %v431 = vsel %vm415, 1, 0
    %v432 = vsel %vm416, 1, 0
    %v433 = vsel %vm417, 1, 0
    %v434 = vsel %vm418, 1, 0
    %v435 = vsel %vm419, 1, 0
    %v436 = vsel %vm420, 1, 0
    %v437 = vsel %vm421, 1, 0
    %v438 = vsel %vm422, 1, 0
    %v439 = vsel %vm423, 1, 0
    %v440 = vsel %vm424, 1, 0
    %v441 = vsel %vm425, 1, 0
    %v442 = vsel %vm426, 1, 0
    %v443 = vsel %vm427, 1, 0
    %v444 = vsel %vm428, 1, 0
    %v445 = vsel %vm429, 1, 0
    %vm446 = vcmp.eq.s32.totalorder %v430, 1
    %vm447 = vcmp.eq.s32.totalorder %v431, 1
    %vm448 = vcmp.eq.s32.totalorder %v432, 1
    %vm449 = vcmp.eq.s32.totalorder %v433, 1
    %vm450 = vcmp.eq.s32.totalorder %v434, 1
    %vm451 = vcmp.eq.s32.totalorder %v435, 1
    %vm452 = vcmp.eq.s32.totalorder %v436, 1
    %vm453 = vcmp.eq.s32.totalorder %v437, 1
    %vm454 = vcmp.eq.s32.totalorder %v438, 1
    %vm455 = vcmp.eq.s32.totalorder %v439, 1
    %vm456 = vcmp.eq.s32.totalorder %v440, 1
    %vm457 = vcmp.eq.s32.totalorder %v441, 1
    %vm458 = vcmp.eq.s32.totalorder %v442, 1
    %vm459 = vcmp.eq.s32.totalorder %v443, 1
    %vm460 = vcmp.eq.s32.totalorder %v444, 1
    %vm461 = vcmp.eq.s32.totalorder %v445, 1
    %v462 = vsel %vm446, %v413, 0.0
    %v463 = vsel %vm447, %v412, 0.0
    %v464 = vsel %vm448, %v411, 0.0
    %v465 = vsel %vm449, %v410, 0.0
    %v466 = vsel %vm450, %v409, 0.0
    %v467 = vsel %vm451, %v408, 0.0
    %v468 = vsel %vm452, %v407, 0.0
    %v469 = vsel %vm453, %v406, 0.0
    %v470 = vsel %vm454, %v405, 0.0
    %v471 = vsel %vm455, %v404, 0.0
    %v472 = vsel %vm456, %v403, 0.0
    %v473 = vsel %vm457, %v402, 0.0
    %v474 = vsel %vm458, %v401, 0.0
    %v475 = vsel %vm459, %v400, 0.0
    %v476 = vsel %vm460, %v399, 0.0
    %v477 = vsel %vm461, %v398, 0.0
    %v478 = vrot.slane %v365, 6
    %v479 = vrot.slane %v366, 6
    %v480 = vrot.slane %v367, 6
    %v481 = vrot.slane %v368, 6
    %v482 = vrot.slane %v369, 6
    %v483 = vrot.slane %v370, 6
    %v484 = vrot.slane %v371, 6
    %v485 = vrot.slane %v372, 6
    %v486 = vrot.slane %v373, 6
    %v487 = vrot.slane %v374, 6
    %v488 = vrot.slane %v375, 6
    %v489 = vrot.slane %v376, 6
    %v490 = vrot.slane %v377, 6
    %v491 = vrot.slane %v378, 6
    %v492 = vrot.slane %v379, 6
    %v493 = vrot.slane %v380, 6
    %vm494 = vcmp.lt.s32.totalorder %v157, 2
    %v495 = vsel %vm494, %v492, %v493
    %v496 = vsel %vm494, %v491, %v492
    %v497 = vsel %vm494, %v490, %v491
    %v498 = vsel %vm494, %v489, %v490
    %v499 = vsel %vm494, %v488, %v489
    %v500 = vsel %vm494, %v487, %v488
    %v501 = vsel %vm494, %v486, %v487
    %v502 = vsel %vm494, %v485, %v486
    %v503 = vsel %vm494, %v484, %v485
    %v504 = vsel %vm494, %v483, %v484
    %v505 = vsel %vm494, %v482, %v483
    %v506 = vsel %vm494, %v481, %v482
    %v507 = vsel %vm494, %v480, %v481
    %v508 = vsel %vm494, %v479, %v480
    %v509 = vsel %vm494, %v478, %v479
    %v510 = vsel %vm494, %v493, %v478
    %vm511 = vcmp.ge.s32.totalorder %v349, 2
    %vm512 = vcmp.ge.s32.totalorder %v350, 2
    %vm513 = vcmp.ge.s32.totalorder %v351, 2
    %vm514 = vcmp.ge.s32.totalorder %v352, 2
    %vm515 = vcmp.ge.s32.totalorder %v353, 2
    %vm516 = vcmp.ge.s32.totalorder %v354, 2
    %vm517 = vcmp.ge.s32.totalorder %v355, 2
    %vm518 = vcmp.ge.s32.totalorder %v356, 2
    %vm519 = vcmp.ge.s32.totalorder %v357, 2
    %vm520 = vcmp.ge.s32.totalorder %v358, 2
    %vm521 = vcmp.ge.s32.totalorder %v359, 2
    %vm522 = vcmp.ge.s32.totalorder %v360, 2
    %vm523 = vcmp.ge.s32.totalorder %v361, 2
    %vm524 = vcmp.ge.s32.totalorder %v362, 2
    %vm525 = vcmp.ge.s32.totalorder %v363, 2
    %vm526 = vcmp.ge.s32.totalorder %v364, 2
    %v527 = vsel %vm511, 1, 0
    %v528 = vsel %vm512, 1, 0
    %v529 = vsel %vm513, 1, 0
    %v530 = vsel %vm514, 1, 0
    %v531 = vsel %vm515, 1, 0
    %v532 = vsel %vm516, 1, 0
    %v533 = vsel %vm517, 1, 0
    %v534 = vsel %vm518, 1, 0
    %v535 = vsel %vm519, 1, 0
    %v536 = vsel %vm520, 1, 0
    %v537 = vsel %vm521, 1, 0
    %v538 = vsel %vm522, 1, 0
    %v539 = vsel %vm523, 1, 0
    %v540 = vsel %vm524, 1, 0
    %v541 = vsel %vm525, 1, 0
    %v542 = vsel %vm526, 1, 0
    %vm543 = vcmp.eq.s32.totalorder %v527, 1
    %vm544 = vcmp.eq.s32.totalorder %v528, 1
    %vm545 = vcmp.eq.s32.totalorder %v529, 1
    %vm546 = vcmp.eq.s32.totalorder %v530, 1
    %vm547 = vcmp.eq.s32.totalorder %v531, 1
    %vm548 = vcmp.eq.s32.totalorder %v532, 1
    %vm549 = vcmp.eq.s32.totalorder %v533, 1
    %vm550 = vcmp.eq.s32.totalorder %v534, 1
    %vm551 = vcmp.eq.s32.totalorder %v535, 1
    %vm552 = vcmp.eq.s32.totalorder %v536, 1
    %vm553 = vcmp.eq.s32.totalorder %v537, 1
    %vm554 = vcmp.eq.s32.totalorder %v538, 1
    %vm555 = vcmp.eq.s32.totalorder %v539, 1
    %vm556 = vcmp.eq.s32.totalorder %v540, 1
    %vm557 = vcmp.eq.s32.totalorder %v541, 1
    %vm558 = vcmp.eq.s32.totalorder %v542, 1
    %v559 = vsel %vm543, %v510, 0.0
    %v560 = vsel %vm544, %v509, 0.0
    %v561 = vsel %vm545, %v508, 0.0
    %v562 = vsel %vm546, %v507, 0.0
    %v563 = vsel %vm547, %v506, 0.0
    %v564 = vsel %vm548, %v505, 0.0
    %v565 = vsel %vm549, %v504, 0.0
    %v566 = vsel %vm550, %v503, 0.0
    %v567 = vsel %vm551, %v502, 0.0
    %v568 = vsel %vm552, %v501, 0.0
    %v569 = vsel %vm553, %v500, 0.0
    %v570 = vsel %vm554, %v499, 0.0
    %v571 = vsel %vm555, %v498, 0.0
    %v572 = vsel %vm556, %v497, 0.0
    %v573 = vsel %vm557, %v496, 0.0
    %v574 = vsel %vm558, %v495, 0.0
    %v575 = vrot.slane %v365, 7
    %v576 = vrot.slane %v366, 7
    %v577 = vrot.slane %v367, 7
    %v578 = vrot.slane %v368, 7
    %v579 = vrot.slane %v369, 7
    %v580 = vrot.slane %v370, 7
    %v581 = vrot.slane %v371, 7
    %v582 = vrot.slane %v372, 7
    %v583 = vrot.slane %v373, 7
    %v584 = vrot.slane %v374, 7
    %v585 = vrot.slane %v375, 7
    %v586 = vrot.slane %v376, 7
    %v587 = vrot.slane %v377, 7
    %v588 = vrot.slane %v378, 7
    %v589 = vrot.slane %v379, 7
    %v590 = vrot.slane %v380, 7
    %vm591 = vcmp.lt.s32.totalorder %v157, 1
    %v592 = vsel %vm591, %v589, %v590
    %v593 = vsel %vm591, %v588, %v589
    %v594 = vsel %vm591, %v587, %v588
    %v595 = vsel %vm591, %v586, %v587
    %v596 = vsel %vm591, %v585, %v586
    %v597 = vsel %vm591, %v584, %v585
    %v598 = vsel %vm591, %v583, %v584
    %v599 = vsel %vm591, %v582, %v583
    %v600 = vsel %vm591, %v581, %v582
    %v601 = vsel %vm591, %v580, %v581
    %v602 = vsel %vm591, %v579, %v580
    %v603 = vsel %vm591, %v578, %v579
    %v604 = vsel %vm591, %v577, %v578
    %v605 = vsel %vm591, %v576, %v577
    %v606 = vsel %vm591, %v575, %v576
    %v607 = vsel %vm591, %v590, %v575
    %vm608 = vcmp.ge.s32.totalorder %v349, 1
    %vm609 = vcmp.ge.s32.totalorder %v350, 1
    %vm610 = vcmp.ge.s32.totalorder %v351, 1
    %vm611 = vcmp.ge.s32.totalorder %v352, 1
    %vm612 = vcmp.ge.s32.totalorder %v353, 1
    %vm613 = vcmp.ge.s32.totalorder %v354, 1
    %vm614 = vcmp.ge.s32.totalorder %v355, 1
    %vm615 = vcmp.ge.s32.totalorder %v356, 1
    %vm616 = vcmp.ge.s32.totalorder %v357, 1
    %vm617 = vcmp.ge.s32.totalorder %v358, 1
    %vm618 = vcmp.ge.s32.totalorder %v359, 1
    %vm619 = vcmp.ge.s32.totalorder %v360, 1
    %vm620 = vcmp.ge.s32.totalorder %v361, 1
    %vm621 = vcmp.ge.s32.totalorder %v362, 1
    %vm622 = vcmp.ge.s32.totalorder %v363, 1
    %vm623 = vcmp.ge.s32.totalorder %v364, 1
    %v624 = vsel %vm608, 1, 0
    %v625 = vsel %vm609, 1, 0
    %v626 = vsel %vm610, 1, 0
    %v627 = vsel %vm611, 1, 0
    %v628 = vsel %vm612, 1, 0
    %v629 = vsel %vm613, 1, 0
    %v630 = vsel %vm614, 1, 0
    %v631 = vsel %vm615, 1, 0
    %v632 = vsel %vm616, 1, 0
    %v633 = vsel %vm617, 1, 0
    %v634 = vsel %vm618, 1, 0
    %v635 = vsel %vm619, 1, 0
    %v636 = vsel %vm620, 1, 0
    %v637 = vsel %vm621, 1, 0
    %v638 = vsel %vm622, 1, 0
    %v639 = vsel %vm623, 1, 0
    %vm640 = vcmp.eq.s32.totalorder %v624, 1
    %vm641 = vcmp.eq.s32.totalorder %v625, 1
    %vm642 = vcmp.eq.s32.totalorder %v626, 1
    %vm643 = vcmp.eq.s32.totalorder %v627, 1
    %vm644 = vcmp.eq.s32.totalorder %v628, 1
    %vm645 = vcmp.eq.s32.totalorder %v629, 1
    %vm646 = vcmp.eq.s32.totalorder %v630, 1
    %vm647 = vcmp.eq.s32.totalorder %v631, 1
    %vm648 = vcmp.eq.s32.totalorder %v632, 1
    %vm649 = vcmp.eq.s32.totalorder %v633, 1
    %vm650 = vcmp.eq.s32.totalorder %v634, 1
    %vm651 = vcmp.eq.s32.totalorder %v635, 1
    %vm652 = vcmp.eq.s32.totalorder %v636, 1
    %vm653 = vcmp.eq.s32.totalorder %v637, 1
    %vm654 = vcmp.eq.s32.totalorder %v638, 1
    %vm655 = vcmp.eq.s32.totalorder %v639, 1
    %v656 = vsel %vm640, %v607, 0.0
    %v657 = vsel %vm641, %v606, 0.0
    %v658 = vsel %vm642, %v605, 0.0
    %v659 = vsel %vm643, %v604, 0.0
    %v660 = vsel %vm644, %v603, 0.0
    %v661 = vsel %vm645, %v602, 0.0
    %v662 = vsel %vm646, %v601, 0.0
    %v663 = vsel %vm647, %v600, 0.0
    %v664 = vsel %vm648, %v599, 0.0
    %v665 = vsel %vm649, %v598, 0.0
    %v666 = vsel %vm650, %v597, 0.0
    %v667 = vsel %vm651, %v596, 0.0
    %v668 = vsel %vm652, %v595, 0.0
    %v669 = vsel %vm653, %v594, 0.0
    %v670 = vsel %vm654, %v593, 0.0
    %v671 = vsel %vm655, %v592, 0.0
    %v672 = vrot.slane %v365, 1
    %v673 = vrot.slane %v366, 1
    %v674 = vrot.slane %v367, 1
    %v675 = vrot.slane %v368, 1
    %v676 = vrot.slane %v369, 1
    %v677 = vrot.slane %v370, 1
    %v678 = vrot.slane %v371, 1
    %v679 = vrot.slane %v372, 1
    %v680 = vrot.slane %v373, 1
    %v681 = vrot.slane %v374, 1
    %v682 = vrot.slane %v375, 1
    %v683 = vrot.slane %v376, 1
    %v684 = vrot.slane %v377, 1
    %v685 = vrot.slane %v378, 1
    %v686 = vrot.slane %v379, 1
    %v687 = vrot.slane %v380, 1
    %vm688 = vcmp.lt.s32.totalorder %v157, 7
    %v689 = vsel %vm688, %v686, %v687
    %v690 = vsel %vm688, %v685, %v686
    %v691 = vsel %vm688, %v684, %v685
    %v692 = vsel %vm688, %v683, %v684
    %v693 = vsel %vm688, %v682, %v683
    %v694 = vsel %vm688, %v681, %v682
    %v695 = vsel %vm688, %v680, %v681
    %v696 = vsel %vm688, %v679, %v680
    %v697 = vsel %vm688, %v678, %v679
    %v698 = vsel %vm688, %v677, %v678
    %v699 = vsel %vm688, %v676, %v677
    %v700 = vsel %vm688, %v675, %v676
    %v701 = vsel %vm688, %v674, %v675
    %v702 = vsel %vm688, %v673, %v674
    %v703 = vsel %vm688, %v672, %v673
    %v704 = vsel %vm688, %v687, %v672
    %vm705 = vcmp.lt.s32.totalorder %v349, 63
    %vm706 = vcmp.lt.s32.totalorder %v350, 63
    %vm707 = vcmp.lt.s32.totalorder %v351, 63
    %vm708 = vcmp.lt.s32.totalorder %v352, 63
    %vm709 = vcmp.lt.s32.totalorder %v353, 63
    %vm710 = vcmp.lt.s32.totalorder %v354, 63
    %vm711 = vcmp.lt.s32.totalorder %v355, 63
    %vm712 = vcmp.lt.s32.totalorder %v356, 63
    %vm713 = vcmp.lt.s32.totalorder %v357, 63
    %vm714 = vcmp.lt.s32.totalorder %v358, 63
    %vm715 = vcmp.lt.s32.totalorder %v359, 63
    %vm716 = vcmp.lt.s32.totalorder %v360, 63
    %vm717 = vcmp.lt.s32.totalorder %v361, 63
    %vm718 = vcmp.lt.s32.totalorder %v362, 63
    %vm719 = vcmp.lt.s32.totalorder %v363, 63
    %vm720 = vcmp.lt.s32.totalorder %v364, 63
    %v721 = vsel %vm705, 1, 0
    %v722 = vsel %vm706, 1, 0
    %v723 = vsel %vm707, 1, 0
    %v724 = vsel %vm708, 1, 0
    %v725 = vsel %vm709, 1, 0
    %v726 = vsel %vm710, 1, 0
    %v727 = vsel %vm711, 1, 0
    %v728 = vsel %vm712, 1, 0
    %v729 = vsel %vm713, 1, 0
    %v730 = vsel %vm714, 1, 0
    %v731 = vsel %vm715, 1, 0
    %v732 = vsel %vm716, 1, 0
    %v733 = vsel %vm717, 1, 0
    %v734 = vsel %vm718, 1, 0
    %v735 = vsel %vm719, 1, 0
    %v736 = vsel %vm720, 1, 0
    %vm737 = vcmp.eq.s32.totalorder %v721, 1
    %vm738 = vcmp.eq.s32.totalorder %v722, 1
    %vm739 = vcmp.eq.s32.totalorder %v723, 1
    %vm740 = vcmp.eq.s32.totalorder %v724, 1
    %vm741 = vcmp.eq.s32.totalorder %v725, 1
    %vm742 = vcmp.eq.s32.totalorder %v726, 1
    %vm743 = vcmp.eq.s32.totalorder %v727, 1
    %vm744 = vcmp.eq.s32.totalorder %v728, 1
    %vm745 = vcmp.eq.s32.totalorder %v729, 1
    %vm746 = vcmp.eq.s32.totalorder %v730, 1
    %vm747 = vcmp.eq.s32.totalorder %v731, 1
    %vm748 = vcmp.eq.s32.totalorder %v732, 1
    %vm749 = vcmp.eq.s32.totalorder %v733, 1
    %vm750 = vcmp.eq.s32.totalorder %v734, 1
    %vm751 = vcmp.eq.s32.totalorder %v735, 1
    %vm752 = vcmp.eq.s32.totalorder %v736, 1
    %v753 = vsel %vm737, %v703, 0.0
    %v754 = vsel %vm738, %v702, 0.0
    %v755 = vsel %vm739, %v701, 0.0
    %v756 = vsel %vm740, %v700, 0.0
    %v757 = vsel %vm741, %v699, 0.0
    %v758 = vsel %vm742, %v698, 0.0
    %v759 = vsel %vm743, %v697, 0.0
    %v760 = vsel %vm744, %v696, 0.0
    %v761 = vsel %vm745, %v695, 0.0
    %v762 = vsel %vm746, %v694, 0.0
    %v763 = vsel %vm747, %v693, 0.0
    %v764 = vsel %vm748, %v692, 0.0
    %v765 = vsel %vm749, %v691, 0.0
    %v766 = vsel %vm750, %v690, 0.0
    %v767 = vsel %vm751, %v689, 0.0
    %v768 = vsel %vm752, %v704, 0.0
    %v769 = vrot.slane %v365, 2
    %v770 = vrot.slane %v366, 2
    %v771 = vrot.slane %v367, 2
    %v772 = vrot.slane %v368, 2
    %v773 = vrot.slane %v369, 2
    %v774 = vrot.slane %v370, 2
    %v775 = vrot.slane %v371, 2
    %v776 = vrot.slane %v372, 2
    %v777 = vrot.slane %v373, 2
    %v778 = vrot.slane %v374, 2
    %v779 = vrot.slane %v375, 2
    %v780 = vrot.slane %v376, 2
    %v781 = vrot.slane %v377, 2
    %v782 = vrot.slane %v378, 2
    %v783 = vrot.slane %v379, 2
    %v784 = vrot.slane %v380, 2
    %vm785 = vcmp.lt.s32.totalorder %v157, 6
    %v786 = vsel %vm785, %v783, %v784
    %v787 = vsel %vm785, %v782, %v783
    %v788 = vsel %vm785, %v781, %v782
    %v789 = vsel %vm785, %v780, %v781
    %v790 = vsel %vm785, %v779, %v780
    %v791 = vsel %vm785, %v778, %v779
    %v792 = vsel %vm785, %v777, %v778
    %v793 = vsel %vm785, %v776, %v777
    %v794 = vsel %vm785, %v775, %v776
    %v795 = vsel %vm785, %v774, %v775
    %v796 = vsel %vm785, %v773, %v774
    %v797 = vsel %vm785, %v772, %v773
    %v798 = vsel %vm785, %v771, %v772
    %v799 = vsel %vm785, %v770, %v771
    %v800 = vsel %vm785, %v769, %v770
    %v801 = vsel %vm785, %v784, %v769
    %vm802 = vcmp.lt.s32.totalorder %v349, 62
    %vm803 = vcmp.lt.s32.totalorder %v350, 62
    %vm804 = vcmp.lt.s32.totalorder %v351, 62
    %vm805 = vcmp.lt.s32.totalorder %v352, 62
    %vm806 = vcmp.lt.s32.totalorder %v353, 62
    %vm807 = vcmp.lt.s32.totalorder %v354, 62
    %vm808 = vcmp.lt.s32.totalorder %v355, 62
    %vm809 = vcmp.lt.s32.totalorder %v356, 62
    %vm810 = vcmp.lt.s32.totalorder %v357, 62
    %vm811 = vcmp.lt.s32.totalorder %v358, 62
    %vm812 = vcmp.lt.s32.totalorder %v359, 62
    %vm813 = vcmp.lt.s32.totalorder %v360, 62
    %vm814 = vcmp.lt.s32.totalorder %v361, 62
    %vm815 = vcmp.lt.s32.totalorder %v362, 62
    %vm816 = vcmp.lt.s32.totalorder %v363, 62
    %vm817 = vcmp.lt.s32.totalorder %v364, 62
    %v818 = vsel %vm802, 1, 0
    %v819 = vsel %vm803, 1, 0
    %v820 = vsel %vm804, 1, 0
    %v821 = vsel %vm805, 1, 0
    %v822 = vsel %vm806, 1, 0
    %v823 = vsel %vm807, 1, 0
    %v824 = vsel %vm808, 1, 0
    %v825 = vsel %vm809, 1, 0
    %v826 = vsel %vm810, 1, 0
    %v827 = vsel %vm811, 1, 0
    %v828 = vsel %vm812, 1, 0
    %v829 = vsel %vm813, 1, 0
    %v830 = vsel %vm814, 1, 0
    %v831 = vsel %vm815, 1, 0
    %v832 = vsel %vm816, 1, 0
    %v833 = vsel %vm817, 1, 0
    %vm834 = vcmp.eq.s32.totalorder %v818, 1
    %vm835 = vcmp.eq.s32.totalorder %v819, 1
    %vm836 = vcmp.eq.s32.totalorder %v820, 1
    %vm837 = vcmp.eq.s32.totalorder %v821, 1
    %vm838 = vcmp.eq.s32.totalorder %v822, 1
    %vm839 = vcmp.eq.s32.totalorder %v823, 1
    %vm840 = vcmp.eq.s32.totalorder %v824, 1
    %vm841 = vcmp.eq.s32.totalorder %v825, 1
    %vm842 = vcmp.eq.s32.totalorder %v826, 1
    %vm843 = vcmp.eq.s32.totalorder %v827, 1
    %vm844 = vcmp.eq.s32.totalorder %v828, 1
    %vm845 = vcmp.eq.s32.totalorder %v829, 1
    %vm846 = vcmp.eq.s32.totalorder %v830, 1
    %vm847 = vcmp.eq.s32.totalorder %v831, 1
    %vm848 = vcmp.eq.s32.totalorder %v832, 1
    %vm849 = vcmp.eq.s32.totalorder %v833, 1
    %v850 = vsel %vm834, %v800, 0.0
    %v851 = vsel %vm835, %v799, 0.0
    %v852 = vsel %vm836, %v798, 0.0
    %v853 = vsel %vm837, %v797, 0.0
    %v854 = vsel %vm838, %v796, 0.0
    %v855 = vsel %vm839, %v795, 0.0
    %v856 = vsel %vm840, %v794, 0.0
    %v857 = vsel %vm841, %v793, 0.0
    %v858 = vsel %vm842, %v792, 0.0
    %v859 = vsel %vm843, %v791, 0.0
    %v860 = vsel %vm844, %v790, 0.0
    %v861 = vsel %vm845, %v789, 0.0
    %v862 = vsel %vm846, %v788, 0.0
    %v863 = vsel %vm847, %v787, 0.0
    %v864 = vsel %vm848, %v786, 0.0
    %v865 = vsel %vm849, %v801, 0.0
    %v866 = vrot.slane %v365, 3
    %v867 = vrot.slane %v366, 3
    %v868 = vrot.slane %v367, 3
    %v869 = vrot.slane %v368, 3
    %v870 = vrot.slane %v369, 3
    %v871 = vrot.slane %v370, 3
    %v872 = vrot.slane %v371, 3
    %v873 = vrot.slane %v372, 3
    %v874 = vrot.slane %v373, 3
    %v875 = vrot.slane %v374, 3
    %v876 = vrot.slane %v375, 3
    %v877 = vrot.slane %v376, 3
    %v878 = vrot.slane %v377, 3
    %v879 = vrot.slane %v378, 3
    %v880 = vrot.slane %v379, 3
    %v881 = vrot.slane %v380, 3
    %vm882 = vcmp.lt.s32.totalorder %v157, 5
    %v883 = vsel %vm882, %v880, %v881
    %v884 = vsel %vm882, %v879, %v880
    %v885 = vsel %vm882, %v878, %v879
    %v886 = vsel %vm882, %v877, %v878
    %v887 = vsel %vm882, %v876, %v877
    %v888 = vsel %vm882, %v875, %v876
    %v889 = vsel %vm882, %v874, %v875
    %v890 = vsel %vm882, %v873, %v874
    %v891 = vsel %vm882, %v872, %v873
    %v892 = vsel %vm882, %v871, %v872
    %v893 = vsel %vm882, %v870, %v871
    %v894 = vsel %vm882, %v869, %v870
    %v895 = vsel %vm882, %v868, %v869
    %v896 = vsel %vm882, %v867, %v868
    %v897 = vsel %vm882, %v866, %v867
    %v898 = vsel %vm882, %v881, %v866
    %vm899 = vcmp.lt.s32.totalorder %v349, 61
    %vm900 = vcmp.lt.s32.totalorder %v350, 61
    %vm901 = vcmp.lt.s32.totalorder %v351, 61
    %vm902 = vcmp.lt.s32.totalorder %v352, 61
    %vm903 = vcmp.lt.s32.totalorder %v353, 61
    %vm904 = vcmp.lt.s32.totalorder %v354, 61
    %vm905 = vcmp.lt.s32.totalorder %v355, 61
    %vm906 = vcmp.lt.s32.totalorder %v356, 61
    %vm907 = vcmp.lt.s32.totalorder %v357, 61
    %vm908 = vcmp.lt.s32.totalorder %v358, 61
    %vm909 = vcmp.lt.s32.totalorder %v359, 61
    %vm910 = vcmp.lt.s32.totalorder %v360, 61
    %vm911 = vcmp.lt.s32.totalorder %v361, 61
    %vm912 = vcmp.lt.s32.totalorder %v362, 61
    %vm913 = vcmp.lt.s32.totalorder %v363, 61
    %vm914 = vcmp.lt.s32.totalorder %v364, 61
    %v915 = vsel %vm899, 1, 0
    %v916 = vsel %vm900, 1, 0
    %v917 = vsel %vm901, 1, 0
    %v918 = vsel %vm902, 1, 0
    %v919 = vsel %vm903, 1, 0
    %v920 = vsel %vm904, 1, 0
    %v921 = vsel %vm905, 1, 0
    %v922 = vsel %vm906, 1, 0
    %v923 = vsel %vm907, 1, 0
    %v924 = vsel %vm908, 1, 0
    %v925 = vsel %vm909, 1, 0
    %v926 = vsel %vm910, 1, 0
    %v927 = vsel %vm911, 1, 0
    %v928 = vsel %vm912, 1, 0
    %v929 = vsel %vm913, 1, 0
    %v930 = vsel %vm914, 1, 0
    %vm931 = vcmp.eq.s32.totalorder %v915, 1
    %vm932 = vcmp.eq.s32.totalorder %v916, 1
    %vm933 = vcmp.eq.s32.totalorder %v917, 1
    %vm934 = vcmp.eq.s32.totalorder %v918, 1
    %vm935 = vcmp.eq.s32.totalorder %v919, 1
    %vm936 = vcmp.eq.s32.totalorder %v920, 1
    %vm937 = vcmp.eq.s32.totalorder %v921, 1
    %vm938 = vcmp.eq.s32.totalorder %v922, 1
    %vm939 = vcmp.eq.s32.totalorder %v923, 1
    %vm940 = vcmp.eq.s32.totalorder %v924, 1
    %vm941 = vcmp.eq.s32.totalorder %v925, 1
    %vm942 = vcmp.eq.s32.totalorder %v926, 1
    %vm943 = vcmp.eq.s32.totalorder %v927, 1
    %vm944 = vcmp.eq.s32.totalorder %v928, 1
    %vm945 = vcmp.eq.s32.totalorder %v929, 1
    %vm946 = vcmp.eq.s32.totalorder %v930, 1
    %v947 = vsel %vm931, %v897, 0.0
    %v948 = vsel %vm932, %v896, 0.0
    %v949 = vsel %vm933, %v895, 0.0
    %v950 = vsel %vm934, %v894, 0.0
    %v951 = vsel %vm935, %v893, 0.0
    %v952 = vsel %vm936, %v892, 0.0
    %v953 = vsel %vm937, %v891, 0.0
    %v954 = vsel %vm938, %v890, 0.0
    %v955 = vsel %vm939, %v889, 0.0
    %v956 = vsel %vm940, %v888, 0.0
    %v957 = vsel %vm941, %v887, 0.0
    %v958 = vsel %vm942, %v886, 0.0
    %v959 = vsel %vm943, %v885, 0.0
    %v960 = vsel %vm944, %v884, 0.0
    %v961 = vsel %vm945, %v883, 0.0
    %v962 = vsel %vm946, %v898, 0.0
    %979 = vrot.lane.b32.xlu0 %v559, 2
    %v980 = vpop.permute.xlu0 %979
    %981 = vrot.lane.b32.xlu0 %v560, 2
    %v982 = vpop.permute.xlu0 %981
    %983 = vrot.lane.b32.xlu0 %v561, 2
    %v984 = vpop.permute.xlu0 %983
    %985 = vrot.lane.b32.xlu0 %v562, 2
    %v986 = vpop.permute.xlu0 %985
    %987 = vrot.lane.b32.xlu0 %v563, 2
    %v988 = vpop.permute.xlu0 %987
    %989 = vrot.lane.b32.xlu0 %v564, 2
    %v990 = vpop.permute.xlu0 %989
    %991 = vrot.lane.b32.xlu0 %v565, 2
    %v992 = vpop.permute.xlu0 %991
    %993 = vrot.lane.b32.xlu0 %v566, 2
    %v994 = vpop.permute.xlu0 %993
    %995 = vrot.lane.b32.xlu0 %v567, 2
    %v996 = vpop.permute.xlu0 %995
    %997 = vrot.lane.b32.xlu0 %v568, 2
    %v998 = vpop.permute.xlu0 %997
    %999 = vrot.lane.b32.xlu0 %v569, 2
    %v1000 = vpop.permute.xlu0 %999
    %1001 = vrot.lane.b32.xlu0 %v570, 2
    %v1002 = vpop.permute.xlu0 %1001
    %1003 = vrot.lane.b32.xlu0 %v571, 2
    %v1004 = vpop.permute.xlu0 %1003
    %1005 = vrot.lane.b32.xlu0 %v572, 2
    %v1006 = vpop.permute.xlu0 %1005
    %1007 = vrot.lane.b32.xlu0 %v573, 2
    %v1008 = vpop.permute.xlu0 %1007
    %1009 = vrot.lane.b32.xlu0 %v574, 2
    %v1010 = vpop.permute.xlu0 %1009
    %1043 = vrot.lane.b32.xlu0 %v656, 4
    %v1044 = vpop.permute.xlu0 %1043
    %1045 = vrot.lane.b32.xlu0 %v657, 4
    %v1046 = vpop.permute.xlu0 %1045
    %1047 = vrot.lane.b32.xlu0 %v658, 4
    %v1048 = vpop.permute.xlu0 %1047
    %1049 = vrot.lane.b32.xlu0 %v659, 4
    %v1050 = vpop.permute.xlu0 %1049
    %1051 = vrot.lane.b32.xlu0 %v660, 4
    %v1052 = vpop.permute.xlu0 %1051
    %1053 = vrot.lane.b32.xlu0 %v661, 4
    %v1054 = vpop.permute.xlu0 %1053
    %1055 = vrot.lane.b32.xlu0 %v662, 4
    %v1056 = vpop.permute.xlu0 %1055
    %1057 = vrot.lane.b32.xlu0 %v663, 4
    %v1058 = vpop.permute.xlu0 %1057
    %1059 = vrot.lane.b32.xlu0 %v664, 4
    %v1060 = vpop.permute.xlu0 %1059
    %1061 = vrot.lane.b32.xlu0 %v665, 4
    %v1062 = vpop.permute.xlu0 %1061
    %1063 = vrot.lane.b32.xlu0 %v666, 4
    %v1064 = vpop.permute.xlu0 %1063
    %1065 = vrot.lane.b32.xlu0 %v667, 4
    %v1066 = vpop.permute.xlu0 %1065
    %1067 = vrot.lane.b32.xlu0 %v668, 4
    %v1068 = vpop.permute.xlu0 %1067
    %1069 = vrot.lane.b32.xlu0 %v669, 4
    %v1070 = vpop.permute.xlu0 %1069
    %1071 = vrot.lane.b32.xlu0 %v670, 4
    %v1072 = vpop.permute.xlu0 %1071
    %1073 = vrot.lane.b32.xlu0 %v671, 4
    %v1074 = vpop.permute.xlu0 %1073
    %1107 = vrot.lane.b32.xlu0 %v365, 6
    %v1108 = vpop.permute.xlu0 %1107
    %1109 = vrot.lane.b32.xlu0 %v366, 6
    %v1110 = vpop.permute.xlu0 %1109
    %1111 = vrot.lane.b32.xlu0 %v367, 6
    %v1112 = vpop.permute.xlu0 %1111
    %1113 = vrot.lane.b32.xlu0 %v368, 6
    %v1114 = vpop.permute.xlu0 %1113
    %1115 = vrot.lane.b32.xlu0 %v369, 6
    %v1116 = vpop.permute.xlu0 %1115
    %1117 = vrot.lane.b32.xlu0 %v370, 6
    %v1118 = vpop.permute.xlu0 %1117
    %1119 = vrot.lane.b32.xlu0 %v371, 6
    %v1120 = vpop.permute.xlu0 %1119
    %1121 = vrot.lane.b32.xlu0 %v372, 6
    %v1122 = vpop.permute.xlu0 %1121
    %1123 = vrot.lane.b32.xlu0 %v373, 6
    %v1124 = vpop.permute.xlu0 %1123
    %1125 = vrot.lane.b32.xlu0 %v374, 6
    %v1126 = vpop.permute.xlu0 %1125
    %1127 = vrot.lane.b32.xlu0 %v375, 6
    %v1128 = vpop.permute.xlu0 %1127
    %1129 = vrot.lane.b32.xlu0 %v376, 6
    %v1130 = vpop.permute.xlu0 %1129
    %1131 = vrot.lane.b32.xlu0 %v377, 6
    %v1132 = vpop.permute.xlu0 %1131
    %1133 = vrot.lane.b32.xlu0 %v378, 6
    %v1134 = vpop.permute.xlu0 %1133
    %1135 = vrot.lane.b32.xlu0 %v379, 6
    %v1136 = vpop.permute.xlu0 %1135
    %1137 = vrot.lane.b32.xlu0 %v380, 6
    %v1138 = vpop.permute.xlu0 %1137
    %1171 = vrot.lane.b32.xlu0 %v753, 8
    %v1172 = vpop.permute.xlu0 %1171
    %1173 = vrot.lane.b32.xlu0 %v754, 8
    %v1174 = vpop.permute.xlu0 %1173
    %1175 = vrot.lane.b32.xlu0 %v755, 8
    %v1176 = vpop.permute.xlu0 %1175
    %1177 = vrot.lane.b32.xlu0 %v756, 8
    %v1178 = vpop.permute.xlu0 %1177
    %1179 = vrot.lane.b32.xlu0 %v757, 8
    %v1180 = vpop.permute.xlu0 %1179
    %1181 = vrot.lane.b32.xlu0 %v758, 8
    %v1182 = vpop.permute.xlu0 %1181
    %1183 = vrot.lane.b32.xlu0 %v759, 8
    %v1184 = vpop.permute.xlu0 %1183
    %1185 = vrot.lane.b32.xlu0 %v760, 8
    %v1186 = vpop.permute.xlu0 %1185
    %1187 = vrot.lane.b32.xlu0 %v761, 8
    %v1188 = vpop.permute.xlu0 %1187
    %1189 = vrot.lane.b32.xlu0 %v762, 8
    %v1190 = vpop.permute.xlu0 %1189
    %1191 = vrot.lane.b32.xlu0 %v763, 8
    %v1192 = vpop.permute.xlu0 %1191
    %1193 = vrot.lane.b32.xlu0 %v764, 8
    %v1194 = vpop.permute.xlu0 %1193
    %1195 = vrot.lane.b32.xlu0 %v765, 8
    %v1196 = vpop.permute.xlu0 %1195
    %1197 = vrot.lane.b32.xlu0 %v766, 8
    %v1198 = vpop.permute.xlu0 %1197
    %1199 = vrot.lane.b32.xlu0 %v767, 8
    %v1200 = vpop.permute.xlu0 %1199
    %1201 = vrot.lane.b32.xlu0 %v768, 8
    %v1202 = vpop.permute.xlu0 %1201
    %1235 = vrot.lane.b32.xlu0 %v850, 10
    %v1236 = vpop.permute.xlu0 %1235
    %1237 = vrot.lane.b32.xlu0 %v851, 10
    %v1238 = vpop.permute.xlu0 %1237
    %1239 = vrot.lane.b32.xlu0 %v852, 10
    %v1240 = vpop.permute.xlu0 %1239
    %1241 = vrot.lane.b32.xlu0 %v853, 10
    %v1242 = vpop.permute.xlu0 %1241
    %1243 = vrot.lane.b32.xlu0 %v854, 10
    %v1244 = vpop.permute.xlu0 %1243
    %1245 = vrot.lane.b32.xlu0 %v855, 10
    %v1246 = vpop.permute.xlu0 %1245
    %1247 = vrot.lane.b32.xlu0 %v856, 10
    %v1248 = vpop.permute.xlu0 %1247
    %1249 = vrot.lane.b32.xlu0 %v857, 10
    %v1250 = vpop.permute.xlu0 %1249
    %1251 = vrot.lane.b32.xlu0 %v858, 10
    %v1252 = vpop.permute.xlu0 %1251
    %1253 = vrot.lane.b32.xlu0 %v859, 10
    %v1254 = vpop.permute.xlu0 %1253
    %1255 = vrot.lane.b32.xlu0 %v860, 10
    %v1256 = vpop.permute.xlu0 %1255
    %1257 = vrot.lane.b32.xlu0 %v861, 10
    %v1258 = vpop.permute.xlu0 %1257
    %1259 = vrot.lane.b32.xlu0 %v862, 10
    %v1260 = vpop.permute.xlu0 %1259
    %1261 = vrot.lane.b32.xlu0 %v863, 10
    %v1262 = vpop.permute.xlu0 %1261
    %1263 = vrot.lane.b32.xlu0 %v864, 10
    %v1264 = vpop.permute.xlu0 %1263
    %1265 = vrot.lane.b32.xlu0 %v865, 10
    %v1266 = vpop.permute.xlu0 %1265
    %1299 = vrot.lane.b32.xlu0 %v947, 12
    %v1300 = vpop.permute.xlu0 %1299
    %1301 = vrot.lane.b32.xlu0 %v948, 12
    %v1302 = vpop.permute.xlu0 %1301
    %1303 = vrot.lane.b32.xlu0 %v949, 12
    %v1304 = vpop.permute.xlu0 %1303
    %1305 = vrot.lane.b32.xlu0 %v950, 12
    %v1306 = vpop.permute.xlu0 %1305
    %1307 = vrot.lane.b32.xlu0 %v951, 12
    %v1308 = vpop.permute.xlu0 %1307
    %1309 = vrot.lane.b32.xlu0 %v952, 12
    %v1310 = vpop.permute.xlu0 %1309
    %1311 = vrot.lane.b32.xlu0 %v953, 12
    %v1312 = vpop.permute.xlu0 %1311
    %1313 = vrot.lane.b32.xlu0 %v954, 12
    %v1314 = vpop.permute.xlu0 %1313
    %1315 = vrot.lane.b32.xlu0 %v955, 12
    %v1316 = vpop.permute.xlu0 %1315
    %1317 = vrot.lane.b32.xlu0 %v956, 12
    %v1318 = vpop.permute.xlu0 %1317
    %1319 = vrot.lane.b32.xlu0 %v957, 12
    %v1320 = vpop.permute.xlu0 %1319
    %1321 = vrot.lane.b32.xlu0 %v958, 12
    %v1322 = vpop.permute.xlu0 %1321
    %1323 = vrot.lane.b32.xlu0 %v959, 12
    %v1324 = vpop.permute.xlu0 %1323
    %1325 = vrot.lane.b32.xlu0 %v960, 12
    %v1326 = vpop.permute.xlu0 %1325
    %1327 = vrot.lane.b32.xlu0 %v961, 12
    %v1328 = vpop.permute.xlu0 %1327
    %1329 = vrot.lane.b32.xlu0 %v962, 12
    %v1330 = vpop.permute.xlu0 %1329
    %vm1347 = vcmask 15360
    %v1348 = vsel %vm1347, %v462, %v980
    %v1349 = vsel %vm1347, %v463, %v982
    %v1350 = vsel %vm1347, %v464, %v984
    %v1351 = vsel %vm1347, %v465, %v986
    %v1352 = vsel %vm1347, %v466, %v988
    %v1353 = vsel %vm1347, %v467, %v990
    %v1354 = vsel %vm1347, %v468, %v992
    %v1355 = vsel %vm1347, %v469, %v994
    %v1356 = vsel %vm1347, %v470, %v996
    %v1357 = vsel %vm1347, %v471, %v998
    %v1358 = vsel %vm1347, %v472, %v1000
    %v1359 = vsel %vm1347, %v473, %v1002
    %v1360 = vsel %vm1347, %v474, %v1004
    %v1361 = vsel %vm1347, %v475, %v1006
    %v1362 = vsel %vm1347, %v476, %v1008
    %v1363 = vsel %vm1347, %v477, %v1010
    %vm1364 = vcmask 31744
    %v1365 = vsel %vm1364, %v1348, %v1044
    %v1366 = vsel %vm1364, %v1349, %v1046
    %v1367 = vsel %vm1364, %v1350, %v1048
    %v1368 = vsel %vm1364, %v1351, %v1050
    %v1369 = vsel %vm1364, %v1352, %v1052
    %v1370 = vsel %vm1364, %v1353, %v1054
    %v1371 = vsel %vm1364, %v1354, %v1056
    %v1372 = vsel %vm1364, %v1355, %v1058
    %v1373 = vsel %vm1364, %v1356, %v1060
    %v1374 = vsel %vm1364, %v1357, %v1062
    %v1375 = vsel %vm1364, %v1358, %v1064
    %v1376 = vsel %vm1364, %v1359, %v1066
    %v1377 = vsel %vm1364, %v1360, %v1068
    %v1378 = vsel %vm1364, %v1361, %v1070
    %v1379 = vsel %vm1364, %v1362, %v1072
    %v1380 = vsel %vm1364, %v1363, %v1074
    %vm1381 = vcmask 48128
    %v1382 = vsel %vm1381, %v1365, %v1108
    %v1383 = vsel %vm1381, %v1366, %v1110
    %v1384 = vsel %vm1381, %v1367, %v1112
    %v1385 = vsel %vm1381, %v1368, %v1114
    %v1386 = vsel %vm1381, %v1369, %v1116
    %v1387 = vsel %vm1381, %v1370, %v1118
    %v1388 = vsel %vm1381, %v1371, %v1120
    %v1389 = vsel %vm1381, %v1372, %v1122
    %v1390 = vsel %vm1381, %v1373, %v1124
    %v1391 = vsel %vm1381, %v1374, %v1126
    %v1392 = vsel %vm1381, %v1375, %v1128
    %v1393 = vsel %vm1381, %v1376, %v1130
    %v1394 = vsel %vm1381, %v1377, %v1132
    %v1395 = vsel %vm1381, %v1378, %v1134
    %v1396 = vsel %vm1381, %v1379, %v1136
    %v1397 = vsel %vm1381, %v1380, %v1138
    %vm1398 = vcmask 64512
    %v1399 = vsel %vm1398, %v1382, %v1172
    %v1400 = vsel %vm1398, %v1383, %v1174
    %v1401 = vsel %vm1398, %v1384, %v1176
    %v1402 = vsel %vm1398, %v1385, %v1178
    %v1403 = vsel %vm1398, %v1386, %v1180
    %v1404 = vsel %vm1398, %v1387, %v1182
    %v1405 = vsel %vm1398, %v1388, %v1184
    %v1406 = vsel %vm1398, %v1389, %v1186
    %v1407 = vsel %vm1398, %v1390, %v1188
    %v1408 = vsel %vm1398, %v1391, %v1190
    %v1409 = vsel %vm1398, %v1392, %v1192
    %v1410 = vsel %vm1398, %v1393, %v1194
    %v1411 = vsel %vm1398, %v1394, %v1196
    %v1412 = vsel %vm1398, %v1395, %v1198
    %v1413 = vsel %vm1398, %v1396, %v1200
    %v1414 = vsel %vm1398, %v1397, %v1202
    %vm1415 = vcmask 80896
    %v1416 = vsel %vm1415, %v1399, %v1236
    %v1417 = vsel %vm1415, %v1400, %v1238
    %v1418 = vsel %vm1415, %v1401, %v1240
    %v1419 = vsel %vm1415, %v1402, %v1242
    %v1420 = vsel %vm1415, %v1403, %v1244
    %v1421 = vsel %vm1415, %v1404, %v1246
    %v1422 = vsel %vm1415, %v1405, %v1248
    %v1423 = vsel %vm1415, %v1406, %v1250
    %v1424 = vsel %vm1415, %v1407, %v1252
    %v1425 = vsel %vm1415, %v1408, %v1254
    %v1426 = vsel %vm1415, %v1409, %v1256
    %v1427 = vsel %vm1415, %v1410, %v1258
    %v1428 = vsel %vm1415, %v1411, %v1260
    %v1429 = vsel %vm1415, %v1412, %v1262
    %v1430 = vsel %vm1415, %v1413, %v1264
    %v1431 = vsel %vm1415, %v1414, %v1266
    %vm1432 = vcmask 97280
    %v1433 = vsel %vm1432, %v1416, %v1300
    %v1434 = vsel %vm1432, %v1417, %v1302
    %v1435 = vsel %vm1432, %v1418, %v1304
    %v1436 = vsel %vm1432, %v1419, %v1306
    %v1437 = vsel %vm1432, %v1420, %v1308
    %v1438 = vsel %vm1432, %v1421, %v1310
    %v1439 = vsel %vm1432, %v1422, %v1312
    %v1440 = vsel %vm1432, %v1423, %v1314
    %v1441 = vsel %vm1432, %v1424, %v1316
    %v1442 = vsel %vm1432, %v1425, %v1318
    %v1443 = vsel %vm1432, %v1426, %v1320
    %v1444 = vsel %vm1432, %v1427, %v1322
    %v1445 = vsel %vm1432, %v1428, %v1324
    %v1446 = vsel %vm1432, %v1429, %v1326
    %v1447 = vsel %vm1432, %v1430, %v1328
    %v1448 = vsel %vm1432, %v1431, %v1330
    %v1449 = vpack.c.bf16 %v1434, %v1433
    %v1450 = vpack.c.bf16 %v1436, %v1435
    %v1451 = vpack.c.bf16 %v1438, %v1437
    %v1452 = vpack.c.bf16 %v1440, %v1439
    %v1453 = vpack.c.bf16 %v1442, %v1441
    %v1454 = vpack.c.bf16 %v1444, %v1443
    %v1455 = vpack.c.bf16 %v1446, %v1445
    %v1456 = vpack.c.bf16 %v1448, %v1447
    %v1457 = vld [vmem:[%s1] sm:$0xf]
    %v1458 = vld [vmem:[%s1 + $0x4] sm:$0x7]
    %v1459 = vld [vmem:[#allocation2] sm:$0x1]
    %v1461 = vperm.slane %v1459, 0
    %v1465 = vunpack.c.l.b16 %v1457
    %v1466 = vunpack.c.l.b16 %v1458
    %v1467 = vpack.c.b16 %v1466, %v1465
    %vm1468 = vcmask 113664
    %v1470 = vsel %vm1468, %v1449, 0
    %v1473 = vsel %vm1468, %v1450, 0
    %v1476 = vsel %vm1468, %v1451, 0
    %v1479 = vsel %vm1468, %v1452, 0
    %v1482 = vsel %vm1468, %v1453, 0
    %v1485 = vsel %vm1468, %v1454, 0
    %v1488 = vsel %vm1468, %v1455, 0
    %v1491 = vsel %vm1468, %v1456, 0
    %vm1493 = vcmask 1046528
    %v1495 = vsel %vm1493, %v1467, 0
    %1497 = vmatpush.bf16.msra.mxu0 0
    %1498 = vmatpush.bf16.msra.mxu0 0
    %1499 = vmatpush.bf16.msra.mxu0 0
    %1500 = vmatpush.bf16.msra.mxu0 0
    %1501 = vmatpush.bf16.msra.mxu0 0
    %1502 = vmatpush.bf16.msra.mxu0 0
    %1503 = vmatpush.bf16.msra.mxu0 0
    %1504 = vmatpush.bf16.msra.mxu0 %v1495
    %1505 = vmatmul.bf16.gmra.mxu0 %v1470
    %v1506 = vpop.f32.mrf.mxu0
    %v1507 = vadd.f32 %v1461, %v1506
    %v1508 = vpop.f32.mrf.mxu0
    %v1509 = vadd.f32 %v1461, %v1508
    %1510 = vmatmul.bf16.gmra.mxu0 %v1473
    %v1511 = vpop.f32.mrf.mxu0
    %v1512 = vadd.f32 %v1461, %v1511
    %v1513 = vpop.f32.mrf.mxu0
    %v1514 = vadd.f32 %v1461, %v1513
    %1515 = vmatmul.bf16.gmra.mxu0 %v1476
    %v1516 = vpop.f32.mrf.mxu0
    %v1517 = vadd.f32 %v1461, %v1516
    %v1518 = vpop.f32.mrf.mxu0
    %v1519 = vadd.f32 %v1461, %v1518
    %1520 = vmatmul.bf16.gmra.mxu0 %v1479
    %v1521 = vpop.f32.mrf.mxu0
    %v1522 = vadd.f32 %v1461, %v1521
    %v1523 = vpop.f32.mrf.mxu0
    %v1524 = vadd.f32 %v1461, %v1523
    %1525 = vmatmul.bf16.gmra.mxu0 %v1482
    %v1526 = vpop.f32.mrf.mxu0
    %v1527 = vadd.f32 %v1461, %v1526
    %v1528 = vpop.f32.mrf.mxu0
    %v1529 = vadd.f32 %v1461, %v1528
    %1530 = vmatmul.bf16.gmra.mxu0 %v1485
    %v1531 = vpop.f32.mrf.mxu0
    %v1532 = vadd.f32 %v1461, %v1531
    %v1533 = vpop.f32.mrf.mxu0
    %v1534 = vadd.f32 %v1461, %v1533
    %1535 = vmatmul.bf16.gmra.mxu0 %v1488
    %v1536 = vpop.f32.mrf.mxu0
    %v1537 = vadd.f32 %v1461, %v1536
    %v1538 = vpop.f32.mrf.mxu0
    %v1539 = vadd.f32 %v1461, %v1538
    %1540 = vmatmul.bf16.gmra.mxu0 %v1491
    %v1541 = vpop.f32.mrf.mxu0
    %v1542 = vadd.f32 %v1461, %v1541
    %v1543 = vpop.f32.mrf.mxu0
    %v1544 = vadd.f32 %v1461, %v1543
    %1545 = vdwg.mxu0
    %v1546 = vmax.f32 %v1507, 0.0
    %v1547 = vmax.f32 %v1509, 0.0
    %v1548 = vmax.f32 %v1512, 0.0
    %v1549 = vmax.f32 %v1514, 0.0
    %v1550 = vmax.f32 %v1517, 0.0
    %v1551 = vmax.f32 %v1519, 0.0
    %v1552 = vmax.f32 %v1522, 0.0
    %v1553 = vmax.f32 %v1524, 0.0
    %v1554 = vmax.f32 %v1527, 0.0
    %v1555 = vmax.f32 %v1529, 0.0
    %v1556 = vmax.f32 %v1532, 0.0
    %v1557 = vmax.f32 %v1534, 0.0
    %v1558 = vmax.f32 %v1537, 0.0
    %v1559 = vmax.f32 %v1539, 0.0
    %v1560 = vmax.f32 %v1542, 0.0
    %v1561 = vmax.f32 %v1544, 0.0
    %v1562 = vpack.c.bf16 %v1547, %v1546
    %v1563 = vpack.c.bf16 %v1549, %v1548
    %v1564 = vpack.c.bf16 %v1551, %v1550
    %v1565 = vpack.c.bf16 %v1553, %v1552
    %v1566 = vpack.c.bf16 %v1555, %v1554
    %v1567 = vpack.c.bf16 %v1557, %v1556
    %v1568 = vpack.c.bf16 %v1559, %v1558
    %v1569 = vpack.c.bf16 %v1561, %v1560
    %v1570 = vld [vmem:[#allocation5] sm:$0xff]
    %v1571 = vld [vmem:[#allocation5 + $0x8] sm:$0xff]
    %v1572 = vld [vmem:[#allocation5 + $0x10] sm:$0xff]
    %v1573 = vld [vmem:[#allocation5 + $0x18] sm:$0xff]
    %v1574 = vld [vmem:[#allocation5 + $0x20] sm:$0xff]
    %v1575 = vld [vmem:[#allocation5 + $0x28] sm:$0xff]
    %v1576 = vld [vmem:[#allocation5 + $0x30] sm:$0xff]
    %v1577 = vld [vmem:[#allocation5 + $0x38] sm:$0xff]
    %v1578 = vld [vmem:[#allocation7] sm:$0x3]
    %v1580 = vperm.slane %v1578, 0
    %v1581 = vperm.slane %v1578, 1
    %v1592 = vunpack.c.l.b16 %v1570
    %v1593 = vunpack.c.h.b16 %v1570
    %v1594 = vunpack.c.l.b16 %v1571
    %v1595 = vunpack.c.h.b16 %v1571
    %v1596 = vunpack.c.l.b16 %v1572
    %v1597 = vunpack.c.h.b16 %v1572
    %v1598 = vunpack.c.l.b16 %v1573
    %v1599 = vunpack.c.h.b16 %v1573
    %v1600 = vunpack.c.l.b16 %v1574
    %v1601 = vunpack.c.h.b16 %v1574
    %v1602 = vunpack.c.l.b16 %v1575
    %v1603 = vunpack.c.h.b16 %v1575
    %v1604 = vunpack.c.l.b16 %v1576
    %v1605 = vunpack.c.h.b16 %v1576
    %v1606 = vunpack.c.l.b16 %v1577
    %v1607 = vunpack.c.h.b16 %v1577
    %v1608 = vpack.c.b16 %v1594, %v1592
    %v1609 = vpack.c.b16 %v1595, %v1593
    %v1610 = vpack.c.b16 %v1598, %v1596
    %v1611 = vpack.c.b16 %v1599, %v1597
    %v1612 = vpack.c.b16 %v1602, %v1600
    %v1613 = vpack.c.b16 %v1603, %v1601
    %v1614 = vpack.c.b16 %v1606, %v1604
    %v1615 = vpack.c.b16 %v1607, %v1605
    %vm1624 = vcmask 523264
    %v1626 = vsel %vm1624, %v1562, 0
    %v1629 = vsel %vm1624, %v1563, 0
    %v1632 = vsel %vm1624, %v1564, 0
    %v1635 = vsel %vm1624, %v1565, 0
    %v1638 = vsel %vm1624, %v1566, 0
    %v1641 = vsel %vm1624, %v1567, 0
    %v1644 = vsel %vm1624, %v1568, 0
    %v1647 = vsel %vm1624, %v1569, 0
    %1649 = vmatpush.bf16.msra.mxu0 0
    %1650 = vmatpush.bf16.msra.mxu0 0
    %1651 = vmatpush.bf16.msra.mxu0 0
    %1652 = vmatpush.bf16.msra.mxu0 0
    %1653 = vmatpush.bf16.msra.mxu0 %v1614
    %1654 = vmatpush.bf16.msra.mxu0 %v1612
    %1655 = vmatpush.bf16.msra.mxu0 %v1610
    %1656 = vmatpush.bf16.msra.mxu0 %v1608
    %1657 = vmatmul.bf16.gmra.mxu0 %v1626
    %v1658 = vpop.f32.mrf.mxu0
    %v1659 = vadd.f32 %v1580, %v1658
    %v1660 = vpop.f32.mrf.mxu0
    %v1661 = vadd.f32 %v1580, %v1660
    %1662 = vmatmul.bf16.gmra.mxu0 %v1629
    %v1663 = vpop.f32.mrf.mxu0
    %v1664 = vadd.f32 %v1580, %v1663
    %v1665 = vpop.f32.mrf.mxu0
    %v1666 = vadd.f32 %v1580, %v1665
    %1667 = vmatmul.bf16.gmra.mxu0 %v1632
    %v1668 = vpop.f32.mrf.mxu0
    %v1669 = vadd.f32 %v1580, %v1668
    %v1670 = vpop.f32.mrf.mxu0
    %v1671 = vadd.f32 %v1580, %v1670
    %1672 = vmatmul.bf16.gmra.mxu0 %v1635
    %v1673 = vpop.f32.mrf.mxu0
    %v1674 = vadd.f32 %v1580, %v1673
    %v1675 = vpop.f32.mrf.mxu0
    %v1676 = vadd.f32 %v1580, %v1675
    %1677 = vmatmul.bf16.gmra.mxu0 %v1638
    %v1678 = vpop.f32.mrf.mxu0
    %v1679 = vadd.f32 %v1580, %v1678
    %v1680 = vpop.f32.mrf.mxu0
    %v1681 = vadd.f32 %v1580, %v1680
    %1682 = vmatmul.bf16.gmra.mxu0 %v1641
    %v1683 = vpop.f32.mrf.mxu0
    %v1684 = vadd.f32 %v1580, %v1683
    %v1685 = vpop.f32.mrf.mxu0
    %v1686 = vadd.f32 %v1580, %v1685
    %1687 = vmatmul.bf16.gmra.mxu0 %v1644
    %v1688 = vpop.f32.mrf.mxu0
    %v1689 = vadd.f32 %v1580, %v1688
    %v1690 = vpop.f32.mrf.mxu0
    %v1691 = vadd.f32 %v1580, %v1690
    %1692 = vmatmul.bf16.gmra.mxu0 %v1647
    %v1693 = vpop.f32.mrf.mxu0
    %v1694 = vadd.f32 %v1580, %v1693
    %v1695 = vpop.f32.mrf.mxu0
    %v1696 = vadd.f32 %v1580, %v1695
    %1697 = vdwg.mxu0
    %1698 = vmatpush.bf16.msra.mxu0 0
    %1699 = vmatpush.bf16.msra.mxu0 0
    %1700 = vmatpush.bf16.msra.mxu0 0
    %1701 = vmatpush.bf16.msra.mxu0 0
    %1702 = vmatpush.bf16.msra.mxu0 %v1615
    %1703 = vmatpush.bf16.msra.mxu0 %v1613
    %1704 = vmatpush.bf16.msra.mxu0 %v1611
    %1705 = vmatpush.bf16.msra.mxu0 %v1609
    %1706 = vmatmul.bf16.gmra.mxu0 %v1626
    %v1707 = vpop.f32.mrf.mxu0
    %v1708 = vadd.f32 %v1581, %v1707
    %v1709 = vpop.f32.mrf.mxu0
    %v1710 = vadd.f32 %v1581, %v1709
    %1711 = vmatmul.bf16.gmra.mxu0 %v1629
    %v1712 = vpop.f32.mrf.mxu0
    %v1713 = vadd.f32 %v1581, %v1712
    %v1714 = vpop.f32.mrf.mxu0
    %v1715 = vadd.f32 %v1581, %v1714
    %1716 = vmatmul.bf16.gmra.mxu0 %v1632
    %v1717 = vpop.f32.mrf.mxu0
    %v1718 = vadd.f32 %v1581, %v1717
    %v1719 = vpop.f32.mrf.mxu0
    %v1720 = vadd.f32 %v1581, %v1719
    %1721 = vmatmul.bf16.gmra.mxu0 %v1635
    %v1722 = vpop.f32.mrf.mxu0
    %v1723 = vadd.f32 %v1581, %v1722
    %v1724 = vpop.f32.mrf.mxu0
    %v1725 = vadd.f32 %v1581, %v1724
    %1726 = vmatmul.bf16.gmra.mxu0 %v1638
    %v1727 = vpop.f32.mrf.mxu0
    %v1728 = vadd.f32 %v1581, %v1727
    %v1729 = vpop.f32.mrf.mxu0
    %v1730 = vadd.f32 %v1581, %v1729
    %1731 = vmatmul.bf16.gmra.mxu0 %v1641
    %v1732 = vpop.f32.mrf.mxu0
    %v1733 = vadd.f32 %v1581, %v1732
    %v1734 = vpop.f32.mrf.mxu0
    %v1735 = vadd.f32 %v1581, %v1734
    %1736 = vmatmul.bf16.gmra.mxu0 %v1644
    %v1737 = vpop.f32.mrf.mxu0
    %v1738 = vadd.f32 %v1581, %v1737
    %v1739 = vpop.f32.mrf.mxu0
    %v1740 = vadd.f32 %v1581, %v1739
    %1741 = vmatmul.bf16.gmra.mxu0 %v1647
    %v1742 = vpop.f32.mrf.mxu0
    %v1743 = vadd.f32 %v1581, %v1742
    %v1744 = vpop.f32.mrf.mxu0
    %v1745 = vadd.f32 %v1581, %v1744
    %1746 = vdwg.mxu0
    %1763 = vrot.lane.b32.xlu0 %v1659, 64
    %v1764 = vpop.permute.xlu0 %1763
    %1765 = vrot.lane.b32.xlu0 %v1661, 64
    %v1766 = vpop.permute.xlu0 %1765
    %1767 = vrot.lane.b32.xlu0 %v1664, 64
    %v1768 = vpop.permute.xlu0 %1767
    %1769 = vrot.lane.b32.xlu0 %v1666, 64
    %v1770 = vpop.permute.xlu0 %1769
    %1771 = vrot.lane.b32.xlu0 %v1669, 64
    %v1772 = vpop.permute.xlu0 %1771
    %1773 = vrot.lane.b32.xlu0 %v1671, 64
    %v1774 = vpop.permute.xlu0 %1773
    %1775 = vrot.lane.b32.xlu0 %v1674, 64
    %v1776 = vpop.permute.xlu0 %1775
    %1777 = vrot.lane.b32.xlu0 %v1676, 64
    %v1778 = vpop.permute.xlu0 %1777
    %1779 = vrot.lane.b32.xlu0 %v1679, 64
    %v1780 = vpop.permute.xlu0 %1779
    %1781 = vrot.lane.b32.xlu0 %v1681, 64
    %v1782 = vpop.permute.xlu0 %1781
    %1783 = vrot.lane.b32.xlu0 %v1684, 64
    %v1784 = vpop.permute.xlu0 %1783
    %1785 = vrot.lane.b32.xlu0 %v1686, 64
    %v1786 = vpop.permute.xlu0 %1785
    %1787 = vrot.lane.b32.xlu0 %v1689, 64
    %v1788 = vpop.permute.xlu0 %1787
    %1789 = vrot.lane.b32.xlu0 %v1691, 64
    %v1790 = vpop.permute.xlu0 %1789
    %1791 = vrot.lane.b32.xlu0 %v1694, 64
    %v1792 = vpop.permute.xlu0 %1791
    %1793 = vrot.lane.b32.xlu0 %v1696, 64
    %v1794 = vpop.permute.xlu0 %1793
    %v1811 = vrot.slane %v1764, 7
    %v1812 = vrot.slane %v1766, 7
    %v1813 = vrot.slane %v1768, 7
    %v1814 = vrot.slane %v1770, 7
    %v1815 = vrot.slane %v1772, 7
    %v1816 = vrot.slane %v1774, 7
    %v1817 = vrot.slane %v1776, 7
    %v1818 = vrot.slane %v1778, 7
    %v1819 = vrot.slane %v1780, 7
    %v1820 = vrot.slane %v1782, 7
    %v1821 = vrot.slane %v1784, 7
    %v1822 = vrot.slane %v1786, 7
    %v1823 = vrot.slane %v1788, 7
    %v1824 = vrot.slane %v1790, 7
    %v1825 = vrot.slane %v1792, 7
    %v1826 = vrot.slane %v1794, 7
    %v1827 = vsel %vm591, %v1825, %v1826
    %v1828 = vsel %vm591, %v1824, %v1825
    %v1829 = vsel %vm591, %v1823, %v1824
    %v1830 = vsel %vm591, %v1822, %v1823
    %v1831 = vsel %vm591, %v1821, %v1822
    %v1832 = vsel %vm591, %v1820, %v1821
    %v1833 = vsel %vm591, %v1819, %v1820
    %v1834 = vsel %vm591, %v1818, %v1819
    %v1835 = vsel %vm591, %v1817, %v1818
    %v1836 = vsel %vm591, %v1816, %v1817
    %v1837 = vsel %vm591, %v1815, %v1816
    %v1838 = vsel %vm591, %v1814, %v1815
    %v1839 = vsel %vm591, %v1813, %v1814
    %v1840 = vsel %vm591, %v1812, %v1813
    %v1841 = vsel %vm591, %v1811, %v1812
    %v1842 = vsel %vm591, %v1826, %v1811
    %v1843 = vsel %vm640, %v1842, 0.0
    %v1844 = vsel %vm641, %v1841, 0.0
    %v1845 = vsel %vm642, %v1840, 0.0
    %v1846 = vsel %vm643, %v1839, 0.0
    %v1847 = vsel %vm644, %v1838, 0.0
    %v1848 = vsel %vm645, %v1837, 0.0
    %v1849 = vsel %vm646, %v1836, 0.0
    %v1850 = vsel %vm647, %v1835, 0.0
    %v1851 = vsel %vm648, %v1834, 0.0
    %v1852 = vsel %vm649, %v1833, 0.0
    %v1853 = vsel %vm650, %v1832, 0.0
    %v1854 = vsel %vm651, %v1831, 0.0
    %v1855 = vsel %vm652, %v1830, 0.0
    %v1856 = vsel %vm653, %v1829, 0.0
    %v1857 = vsel %vm654, %v1828, 0.0
    %v1858 = vsel %vm655, %v1827, 0.0
    %v1859 = vpack.c.bf16 %v1844, %v1843
    %v1860 = vpack.c.bf16 %v1846, %v1845
    %v1861 = vpack.c.bf16 %v1848, %v1847
    %v1862 = vpack.c.bf16 %v1850, %v1849
    %v1863 = vpack.c.bf16 %v1852, %v1851
    %v1864 = vpack.c.bf16 %v1854, %v1853
    %v1865 = vpack.c.bf16 %v1856, %v1855
    %v1866 = vpack.c.bf16 %v1858, %v1857
    %v1867 = vld [vmem:[%s5] sm:$0xf]
    %v1868 = vld [vmem:[%s5 + $0x4] sm:$0xf]
    %v1869 = vld [vmem:[%s5 + $0x8] sm:$0xf]
    %v1870 = vld [vmem:[%s5 + $0xc] sm:$0xf]
    %v1871 = vld [vmem:[%s5 + $0x10] sm:$0xf]
    %v1872 = vld [vmem:[%s5 + $0x14] sm:$0xf]
    %v1873 = vld [vmem:[%s5 + $0x18] sm:$0xf]
    %v1874 = vld [vmem:[%s5 + $0x1c] sm:$0xf]
    %v1875 = vpack.c.bf16 %v1661, %v1659
    %v1876 = vpack.c.bf16 %v1666, %v1664
    %v1877 = vpack.c.bf16 %v1671, %v1669
    %v1878 = vpack.c.bf16 %v1676, %v1674
    %v1879 = vpack.c.bf16 %v1681, %v1679
    %v1880 = vpack.c.bf16 %v1686, %v1684
    %v1881 = vpack.c.bf16 %v1691, %v1689
    %v1882 = vpack.c.bf16 %v1696, %v1694
    %v1883 = vld [vmem:[%s5 + $0x20] sm:$0xf]
    %v1884 = vld [vmem:[%s5 + $0x24] sm:$0xf]
    %v1885 = vld [vmem:[%s5 + $0x28] sm:$0xf]
    %v1886 = vld [vmem:[%s5 + $0x2c] sm:$0xf]
    %v1887 = vld [vmem:[%s5 + $0x30] sm:$0xf]
    %v1888 = vld [vmem:[%s5 + $0x34] sm:$0xf]
    %v1889 = vld [vmem:[%s5 + $0x38] sm:$0xf]
    %v1890 = vld [vmem:[%s5 + $0x3c] sm:$0xf]
    %1899 = vrot.lane.b32.xlu0 %v1875, 64
    %v1900 = vpop.permute.xlu0 %1899
    %1901 = vrot.lane.b32.xlu0 %v1876, 64
    %v1902 = vpop.permute.xlu0 %1901
    %1903 = vrot.lane.b32.xlu0 %v1877, 64
    %v1904 = vpop.permute.xlu0 %1903
    %1905 = vrot.lane.b32.xlu0 %v1878, 64
    %v1906 = vpop.permute.xlu0 %1905
    %1907 = vrot.lane.b32.xlu0 %v1879, 64
    %v1908 = vpop.permute.xlu0 %1907
    %1909 = vrot.lane.b32.xlu0 %v1880, 64
    %v1910 = vpop.permute.xlu0 %1909
    %1911 = vrot.lane.b32.xlu0 %v1881, 64
    %v1912 = vpop.permute.xlu0 %1911
    %1913 = vrot.lane.b32.xlu0 %v1882, 64
    %v1914 = vpop.permute.xlu0 %1913
    %v1923 = vunpack.c.l.b16 %v1883
    %v1924 = vunpack.c.l.b16 %v1884
    %v1925 = vunpack.c.l.b16 %v1885
    %v1926 = vunpack.c.l.b16 %v1886
    %v1927 = vunpack.c.l.b16 %v1887
    %v1928 = vunpack.c.l.b16 %v1888
    %v1929 = vunpack.c.l.b16 %v1889
    %v1930 = vunpack.c.l.b16 %v1890
    %v1931 = vpack.c.b16 %v1924, %v1923
    %v1932 = vpack.c.b16 %v1926, %v1925
    %v1933 = vpack.c.b16 %v1928, %v1927
    %v1934 = vpack.c.b16 %v1930, %v1929
    %v1940 = vsel %vm1624, %v1900, 0
    %v1943 = vsel %vm1624, %v1902, 0
    %v1946 = vsel %vm1624, %v1904, 0
    %v1949 = vsel %vm1624, %v1906, 0
    %v1952 = vsel %vm1624, %v1908, 0
    %v1955 = vsel %vm1624, %v1910, 0
    %v1958 = vsel %vm1624, %v1912, 0
    %v1961 = vsel %vm1624, %v1914, 0
    %1963 = vmatpush.bf16.msra.mxu0 0
    %1964 = vmatpush.bf16.msra.mxu0 0
    %1965 = vmatpush.bf16.msra.mxu0 0
    %1966 = vmatpush.bf16.msra.mxu0 0
    %1967 = vmatpush.bf16.msra.mxu0 %v1934
    %1968 = vmatpush.bf16.msra.mxu0 %v1933
    %1969 = vmatpush.bf16.msra.mxu0 %v1932
    %1970 = vmatpush.bf16.msra.mxu0 %v1931
    %1971 = vmatmul.bf16.gmra.mxu0 %v1940
    %v1972 = vpop.f32.mrf.mxu0
    %v1973 = vadd.f32 0.0, %v1972
    %v1974 = vpop.f32.mrf.mxu0
    %v1975 = vadd.f32 0.0, %v1974
    %1976 = vmatmul.bf16.gmra.mxu0 %v1943
    %v1977 = vpop.f32.mrf.mxu0
    %v1978 = vadd.f32 0.0, %v1977
    %v1979 = vpop.f32.mrf.mxu0
    %v1980 = vadd.f32 0.0, %v1979
    %1981 = vmatmul.bf16.gmra.mxu0 %v1946
    %v1982 = vpop.f32.mrf.mxu0
    %v1983 = vadd.f32 0.0, %v1982
    %v1984 = vpop.f32.mrf.mxu0
    %v1985 = vadd.f32 0.0, %v1984
    %1986 = vmatmul.bf16.gmra.mxu0 %v1949
    %v1987 = vpop.f32.mrf.mxu0
    %v1988 = vadd.f32 0.0, %v1987
    %v1989 = vpop.f32.mrf.mxu0
    %v1990 = vadd.f32 0.0, %v1989
    %1991 = vmatmul.bf16.gmra.mxu0 %v1952
    %v1992 = vpop.f32.mrf.mxu0
    %v1993 = vadd.f32 0.0, %v1992
    %v1994 = vpop.f32.mrf.mxu0
    %v1995 = vadd.f32 0.0, %v1994
    %1996 = vmatmul.bf16.gmra.mxu0 %v1955
    %v1997 = vpop.f32.mrf.mxu0
    %v1998 = vadd.f32 0.0, %v1997
    %v1999 = vpop.f32.mrf.mxu0
    %v2000 = vadd.f32 0.0, %v1999
    %2001 = vmatmul.bf16.gmra.mxu0 %v1958
    %v2002 = vpop.f32.mrf.mxu0
    %v2003 = vadd.f32 0.0, %v2002
    %v2004 = vpop.f32.mrf.mxu0
    %v2005 = vadd.f32 0.0, %v2004
    %2006 = vmatmul.bf16.gmra.mxu0 %v1961
    %v2007 = vpop.f32.mrf.mxu0
    %v2008 = vadd.f32 0.0, %v2007
    %v2009 = vpop.f32.mrf.mxu0
    %v2010 = vadd.f32 0.0, %v2009
    %2011 = vdwg.mxu0
    %v2020 = vunpack.c.l.b16 %v1867
    %v2021 = vunpack.c.l.b16 %v1868
    %v2022 = vunpack.c.l.b16 %v1869
    %v2023 = vunpack.c.l.b16 %v1870
    %v2024 = vunpack.c.l.b16 %v1871
    %v2025 = vunpack.c.l.b16 %v1872
    %v2026 = vunpack.c.l.b16 %v1873
    %v2027 = vunpack.c.l.b16 %v1874
    %v2028 = vpack.c.b16 %v2021, %v2020
    %v2029 = vpack.c.b16 %v2023, %v2022
    %v2030 = vpack.c.b16 %v2025, %v2024
    %v2031 = vpack.c.b16 %v2027, %v2026
    %v2037 = vsel %vm1624, %v1859, 0
    %v2040 = vsel %vm1624, %v1860, 0
    %v2043 = vsel %vm1624, %v1861, 0
    %v2046 = vsel %vm1624, %v1862, 0
    %v2049 = vsel %vm1624, %v1863, 0
    %v2052 = vsel %vm1624, %v1864, 0
    %v2055 = vsel %vm1624, %v1865, 0
    %v2058 = vsel %vm1624, %v1866, 0
    %2060 = vmatpush.bf16.msra.mxu0 0
    %2061 = vmatpush.bf16.msra.mxu0 0
    %2062 = vmatpush.bf16.msra.mxu0 0
    %2063 = vmatpush.bf16.msra.mxu0 0
    %2064 = vmatpush.bf16.msra.mxu0 %v2031
    %2065 = vmatpush.bf16.msra.mxu0 %v2030
    %2066 = vmatpush.bf16.msra.mxu0 %v2029
    %2067 = vmatpush.bf16.msra.mxu0 %v2028
    %2068 = vmatmul.bf16.gmra.mxu0 %v2037
    %v2069 = vpop.f32.mrf.mxu0
    %v2070 = vadd.f32 %v1973, %v2069
    %v2071 = vpop.f32.mrf.mxu0
    %v2072 = vadd.f32 %v1975, %v2071
    %2073 = vmatmul.bf16.gmra.mxu0 %v2040
    %v2074 = vpop.f32.mrf.mxu0
    %v2075 = vadd.f32 %v1978, %v2074
    %v2076 = vpop.f32.mrf.mxu0
    %v2077 = vadd.f32 %v1980, %v2076
    %2078 = vmatmul.bf16.gmra.mxu0 %v2043
    %v2079 = vpop.f32.mrf.mxu0
    %v2080 = vadd.f32 %v1983, %v2079
    %v2081 = vpop.f32.mrf.mxu0
    %v2082 = vadd.f32 %v1985, %v2081
    %2083 = vmatmul.bf16.gmra.mxu0 %v2046
    %v2084 = vpop.f32.mrf.mxu0
    %v2085 = vadd.f32 %v1988, %v2084
    %v2086 = vpop.f32.mrf.mxu0
    %v2087 = vadd.f32 %v1990, %v2086
    %2088 = vmatmul.bf16.gmra.mxu0 %v2049
    %v2089 = vpop.f32.mrf.mxu0
    %v2090 = vadd.f32 %v1993, %v2089
    %v2091 = vpop.f32.mrf.mxu0
    %v2092 = vadd.f32 %v1995, %v2091
    %2093 = vmatmul.bf16.gmra.mxu0 %v2052
    %v2094 = vpop.f32.mrf.mxu0
    %v2095 = vadd.f32 %v1998, %v2094
    %v2096 = vpop.f32.mrf.mxu0
    %v2097 = vadd.f32 %v2000, %v2096
    %2098 = vmatmul.bf16.gmra.mxu0 %v2055
    %v2099 = vpop.f32.mrf.mxu0
    %v2100 = vadd.f32 %v2003, %v2099
    %v2101 = vpop.f32.mrf.mxu0
    %v2102 = vadd.f32 %v2005, %v2101
    %2103 = vmatmul.bf16.gmra.mxu0 %v2058
    %v2104 = vpop.f32.mrf.mxu0
    %v2105 = vadd.f32 %v2008, %v2104
    %v2106 = vpop.f32.mrf.mxu0
    %v2107 = vadd.f32 %v2010, %v2106
    %2108 = vdwg.mxu0
    %v2109 = vrot.slane %v1764, 1
    %v2110 = vrot.slane %v1766, 1
    %v2111 = vrot.slane %v1768, 1
    %v2112 = vrot.slane %v1770, 1
    %v2113 = vrot.slane %v1772, 1
    %v2114 = vrot.slane %v1774, 1
    %v2115 = vrot.slane %v1776, 1
    %v2116 = vrot.slane %v1778, 1
    %v2117 = vrot.slane %v1780, 1
    %v2118 = vrot.slane %v1782, 1
    %v2119 = vrot.slane %v1784, 1
    %v2120 = vrot.slane %v1786, 1
    %v2121 = vrot.slane %v1788, 1
    %v2122 = vrot.slane %v1790, 1
    %v2123 = vrot.slane %v1792, 1
    %v2124 = vrot.slane %v1794, 1
    %v2125 = vsel %vm688, %v2123, %v2124
    %v2126 = vsel %vm688, %v2122, %v2123
    %v2127 = vsel %vm688, %v2121, %v2122
    %v2128 = vsel %vm688, %v2120, %v2121
    %v2129 = vsel %vm688, %v2119, %v2120
    %v2130 = vsel %vm688, %v2118, %v2119
    %v2131 = vsel %vm688, %v2117, %v2118
    %v2132 = vsel %vm688, %v2116, %v2117
    %v2133 = vsel %vm688, %v2115, %v2116
    %v2134 = vsel %vm688, %v2114, %v2115
    %v2135 = vsel %vm688, %v2113, %v2114
    %v2136 = vsel %vm688, %v2112, %v2113
    %v2137 = vsel %vm688, %v2111, %v2112
    %v2138 = vsel %vm688, %v2110, %v2111
    %v2139 = vsel %vm688, %v2109, %v2110
    %v2140 = vsel %vm688, %v2124, %v2109
    %v2141 = vsel %vm737, %v2139, 0.0
    %v2142 = vsel %vm738, %v2138, 0.0
    %v2143 = vsel %vm739, %v2137, 0.0
    %v2144 = vsel %vm740, %v2136, 0.0
    %v2145 = vsel %vm741, %v2135, 0.0
    %v2146 = vsel %vm742, %v2134, 0.0
    %v2147 = vsel %vm743, %v2133, 0.0
    %v2148 = vsel %vm744, %v2132, 0.0
    %v2149 = vsel %vm745, %v2131, 0.0
    %v2150 = vsel %vm746, %v2130, 0.0
    %v2151 = vsel %vm747, %v2129, 0.0
    %v2152 = vsel %vm748, %v2128, 0.0
    %v2153 = vsel %vm749, %v2127, 0.0
    %v2154 = vsel %vm750, %v2126, 0.0
    %v2155 = vsel %vm751, %v2125, 0.0
    %v2156 = vsel %vm752, %v2140, 0.0
    %v2157 = vpack.c.bf16 %v2142, %v2141
    %v2158 = vpack.c.bf16 %v2144, %v2143
    %v2159 = vpack.c.bf16 %v2146, %v2145
    %v2160 = vpack.c.bf16 %v2148, %v2147
    %v2161 = vpack.c.bf16 %v2150, %v2149
    %v2162 = vpack.c.bf16 %v2152, %v2151
    %v2163 = vpack.c.bf16 %v2154, %v2153
    %v2164 = vpack.c.bf16 %v2156, %v2155
    %v2165 = vld [vmem:[%s5 + $0x40] sm:$0xf]
    %v2166 = vld [vmem:[%s5 + $0x44] sm:$0xf]
    %v2167 = vld [vmem:[%s5 + $0x48] sm:$0xf]
    %v2168 = vld [vmem:[%s5 + $0x4c] sm:$0xf]
    %v2169 = vld [vmem:[%s5 + $0x50] sm:$0xf]
    %v2170 = vld [vmem:[%s5 + $0x54] sm:$0xf]
    %v2171 = vld [vmem:[%s5 + $0x58] sm:$0xf]
    %v2172 = vld [vmem:[%s5 + $0x5c] sm:$0xf]
    %v2181 = vunpack.c.l.b16 %v2165
    %v2182 = vunpack.c.l.b16 %v2166
    %v2183 = vunpack.c.l.b16 %v2167
    %v2184 = vunpack.c.l.b16 %v2168
    %v2185 = vunpack.c.l.b16 %v2169
    %v2186 = vunpack.c.l.b16 %v2170
    %v2187 = vunpack.c.l.b16 %v2171
    %v2188 = vunpack.c.l.b16 %v2172
    %v2189 = vpack.c.b16 %v2182, %v2181
    %v2190 = vpack.c.b16 %v2184, %v2183
    %v2191 = vpack.c.b16 %v2186, %v2185
    %v2192 = vpack.c.b16 %v2188, %v2187
    %v2198 = vsel %vm1624, %v2157, 0
    %v2201 = vsel %vm1624, %v2158, 0
    %v2204 = vsel %vm1624, %v2159, 0
    %v2207 = vsel %vm1624, %v2160, 0
    %v2210 = vsel %vm1624, %v2161, 0
    %v2213 = vsel %vm1624, %v2162, 0
    %v2216 = vsel %vm1624, %v2163, 0
    %v2219 = vsel %vm1624, %v2164, 0
    %2221 = vmatpush.bf16.msra.mxu0 0
    %2222 = vmatpush.bf16.msra.mxu0 0
    %2223 = vmatpush.bf16.msra.mxu0 0
    %2224 = vmatpush.bf16.msra.mxu0 0
    %2225 = vmatpush.bf16.msra.mxu0 %v2192
    %2226 = vmatpush.bf16.msra.mxu0 %v2191
    %2227 = vmatpush.bf16.msra.mxu0 %v2190
    %2228 = vmatpush.bf16.msra.mxu0 %v2189
    %2229 = vmatmul.bf16.gmra.mxu0 %v2198
    %v2230 = vpop.f32.mrf.mxu0
    %v2231 = vadd.f32 0.0, %v2230
    %v2232 = vpop.f32.mrf.mxu0
    %v2233 = vadd.f32 0.0, %v2232
    %2234 = vmatmul.bf16.gmra.mxu0 %v2201
    %v2235 = vpop.f32.mrf.mxu0
    %v2236 = vadd.f32 0.0, %v2235
    %v2237 = vpop.f32.mrf.mxu0
    %v2238 = vadd.f32 0.0, %v2237
    %2239 = vmatmul.bf16.gmra.mxu0 %v2204
    %v2240 = vpop.f32.mrf.mxu0
    %v2241 = vadd.f32 0.0, %v2240
    %v2242 = vpop.f32.mrf.mxu0
    %v2243 = vadd.f32 0.0, %v2242
    %2244 = vmatmul.bf16.gmra.mxu0 %v2207
    %v2245 = vpop.f32.mrf.mxu0
    %v2246 = vadd.f32 0.0, %v2245
    %v2247 = vpop.f32.mrf.mxu0
    %v2248 = vadd.f32 0.0, %v2247
    %2249 = vmatmul.bf16.gmra.mxu0 %v2210
    %v2250 = vpop.f32.mrf.mxu0
    %v2251 = vadd.f32 0.0, %v2250
    %v2252 = vpop.f32.mrf.mxu0
    %v2253 = vadd.f32 0.0, %v2252
    %2254 = vmatmul.bf16.gmra.mxu0 %v2213
    %v2255 = vpop.f32.mrf.mxu0
    %v2256 = vadd.f32 0.0, %v2255
    %v2257 = vpop.f32.mrf.mxu0
    %v2258 = vadd.f32 0.0, %v2257
    %2259 = vmatmul.bf16.gmra.mxu0 %v2216
    %v2260 = vpop.f32.mrf.mxu0
    %v2261 = vadd.f32 0.0, %v2260
    %v2262 = vpop.f32.mrf.mxu0
    %v2263 = vadd.f32 0.0, %v2262
    %2264 = vmatmul.bf16.gmra.mxu0 %v2219
    %v2265 = vpop.f32.mrf.mxu0
    %v2266 = vadd.f32 0.0, %v2265
    %v2267 = vpop.f32.mrf.mxu0
    %v2268 = vadd.f32 0.0, %v2267
    %2269 = vdwg.mxu0
    %v2270 = vadd.f32 %v2070, %v2231
    %v2271 = vadd.f32 %v2072, %v2233
    %v2272 = vadd.f32 %v2075, %v2236
    %v2273 = vadd.f32 %v2077, %v2238
    %v2274 = vadd.f32 %v2080, %v2241
    %v2275 = vadd.f32 %v2082, %v2243
    %v2276 = vadd.f32 %v2085, %v2246
    %v2277 = vadd.f32 %v2087, %v2248
    %v2278 = vadd.f32 %v2090, %v2251
    %v2279 = vadd.f32 %v2092, %v2253
    %v2280 = vadd.f32 %v2095, %v2256
    %v2281 = vadd.f32 %v2097, %v2258
    %v2282 = vadd.f32 %v2100, %v2261
    %v2283 = vadd.f32 %v2102, %v2263
    %v2284 = vadd.f32 %v2105, %v2266
    %v2285 = vadd.f32 %v2107, %v2268
    %v2286 = vld [vmem:[#allocation8] sm:$0x1]
    %v2288 = vperm.slane %v2286, 0
    %v2290 = vadd.f32 %v2270, %v2288
    %v2291 = vadd.f32 %v2271, %v2288
    %v2292 = vadd.f32 %v2272, %v2288
    %v2293 = vadd.f32 %v2273, %v2288
    %v2294 = vadd.f32 %v2274, %v2288
    %v2295 = vadd.f32 %v2275, %v2288
    %v2296 = vadd.f32 %v2276, %v2288
    %v2297 = vadd.f32 %v2277, %v2288
    %v2298 = vadd.f32 %v2278, %v2288
    %v2299 = vadd.f32 %v2279, %v2288
    %v2300 = vadd.f32 %v2280, %v2288
    %v2301 = vadd.f32 %v2281, %v2288
    %v2302 = vadd.f32 %v2282, %v2288
    %v2303 = vadd.f32 %v2283, %v2288
    %v2304 = vadd.f32 %v2284, %v2288
    %v2305 = vadd.f32 %v2285, %v2288
    %v2306 = vrot.slane %v1708, 6
    %v2307 = vrot.slane %v1710, 6
    %v2308 = vrot.slane %v1713, 6
    %v2309 = vrot.slane %v1715, 6
    %v2310 = vrot.slane %v1718, 6
    %v2311 = vrot.slane %v1720, 6
    %v2312 = vrot.slane %v1723, 6
    %v2313 = vrot.slane %v1725, 6
    %v2314 = vrot.slane %v1728, 6
    %v2315 = vrot.slane %v1730, 6
    %v2316 = vrot.slane %v1733, 6
    %v2317 = vrot.slane %v1735, 6
    %v2318 = vrot.slane %v1738, 6
    %v2319 = vrot.slane %v1740, 6
    %v2320 = vrot.slane %v1743, 6
    %v2321 = vrot.slane %v1745, 6
    %v2322 = vsel %vm494, %v2320, %v2321
    %v2323 = vsel %vm494, %v2319, %v2320
    %v2324 = vsel %vm494, %v2318, %v2319
    %v2325 = vsel %vm494, %v2317, %v2318
    %v2326 = vsel %vm494, %v2316, %v2317
    %v2327 = vsel %vm494, %v2315, %v2316
    %v2328 = vsel %vm494, %v2314, %v2315
    %v2329 = vsel %vm494, %v2313, %v2314
    %v2330 = vsel %vm494, %v2312, %v2313
    %v2331 = vsel %vm494, %v2311, %v2312
    %v2332 = vsel %vm494, %v2310, %v2311
    %v2333 = vsel %vm494, %v2309, %v2310
    %v2334 = vsel %vm494, %v2308, %v2309
    %v2335 = vsel %vm494, %v2307, %v2308
    %v2336 = vsel %vm494, %v2306, %v2307
    %v2337 = vsel %vm494, %v2321, %v2306
    %v2338 = vsel %vm543, %v2337, 0.0
    %v2339 = vsel %vm544, %v2336, 0.0
    %v2340 = vsel %vm545, %v2335, 0.0
    %v2341 = vsel %vm546, %v2334, 0.0
    %v2342 = vsel %vm547, %v2333, 0.0
    %v2343 = vsel %vm548, %v2332, 0.0
    %v2344 = vsel %vm549, %v2331, 0.0
    %v2345 = vsel %vm550, %v2330, 0.0
    %v2346 = vsel %vm551, %v2329, 0.0
    %v2347 = vsel %vm552, %v2328, 0.0
    %v2348 = vsel %vm553, %v2327, 0.0
    %v2349 = vsel %vm554, %v2326, 0.0
    %v2350 = vsel %vm555, %v2325, 0.0
    %v2351 = vsel %vm556, %v2324, 0.0
    %v2352 = vsel %vm557, %v2323, 0.0
    %v2353 = vsel %vm558, %v2322, 0.0
    %v2354 = vpack.c.bf16 %v2339, %v2338
    %v2355 = vpack.c.bf16 %v2341, %v2340
    %v2356 = vpack.c.bf16 %v2343, %v2342
    %v2357 = vpack.c.bf16 %v2345, %v2344
    %v2358 = vpack.c.bf16 %v2347, %v2346
    %v2359 = vpack.c.bf16 %v2349, %v2348
    %v2360 = vpack.c.bf16 %v2351, %v2350
    %v2361 = vpack.c.bf16 %v2353, %v2352
    %v2362 = vld [vmem:[#allocation10] sm:$0xf]
    %v2363 = vld [vmem:[#allocation10 + $0x4] sm:$0xf]
    %v2364 = vld [vmem:[#allocation10 + $0x8] sm:$0xf]
    %v2365 = vld [vmem:[#allocation10 + $0xc] sm:$0xf]
    %v2366 = vld [vmem:[#allocation10 + $0x10] sm:$0xf]
    %v2367 = vld [vmem:[#allocation10 + $0x14] sm:$0xf]
    %v2368 = vld [vmem:[#allocation10 + $0x18] sm:$0xf]
    %v2369 = vld [vmem:[#allocation10 + $0x1c] sm:$0xf]
    %v2370 = vrot.slane %v1708, 7
    %v2371 = vrot.slane %v1710, 7
    %v2372 = vrot.slane %v1713, 7
    %v2373 = vrot.slane %v1715, 7
    %v2374 = vrot.slane %v1718, 7
    %v2375 = vrot.slane %v1720, 7
    %v2376 = vrot.slane %v1723, 7
    %v2377 = vrot.slane %v1725, 7
    %v2378 = vrot.slane %v1728, 7
    %v2379 = vrot.slane %v1730, 7
    %v2380 = vrot.slane %v1733, 7
    %v2381 = vrot.slane %v1735, 7
    %v2382 = vrot.slane %v1738, 7
    %v2383 = vrot.slane %v1740, 7
    %v2384 = vrot.slane %v1743, 7
    %v2385 = vrot.slane %v1745, 7
    %v2386 = vsel %vm591, %v2384, %v2385
    %v2387 = vsel %vm591, %v2383, %v2384
    %v2388 = vsel %vm591, %v2382, %v2383
    %v2389 = vsel %vm591, %v2381, %v2382
    %v2390 = vsel %vm591, %v2380, %v2381
    %v2391 = vsel %vm591, %v2379, %v2380
    %v2392 = vsel %vm591, %v2378, %v2379
    %v2393 = vsel %vm591, %v2377, %v2378
    %v2394 = vsel %vm591, %v2376, %v2377
    %v2395 = vsel %vm591, %v2375, %v2376
    %v2396 = vsel %vm591, %v2374, %v2375
    %v2397 = vsel %vm591, %v2373, %v2374
    %v2398 = vsel %vm591, %v2372, %v2373
    %v2399 = vsel %vm591, %v2371, %v2372
    %v2400 = vsel %vm591, %v2370, %v2371
    %v2401 = vsel %vm591, %v2385, %v2370
    %v2402 = vsel %vm640, %v2401, 0.0
    %v2403 = vsel %vm641, %v2400, 0.0
    %v2404 = vsel %vm642, %v2399, 0.0
    %v2405 = vsel %vm643, %v2398, 0.0
    %v2406 = vsel %vm644, %v2397, 0.0
    %v2407 = vsel %vm645, %v2396, 0.0
    %v2408 = vsel %vm646, %v2395, 0.0
    %v2409 = vsel %vm647, %v2394, 0.0
    %v2410 = vsel %vm648, %v2393, 0.0
    %v2411 = vsel %vm649, %v2392, 0.0
    %v2412 = vsel %vm650, %v2391, 0.0
    %v2413 = vsel %vm651, %v2390, 0.0
    %v2414 = vsel %vm652, %v2389, 0.0
    %v2415 = vsel %vm653, %v2388, 0.0
    %v2416 = vsel %vm654, %v2387, 0.0
    %v2417 = vsel %vm655, %v2386, 0.0
    %v2418 = vpack.c.bf16 %v2403, %v2402
    %v2419 = vpack.c.bf16 %v2405, %v2404
    %v2420 = vpack.c.bf16 %v2407, %v2406
    %v2421 = vpack.c.bf16 %v2409, %v2408
    %v2422 = vpack.c.bf16 %v2411, %v2410
    %v2423 = vpack.c.bf16 %v2413, %v2412
    %v2424 = vpack.c.bf16 %v2415, %v2414
    %v2425 = vpack.c.bf16 %v2417, %v2416
    %v2426 = vld [vmem:[#allocation10 + $0x20] sm:$0xf]
    %v2427 = vld [vmem:[#allocation10 + $0x24] sm:$0xf]
    %v2428 = vld [vmem:[#allocation10 + $0x28] sm:$0xf]
    %v2429 = vld [vmem:[#allocation10 + $0x2c] sm:$0xf]
    %v2430 = vld [vmem:[#allocation10 + $0x30] sm:$0xf]
    %v2431 = vld [vmem:[#allocation10 + $0x34] sm:$0xf]
    %v2432 = vld [vmem:[#allocation10 + $0x38] sm:$0xf]
    %v2433 = vld [vmem:[#allocation10 + $0x3c] sm:$0xf]
    %v2442 = vunpack.c.l.b16 %v2426
    %v2443 = vunpack.c.l.b16 %v2427
    %v2444 = vunpack.c.l.b16 %v2428
    %v2445 = vunpack.c.l.b16 %v2429
    %v2446 = vunpack.c.l.b16 %v2430
    %v2447 = vunpack.c.l.b16 %v2431
    %v2448 = vunpack.c.l.b16 %v2432
    %v2449 = vunpack.c.l.b16 %v2433
    %v2450 = vpack.c.b16 %v2443, %v2442
    %v2451 = vpack.c.b16 %v2445, %v2444
    %v2452 = vpack.c.b16 %v2447, %v2446
    %v2453 = vpack.c.b16 %v2449, %v2448
    %v2459 = vsel %vm1624, %v2418, 0
    %v2462 = vsel %vm1624, %v2419, 0
    %v2465 = vsel %vm1624, %v2420, 0
    %v2468 = vsel %vm1624, %v2421, 0
    %v2471 = vsel %vm1624, %v2422, 0
    %v2474 = vsel %vm1624, %v2423, 0
    %v2477 = vsel %vm1624, %v2424, 0
    %v2480 = vsel %vm1624, %v2425, 0
    %2482 = vmatpush.bf16.msra.mxu0 0
    %2483 = vmatpush.bf16.msra.mxu0 0
    %2484 = vmatpush.bf16.msra.mxu0 0
    %2485 = vmatpush.bf16.msra.mxu0 0
    %2486 = vmatpush.bf16.msra.mxu0 %v2453
    %2487 = vmatpush.bf16.msra.mxu0 %v2452
    %2488 = vmatpush.bf16.msra.mxu0 %v2451
    %2489 = vmatpush.bf16.msra.mxu0 %v2450
    %2490 = vmatmul.bf16.gmra.mxu0 %v2459
    %v2491 = vpop.f32.mrf.mxu0
    %v2492 = vadd.f32 0.0, %v2491
    %v2493 = vpop.f32.mrf.mxu0
    %v2494 = vadd.f32 0.0, %v2493
    %2495 = vmatmul.bf16.gmra.mxu0 %v2462
    %v2496 = vpop.f32.mrf.mxu0
    %v2497 = vadd.f32 0.0, %v2496
    %v2498 = vpop.f32.mrf.mxu0
    %v2499 = vadd.f32 0.0, %v2498
    %2500 = vmatmul.bf16.gmra.mxu0 %v2465
    %v2501 = vpop.f32.mrf.mxu0
    %v2502 = vadd.f32 0.0, %v2501
    %v2503 = vpop.f32.mrf.mxu0
    %v2504 = vadd.f32 0.0, %v2503
    %2505 = vmatmul.bf16.gmra.mxu0 %v2468
    %v2506 = vpop.f32.mrf.mxu0
    %v2507 = vadd.f32 0.0, %v2506
    %v2508 = vpop.f32.mrf.mxu0
    %v2509 = vadd.f32 0.0, %v2508
    %2510 = vmatmul.bf16.gmra.mxu0 %v2471
    %v2511 = vpop.f32.mrf.mxu0
    %v2512 = vadd.f32 0.0, %v2511
    %v2513 = vpop.f32.mrf.mxu0
    %v2514 = vadd.f32 0.0, %v2513
    %2515 = vmatmul.bf16.gmra.mxu0 %v2474
    %v2516 = vpop.f32.mrf.mxu0
    %v2517 = vadd.f32 0.0, %v2516
    %v2518 = vpop.f32.mrf.mxu0
    %v2519 = vadd.f32 0.0, %v2518
    %2520 = vmatmul.bf16.gmra.mxu0 %v2477
    %v2521 = vpop.f32.mrf.mxu0
    %v2522 = vadd.f32 0.0, %v2521
    %v2523 = vpop.f32.mrf.mxu0
    %v2524 = vadd.f32 0.0, %v2523
    %2525 = vmatmul.bf16.gmra.mxu0 %v2480
    %v2526 = vpop.f32.mrf.mxu0
    %v2527 = vadd.f32 0.0, %v2526
    %v2528 = vpop.f32.mrf.mxu0
    %v2529 = vadd.f32 0.0, %v2528
    %2530 = vdwg.mxu0
    %v2539 = vunpack.c.l.b16 %v2362
    %v2540 = vunpack.c.l.b16 %v2363
    %v2541 = vunpack.c.l.b16 %v2364
    %v2542 = vunpack.c.l.b16 %v2365
    %v2543 = vunpack.c.l.b16 %v2366
    %v2544 = vunpack.c.l.b16 %v2367
    %v2545 = vunpack.c.l.b16 %v2368
    %v2546 = vunpack.c.l.b16 %v2369
    %v2547 = vpack.c.b16 %v2540, %v2539
    %v2548 = vpack.c.b16 %v2542, %v2541
    %v2549 = vpack.c.b16 %v2544, %v2543
    %v2550 = vpack.c.b16 %v2546, %v2545
    %v2556 = vsel %vm1624, %v2354, 0
    %v2559 = vsel %vm1624, %v2355, 0
    %v2562 = vsel %vm1624, %v2356, 0
    %v2565 = vsel %vm1624, %v2357, 0
    %v2568 = vsel %vm1624, %v2358, 0
    %v2571 = vsel %vm1624, %v2359, 0
    %v2574 = vsel %vm1624, %v2360, 0
    %v2577 = vsel %vm1624, %v2361, 0
    %2579 = vmatpush.bf16.msra.mxu0 0
    %2580 = vmatpush.bf16.msra.mxu0 0
    %2581 = vmatpush.bf16.msra.mxu0 0
    %2582 = vmatpush.bf16.msra.mxu0 0
    %2583 = vmatpush.bf16.msra.mxu0 %v2550
    %2584 = vmatpush.bf16.msra.mxu0 %v2549
    %2585 = vmatpush.bf16.msra.mxu0 %v2548
    %2586 = vmatpush.bf16.msra.mxu0 %v2547
    %2587 = vmatmul.bf16.gmra.mxu0 %v2556
    %v2588 = vpop.f32.mrf.mxu0
    %v2589 = vadd.f32 %v2492, %v2588
    %v2590 = vpop.f32.mrf.mxu0
    %v2591 = vadd.f32 %v2494, %v2590
    %2592 = vmatmul.bf16.gmra.mxu0 %v2559
    %v2593 = vpop.f32.mrf.mxu0
    %v2594 = vadd.f32 %v2497, %v2593
    %v2595 = vpop.f32.mrf.mxu0
    %v2596 = vadd.f32 %v2499, %v2595
    %2597 = vmatmul.bf16.gmra.mxu0 %v2562
    %v2598 = vpop.f32.mrf.mxu0
    %v2599 = vadd.f32 %v2502, %v2598
    %v2600 = vpop.f32.mrf.mxu0
    %v2601 = vadd.f32 %v2504, %v2600
    %2602 = vmatmul.bf16.gmra.mxu0 %v2565
    %v2603 = vpop.f32.mrf.mxu0
    %v2604 = vadd.f32 %v2507, %v2603
    %v2605 = vpop.f32.mrf.mxu0
    %v2606 = vadd.f32 %v2509, %v2605
    %2607 = vmatmul.bf16.gmra.mxu0 %v2568
    %v2608 = vpop.f32.mrf.mxu0
    %v2609 = vadd.f32 %v2512, %v2608
    %v2610 = vpop.f32.mrf.mxu0
    %v2611 = vadd.f32 %v2514, %v2610
    %2612 = vmatmul.bf16.gmra.mxu0 %v2571
    %v2613 = vpop.f32.mrf.mxu0
    %v2614 = vadd.f32 %v2517, %v2613
    %v2615 = vpop.f32.mrf.mxu0
    %v2616 = vadd.f32 %v2519, %v2615
    %2617 = vmatmul.bf16.gmra.mxu0 %v2574
    %v2618 = vpop.f32.mrf.mxu0
    %v2619 = vadd.f32 %v2522, %v2618
    %v2620 = vpop.f32.mrf.mxu0
    %v2621 = vadd.f32 %v2524, %v2620
    %2622 = vmatmul.bf16.gmra.mxu0 %v2577
    %v2623 = vpop.f32.mrf.mxu0
    %v2624 = vadd.f32 %v2527, %v2623
    %v2625 = vpop.f32.mrf.mxu0
    %v2626 = vadd.f32 %v2529, %v2625
    %2627 = vdwg.mxu0
    %v2628 = vpack.c.bf16 %v1710, %v1708
    %v2629 = vpack.c.bf16 %v1715, %v1713
    %v2630 = vpack.c.bf16 %v1720, %v1718
    %v2631 = vpack.c.bf16 %v1725, %v1723
    %v2632 = vpack.c.bf16 %v1730, %v1728
    %v2633 = vpack.c.bf16 %v1735, %v1733
    %v2634 = vpack.c.bf16 %v1740, %v1738
    %v2635 = vpack.c.bf16 %v1745, %v1743
    %v2636 = vld [vmem:[#allocation10 + $0x40] sm:$0xf]
    %v2637 = vld [vmem:[#allocation10 + $0x44] sm:$0xf]
    %v2638 = vld [vmem:[#allocation10 + $0x48] sm:$0xf]
    %v2639 = vld [vmem:[#allocation10 + $0x4c] sm:$0xf]
    %v2640 = vld [vmem:[#allocation10 + $0x50] sm:$0xf]
    %v2641 = vld [vmem:[#allocation10 + $0x54] sm:$0xf]
    %v2642 = vld [vmem:[#allocation10 + $0x58] sm:$0xf]
    %v2643 = vld [vmem:[#allocation10 + $0x5c] sm:$0xf]
    %v2652 = vunpack.c.l.b16 %v2636
    %v2653 = vunpack.c.l.b16 %v2637
    %v2654 = vunpack.c.l.b16 %v2638
    %v2655 = vunpack.c.l.b16 %v2639
    %v2656 = vunpack.c.l.b16 %v2640
    %v2657 = vunpack.c.l.b16 %v2641
    %v2658 = vunpack.c.l.b16 %v2642
    %v2659 = vunpack.c.l.b16 %v2643
    %v2660 = vpack.c.b16 %v2653, %v2652
    %v2661 = vpack.c.b16 %v2655, %v2654
    %v2662 = vpack.c.b16 %v2657, %v2656
    %v2663 = vpack.c.b16 %v2659, %v2658
    %v2669 = vsel %vm1624, %v2628, 0
    %v2672 = vsel %vm1624, %v2629, 0
    %v2675 = vsel %vm1624, %v2630, 0
    %v2678 = vsel %vm1624, %v2631, 0
    %v2681 = vsel %vm1624, %v2632, 0
    %v2684 = vsel %vm1624, %v2633, 0
    %v2687 = vsel %vm1624, %v2634, 0
    %v2690 = vsel %vm1624, %v2635, 0
    %2692 = vmatpush.bf16.msra.mxu0 0
    %2693 = vmatpush.bf16.msra.mxu0 0
    %2694 = vmatpush.bf16.msra.mxu0 0
    %2695 = vmatpush.bf16.msra.mxu0 0
    %2696 = vmatpush.bf16.msra.mxu0 %v2663
    %2697 = vmatpush.bf16.msra.mxu0 %v2662
    %2698 = vmatpush.bf16.msra.mxu0 %v2661
    %2699 = vmatpush.bf16.msra.mxu0 %v2660
    %2700 = vmatmul.bf16.gmra.mxu0 %v2669
    %v2701 = vpop.f32.mrf.mxu0
    %v2702 = vadd.f32 0.0, %v2701
    %v2703 = vpop.f32.mrf.mxu0
    %v2704 = vadd.f32 0.0, %v2703
    %2705 = vmatmul.bf16.gmra.mxu0 %v2672
    %v2706 = vpop.f32.mrf.mxu0
    %v2707 = vadd.f32 0.0, %v2706
    %v2708 = vpop.f32.mrf.mxu0
    %v2709 = vadd.f32 0.0, %v2708
    %2710 = vmatmul.bf16.gmra.mxu0 %v2675
    %v2711 = vpop.f32.mrf.mxu0
    %v2712 = vadd.f32 0.0, %v2711
    %v2713 = vpop.f32.mrf.mxu0
    %v2714 = vadd.f32 0.0, %v2713
    %2715 = vmatmul.bf16.gmra.mxu0 %v2678
    %v2716 = vpop.f32.mrf.mxu0
    %v2717 = vadd.f32 0.0, %v2716
    %v2718 = vpop.f32.mrf.mxu0
    %v2719 = vadd.f32 0.0, %v2718
    %2720 = vmatmul.bf16.gmra.mxu0 %v2681
    %v2721 = vpop.f32.mrf.mxu0
    %v2722 = vadd.f32 0.0, %v2721
    %v2723 = vpop.f32.mrf.mxu0
    %v2724 = vadd.f32 0.0, %v2723
    %2725 = vmatmul.bf16.gmra.mxu0 %v2684
    %v2726 = vpop.f32.mrf.mxu0
    %v2727 = vadd.f32 0.0, %v2726
    %v2728 = vpop.f32.mrf.mxu0
    %v2729 = vadd.f32 0.0, %v2728
    %2730 = vmatmul.bf16.gmra.mxu0 %v2687
    %v2731 = vpop.f32.mrf.mxu0
    %v2732 = vadd.f32 0.0, %v2731
    %v2733 = vpop.f32.mrf.mxu0
    %v2734 = vadd.f32 0.0, %v2733
    %2735 = vmatmul.bf16.gmra.mxu0 %v2690
    %v2736 = vpop.f32.mrf.mxu0
    %v2737 = vadd.f32 0.0, %v2736
    %v2738 = vpop.f32.mrf.mxu0
    %v2739 = vadd.f32 0.0, %v2738
    %2740 = vdwg.mxu0
    %v2741 = vadd.f32 %v2589, %v2702
    %v2742 = vadd.f32 %v2591, %v2704
    %v2743 = vadd.f32 %v2594, %v2707
    %v2744 = vadd.f32 %v2596, %v2709
    %v2745 = vadd.f32 %v2599, %v2712
    %v2746 = vadd.f32 %v2601, %v2714
    %v2747 = vadd.f32 %v2604, %v2717
    %v2748 = vadd.f32 %v2606, %v2719
    %v2749 = vadd.f32 %v2609, %v2722
    %v2750 = vadd.f32 %v2611, %v2724
    %v2751 = vadd.f32 %v2614, %v2727
    %v2752 = vadd.f32 %v2616, %v2729
    %v2753 = vadd.f32 %v2619, %v2732
    %v2754 = vadd.f32 %v2621, %v2734
    %v2755 = vadd.f32 %v2624, %v2737
    %v2756 = vadd.f32 %v2626, %v2739
    %v2757 = vrot.slane %v1708, 1
    %v2758 = vrot.slane %v1710, 1
    %v2759 = vrot.slane %v1713, 1
    %v2760 = vrot.slane %v1715, 1
    %v2761 = vrot.slane %v1718, 1
    %v2762 = vrot.slane %v1720, 1
    %v2763 = vrot.slane %v1723, 1
    %v2764 = vrot.slane %v1725, 1
    %v2765 = vrot.slane %v1728, 1
    %v2766 = vrot.slane %v1730, 1
    %v2767 = vrot.slane %v1733, 1
    %v2768 = vrot.slane %v1735, 1
    %v2769 = vrot.slane %v1738, 1
    %v2770 = vrot.slane %v1740, 1
    %v2771 = vrot.slane %v1743, 1
    %v2772 = vrot.slane %v1745, 1
    %v2773 = vsel %vm688, %v2771, %v2772
    %v2774 = vsel %vm688, %v2770, %v2771
    %v2775 = vsel %vm688, %v2769, %v2770
    %v2776 = vsel %vm688, %v2768, %v2769
    %v2777 = vsel %vm688, %v2767, %v2768
    %v2778 = vsel %vm688, %v2766, %v2767
    %v2779 = vsel %vm688, %v2765, %v2766
    %v2780 = vsel %vm688, %v2764, %v2765
    %v2781 = vsel %vm688, %v2763, %v2764
    %v2782 = vsel %vm688, %v2762, %v2763
    %v2783 = vsel %vm688, %v2761, %v2762
    %v2784 = vsel %vm688, %v2760, %v2761
    %v2785 = vsel %vm688, %v2759, %v2760
    %v2786 = vsel %vm688, %v2758, %v2759
    %v2787 = vsel %vm688, %v2757, %v2758
    %v2788 = vsel %vm688, %v2772, %v2757
    %v2789 = vsel %vm737, %v2787, 0.0
    %v2790 = vsel %vm738, %v2786, 0.0
    %v2791 = vsel %vm739, %v2785, 0.0
    %v2792 = vsel %vm740, %v2784, 0.0
    %v2793 = vsel %vm741, %v2783, 0.0
    %v2794 = vsel %vm742, %v2782, 0.0
    %v2795 = vsel %vm743, %v2781, 0.0
    %v2796 = vsel %vm744, %v2780, 0.0
    %v2797 = vsel %vm745, %v2779, 0.0
    %v2798 = vsel %vm746, %v2778, 0.0
    %v2799 = vsel %vm747, %v2777, 0.0
    %v2800 = vsel %vm748, %v2776, 0.0
    %v2801 = vsel %vm749, %v2775, 0.0
    %v2802 = vsel %vm750, %v2774, 0.0
    %v2803 = vsel %vm751, %v2773, 0.0
    %v2804 = vsel %vm752, %v2788, 0.0
    %v2805 = vpack.c.bf16 %v2790, %v2789
    %v2806 = vpack.c.bf16 %v2792, %v2791
    %v2807 = vpack.c.bf16 %v2794, %v2793
    %v2808 = vpack.c.bf16 %v2796, %v2795
    %v2809 = vpack.c.bf16 %v2798, %v2797
    %v2810 = vpack.c.bf16 %v2800, %v2799
    %v2811 = vpack.c.bf16 %v2802, %v2801
    %v2812 = vpack.c.bf16 %v2804, %v2803
    %v2813 = vld [vmem:[#allocation10 + $0x60] sm:$0xf]
    %v2814 = vld [vmem:[#allocation10 + $0x64] sm:$0xf]
    %v2815 = vld [vmem:[#allocation10 + $0x68] sm:$0xf]
    %v2816 = vld [vmem:[#allocation10 + $0x6c] sm:$0xf]
    %v2817 = vld [vmem:[#allocation10 + $0x70] sm:$0xf]
    %v2818 = vld [vmem:[#allocation10 + $0x74] sm:$0xf]
    %v2819 = vld [vmem:[#allocation10 + $0x78] sm:$0xf]
    %v2820 = vld [vmem:[#allocation10 + $0x7c] sm:$0xf]
    %v2829 = vunpack.c.l.b16 %v2813
    %v2830 = vunpack.c.l.b16 %v2814
    %v2831 = vunpack.c.l.b16 %v2815
    %v2832 = vunpack.c.l.b16 %v2816
    %v2833 = vunpack.c.l.b16 %v2817
    %v2834 = vunpack.c.l.b16 %v2818
    %v2835 = vunpack.c.l.b16 %v2819
    %v2836 = vunpack.c.l.b16 %v2820
    %v2837 = vpack.c.b16 %v2830, %v2829
    %v2838 = vpack.c.b16 %v2832, %v2831
    %v2839 = vpack.c.b16 %v2834, %v2833
    %v2840 = vpack.c.b16 %v2836, %v2835
    %v2846 = vsel %vm1624, %v2805, 0
    %v2849 = vsel %vm1624, %v2806, 0
    %v2852 = vsel %vm1624, %v2807, 0
    %v2855 = vsel %vm1624, %v2808, 0
    %v2858 = vsel %vm1624, %v2809, 0
    %v2861 = vsel %vm1624, %v2810, 0
    %v2864 = vsel %vm1624, %v2811, 0
    %v2867 = vsel %vm1624, %v2812, 0
    %2869 = vmatpush.bf16.msra.mxu0 0
    %2870 = vmatpush.bf16.msra.mxu0 0
    %2871 = vmatpush.bf16.msra.mxu0 0
    %2872 = vmatpush.bf16.msra.mxu0 0
    %2873 = vmatpush.bf16.msra.mxu0 %v2840
    %2874 = vmatpush.bf16.msra.mxu0 %v2839
    %2875 = vmatpush.bf16.msra.mxu0 %v2838
    %2876 = vmatpush.bf16.msra.mxu0 %v2837
    %2877 = vmatmul.bf16.gmra.mxu0 %v2846
    %v2878 = vpop.f32.mrf.mxu0
    %v2879 = vadd.f32 0.0, %v2878
    %v2880 = vpop.f32.mrf.mxu0
    %v2881 = vadd.f32 0.0, %v2880
    %2882 = vmatmul.bf16.gmra.mxu0 %v2849
    %v2883 = vpop.f32.mrf.mxu0
    %v2884 = vadd.f32 0.0, %v2883
    %v2885 = vpop.f32.mrf.mxu0
    %v2886 = vadd.f32 0.0, %v2885
    %2887 = vmatmul.bf16.gmra.mxu0 %v2852
    %v2888 = vpop.f32.mrf.mxu0
    %v2889 = vadd.f32 0.0, %v2888
    %v2890 = vpop.f32.mrf.mxu0
    %v2891 = vadd.f32 0.0, %v2890
    %2892 = vmatmul.bf16.gmra.mxu0 %v2855
    %v2893 = vpop.f32.mrf.mxu0
    %v2894 = vadd.f32 0.0, %v2893
    %v2895 = vpop.f32.mrf.mxu0
    %v2896 = vadd.f32 0.0, %v2895
    %2897 = vmatmul.bf16.gmra.mxu0 %v2858
    %v2898 = vpop.f32.mrf.mxu0
    %v2899 = vadd.f32 0.0, %v2898
    %v2900 = vpop.f32.mrf.mxu0
    %v2901 = vadd.f32 0.0, %v2900
    %2902 = vmatmul.bf16.gmra.mxu0 %v2861
    %v2903 = vpop.f32.mrf.mxu0
    %v2904 = vadd.f32 0.0, %v2903
    %v2905 = vpop.f32.mrf.mxu0
    %v2906 = vadd.f32 0.0, %v2905
    %2907 = vmatmul.bf16.gmra.mxu0 %v2864
    %v2908 = vpop.f32.mrf.mxu0
    %v2909 = vadd.f32 0.0, %v2908
    %v2910 = vpop.f32.mrf.mxu0
    %v2911 = vadd.f32 0.0, %v2910
    %2912 = vmatmul.bf16.gmra.mxu0 %v2867
    %v2913 = vpop.f32.mrf.mxu0
    %v2914 = vadd.f32 0.0, %v2913
    %v2915 = vpop.f32.mrf.mxu0
    %v2916 = vadd.f32 0.0, %v2915
    %2917 = vdwg.mxu0
    %v2918 = vadd.f32 %v2741, %v2879
    %v2919 = vadd.f32 %v2742, %v2881
    %v2920 = vadd.f32 %v2743, %v2884
    %v2921 = vadd.f32 %v2744, %v2886
    %v2922 = vadd.f32 %v2745, %v2889
    %v2923 = vadd.f32 %v2746, %v2891
    %v2924 = vadd.f32 %v2747, %v2894
    %v2925 = vadd.f32 %v2748, %v2896
    %v2926 = vadd.f32 %v2749, %v2899
    %v2927 = vadd.f32 %v2750, %v2901
    %v2928 = vadd.f32 %v2751, %v2904
    %v2929 = vadd.f32 %v2752, %v2906
    %v2930 = vadd.f32 %v2753, %v2909
    %v2931 = vadd.f32 %v2754, %v2911
    %v2932 = vadd.f32 %v2755, %v2914
    %v2933 = vadd.f32 %v2756, %v2916
    %v2934 = vrot.slane %v1708, 2
    %v2935 = vrot.slane %v1710, 2
    %v2936 = vrot.slane %v1713, 2
    %v2937 = vrot.slane %v1715, 2
    %v2938 = vrot.slane %v1718, 2
    %v2939 = vrot.slane %v1720, 2
    %v2940 = vrot.slane %v1723, 2
    %v2941 = vrot.slane %v1725, 2
    %v2942 = vrot.slane %v1728, 2
    %v2943 = vrot.slane %v1730, 2
    %v2944 = vrot.slane %v1733, 2
    %v2945 = vrot.slane %v1735, 2
    %v2946 = vrot.slane %v1738, 2
    %v2947 = vrot.slane %v1740, 2
    %v2948 = vrot.slane %v1743, 2
    %v2949 = vrot.slane %v1745, 2
    %v2950 = vsel %vm785, %v2948, %v2949
    %v2951 = vsel %vm785, %v2947, %v2948
    %v2952 = vsel %vm785, %v2946, %v2947
    %v2953 = vsel %vm785, %v2945, %v2946
    %v2954 = vsel %vm785, %v2944, %v2945
    %v2955 = vsel %vm785, %v2943, %v2944
    %v2956 = vsel %vm785, %v2942, %v2943
    %v2957 = vsel %vm785, %v2941, %v2942
    %v2958 = vsel %vm785, %v2940, %v2941
    %v2959 = vsel %vm785, %v2939, %v2940
    %v2960 = vsel %vm785, %v2938, %v2939
    %v2961 = vsel %vm785, %v2937, %v2938
    %v2962 = vsel %vm785, %v2936, %v2937
    %v2963 = vsel %vm785, %v2935, %v2936
    %v2964 = vsel %vm785, %v2934, %v2935
    %v2965 = vsel %vm785, %v2949, %v2934
    %v2966 = vsel %vm834, %v2964, 0.0
    %v2967 = vsel %vm835, %v2963, 0.0
    %v2968 = vsel %vm836, %v2962, 0.0
    %v2969 = vsel %vm837, %v2961, 0.0
    %v2970 = vsel %vm838, %v2960, 0.0
    %v2971 = vsel %vm839, %v2959, 0.0
    %v2972 = vsel %vm840, %v2958, 0.0
    %v2973 = vsel %vm841, %v2957, 0.0
    %v2974 = vsel %vm842, %v2956, 0.0
    %v2975 = vsel %vm843, %v2955, 0.0
    %v2976 = vsel %vm844, %v2954, 0.0
    %v2977 = vsel %vm845, %v2953, 0.0
    %v2978 = vsel %vm846, %v2952, 0.0
    %v2979 = vsel %vm847, %v2951, 0.0
    %v2980 = vsel %vm848, %v2950, 0.0
    %v2981 = vsel %vm849, %v2965, 0.0
    %v2982 = vpack.c.bf16 %v2967, %v2966
    %v2983 = vpack.c.bf16 %v2969, %v2968
    %v2984 = vpack.c.bf16 %v2971, %v2970
    %v2985 = vpack.c.bf16 %v2973, %v2972
    %v2986 = vpack.c.bf16 %v2975, %v2974
    %v2987 = vpack.c.bf16 %v2977, %v2976
    %v2988 = vpack.c.bf16 %v2979, %v2978
    %v2989 = vpack.c.bf16 %v2981, %v2980
    %v2990 = vld [vmem:[#allocation10 + $0x80] sm:$0xf]
    %v2991 = vld [vmem:[#allocation10 + $0x84] sm:$0xf]
    %v2992 = vld [vmem:[#allocation10 + $0x88] sm:$0xf]
    %v2993 = vld [vmem:[#allocation10 + $0x8c] sm:$0xf]
    %v2994 = vld [vmem:[#allocation10 + $0x90] sm:$0xf]
    %v2995 = vld [vmem:[#allocation10 + $0x94] sm:$0xf]
    %v2996 = vld [vmem:[#allocation10 + $0x98] sm:$0xf]
    %v2997 = vld [vmem:[#allocation10 + $0x9c] sm:$0xf]
    %v3006 = vunpack.c.l.b16 %v2990
    %v3007 = vunpack.c.l.b16 %v2991
    %v3008 = vunpack.c.l.b16 %v2992
    %v3009 = vunpack.c.l.b16 %v2993
    %v3010 = vunpack.c.l.b16 %v2994
    %v3011 = vunpack.c.l.b16 %v2995
    %v3012 = vunpack.c.l.b16 %v2996
    %v3013 = vunpack.c.l.b16 %v2997
    %v3014 = vpack.c.b16 %v3007, %v3006
    %v3015 = vpack.c.b16 %v3009, %v3008
    %v3016 = vpack.c.b16 %v3011, %v3010
    %v3017 = vpack.c.b16 %v3013, %v3012
    %v3023 = vsel %vm1624, %v2982, 0
    %v3026 = vsel %vm1624, %v2983, 0
    %v3029 = vsel %vm1624, %v2984, 0
    %v3032 = vsel %vm1624, %v2985, 0
    %v3035 = vsel %vm1624, %v2986, 0
    %v3038 = vsel %vm1624, %v2987, 0
    %v3041 = vsel %vm1624, %v2988, 0
    %v3044 = vsel %vm1624, %v2989, 0
    %3046 = vmatpush.bf16.msra.mxu0 0
    %3047 = vmatpush.bf16.msra.mxu0 0
    %3048 = vmatpush.bf16.msra.mxu0 0
    %3049 = vmatpush.bf16.msra.mxu0 0
    %3050 = vmatpush.bf16.msra.mxu0 %v3017
    %3051 = vmatpush.bf16.msra.mxu0 %v3016
    %3052 = vmatpush.bf16.msra.mxu0 %v3015
    %3053 = vmatpush.bf16.msra.mxu0 %v3014
    %3054 = vmatmul.bf16.gmra.mxu0 %v3023
    %v3055 = vpop.f32.mrf.mxu0
    %v3056 = vadd.f32 0.0, %v3055
    %v3057 = vpop.f32.mrf.mxu0
    %v3058 = vadd.f32 0.0, %v3057
    %3059 = vmatmul.bf16.gmra.mxu0 %v3026
    %v3060 = vpop.f32.mrf.mxu0
    %v3061 = vadd.f32 0.0, %v3060
    %v3062 = vpop.f32.mrf.mxu0
    %v3063 = vadd.f32 0.0, %v3062
    %3064 = vmatmul.bf16.gmra.mxu0 %v3029
    %v3065 = vpop.f32.mrf.mxu0
    %v3066 = vadd.f32 0.0, %v3065
    %v3067 = vpop.f32.mrf.mxu0
    %v3068 = vadd.f32 0.0, %v3067
    %3069 = vmatmul.bf16.gmra.mxu0 %v3032
    %v3070 = vpop.f32.mrf.mxu0
    %v3071 = vadd.f32 0.0, %v3070
    %v3072 = vpop.f32.mrf.mxu0
    %v3073 = vadd.f32 0.0, %v3072
    %3074 = vmatmul.bf16.gmra.mxu0 %v3035
    %v3075 = vpop.f32.mrf.mxu0
    %v3076 = vadd.f32 0.0, %v3075
    %v3077 = vpop.f32.mrf.mxu0
    %v3078 = vadd.f32 0.0, %v3077
    %3079 = vmatmul.bf16.gmra.mxu0 %v3038
    %v3080 = vpop.f32.mrf.mxu0
    %v3081 = vadd.f32 0.0, %v3080
    %v3082 = vpop.f32.mrf.mxu0
    %v3083 = vadd.f32 0.0, %v3082
    %3084 = vmatmul.bf16.gmra.mxu0 %v3041
    %v3085 = vpop.f32.mrf.mxu0
    %v3086 = vadd.f32 0.0, %v3085
    %v3087 = vpop.f32.mrf.mxu0
    %v3088 = vadd.f32 0.0, %v3087
    %3089 = vmatmul.bf16.gmra.mxu0 %v3044
    %v3090 = vpop.f32.mrf.mxu0
    %v3091 = vadd.f32 0.0, %v3090
    %v3092 = vpop.f32.mrf.mxu0
    %v3093 = vadd.f32 0.0, %v3092
    %3094 = vdwg.mxu0
    %v3095 = vadd.f32 %v2918, %v3056
    %v3096 = vadd.f32 %v2919, %v3058
    %v3097 = vadd.f32 %v2920, %v3061
    %v3098 = vadd.f32 %v2921, %v3063
    %v3099 = vadd.f32 %v2922, %v3066
    %v3100 = vadd.f32 %v2923, %v3068
    %v3101 = vadd.f32 %v2924, %v3071
    %v3102 = vadd.f32 %v2925, %v3073
    %v3103 = vadd.f32 %v2926, %v3076
    %v3104 = vadd.f32 %v2927, %v3078
    %v3105 = vadd.f32 %v2928, %v3081
    %v3106 = vadd.f32 %v2929, %v3083
    %v3107 = vadd.f32 %v2930, %v3086
    %v3108 = vadd.f32 %v2931, %v3088
    %v3109 = vadd.f32 %v2932, %v3091
    %v3110 = vadd.f32 %v2933, %v3093
    %v3111 = vld [vmem:[%s8] sm:$0x1]
    %v3113 = vperm.slane %v3111, 0
    %v3115 = vadd.f32 %v3095, %v3113
    %v3116 = vadd.f32 %v3096, %v3113
    %v3117 = vadd.f32 %v3097, %v3113
    %v3118 = vadd.f32 %v3098, %v3113
    %v3119 = vadd.f32 %v3099, %v3113
    %v3120 = vadd.f32 %v3100, %v3113
    %v3121 = vadd.f32 %v3101, %v3113
    %v3122 = vadd.f32 %v3102, %v3113
    %v3123 = vadd.f32 %v3103, %v3113
    %v3124 = vadd.f32 %v3104, %v3113
    %v3125 = vadd.f32 %v3105, %v3113
    %v3126 = vadd.f32 %v3106, %v3113
    %v3127 = vadd.f32 %v3107, %v3113
    %v3128 = vadd.f32 %v3108, %v3113
    %v3129 = vadd.f32 %v3109, %v3113
    %v3130 = vadd.f32 %v3110, %v3113
    %v3131 = vrot.slane %v1546, 7
    %v3132 = vrot.slane %v1547, 7
    %v3133 = vrot.slane %v1548, 7
    %v3134 = vrot.slane %v1549, 7
    %v3135 = vrot.slane %v1550, 7
    %v3136 = vrot.slane %v1551, 7
    %v3137 = vrot.slane %v1552, 7
    %v3138 = vrot.slane %v1553, 7
    %v3139 = vrot.slane %v1554, 7
    %v3140 = vrot.slane %v1555, 7
    %v3141 = vrot.slane %v1556, 7
    %v3142 = vrot.slane %v1557, 7
    %v3143 = vrot.slane %v1558, 7
    %v3144 = vrot.slane %v1559, 7
    %v3145 = vrot.slane %v1560, 7
    %v3146 = vrot.slane %v1561, 7
    %v3147 = vsel %vm591, %v3145, %v3146
    %v3148 = vsel %vm591, %v3144, %v3145
    %v3149 = vsel %vm591, %v3143, %v3144
    %v3150 = vsel %vm591, %v3142, %v3143
    %v3151 = vsel %vm591, %v3141, %v3142
    %v3152 = vsel %vm591, %v3140, %v3141
    %v3153 = vsel %vm591, %v3139, %v3140
    %v3154 = vsel %vm591, %v3138, %v3139
    %v3155 = vsel %vm591, %v3137, %v3138
    %v3156 = vsel %vm591, %v3136, %v3137
    %v3157 = vsel %vm591, %v3135, %v3136
    %v3158 = vsel %vm591, %v3134, %v3135
    %v3159 = vsel %vm591, %v3133, %v3134
    %v3160 = vsel %vm591, %v3132, %v3133
    %v3161 = vsel %vm591, %v3131, %v3132
    %v3162 = vsel %vm591, %v3146, %v3131
    %v3163 = vsel %vm640, %v3162, %v1546
    %v3164 = vsel %vm641, %v3161, %v1547
    %v3165 = vsel %vm642, %v3160, %v1548
    %v3166 = vsel %vm643, %v3159, %v1549
    %v3167 = vsel %vm644, %v3158, %v1550
    %v3168 = vsel %vm645, %v3157, %v1551
    %v3169 = vsel %vm646, %v3156, %v1552
    %v3170 = vsel %vm647, %v3155, %v1553
    %v3171 = vsel %vm648, %v3154, %v1554
    %v3172 = vsel %vm649, %v3153, %v1555
    %v3173 = vsel %vm650, %v3152, %v1556
    %v3174 = vsel %vm651, %v3151, %v1557
    %v3175 = vsel %vm652, %v3150, %v1558
    %v3176 = vsel %vm653, %v3149, %v1559
    %v3177 = vsel %vm654, %v3148, %v1560
    %v3178 = vsel %vm655, %v3147, %v1561
    %v3179 = vmax.f32 %v3163, %v1546
    %v3180 = vmax.f32 %v3164, %v1547
    %v3181 = vmax.f32 %v3165, %v1548
    %v3182 = vmax.f32 %v3166, %v1549
    %v3183 = vmax.f32 %v3167, %v1550
    %v3184 = vmax.f32 %v3168, %v1551
    %v3185 = vmax.f32 %v3169, %v1552
    %v3186 = vmax.f32 %v3170, %v1553
    %v3187 = vmax.f32 %v3171, %v1554
    %v3188 = vmax.f32 %v3172, %v1555
    %v3189 = vmax.f32 %v3173, %v1556
    %v3190 = vmax.f32 %v3174, %v1557
    %v3191 = vmax.f32 %v3175, %v1558
    %v3192 = vmax.f32 %v3176, %v1559
    %v3193 = vmax.f32 %v3177, %v1560
    %v3194 = vmax.f32 %v3178, %v1561
    %v3195 = vrot.slane %v1546, 1
    %v3196 = vrot.slane %v1547, 1
    %v3197 = vrot.slane %v1548, 1
    %v3198 = vrot.slane %v1549, 1
    %v3199 = vrot.slane %v1550, 1
    %v3200 = vrot.slane %v1551, 1
    %v3201 = vrot.slane %v1552, 1
    %v3202 = vrot.slane %v1553, 1
    %v3203 = vrot.slane %v1554, 1
    %v3204 = vrot.slane %v1555, 1
    %v3205 = vrot.slane %v1556, 1
    %v3206 = vrot.slane %v1557, 1
    %v3207 = vrot.slane %v1558, 1
    %v3208 = vrot.slane %v1559, 1
    %v3209 = vrot.slane %v1560, 1
    %v3210 = vrot.slane %v1561, 1
    %v3211 = vsel %vm688, %v3209, %v3210
    %v3212 = vsel %vm688, %v3208, %v3209
    %v3213 = vsel %vm688, %v3207, %v3208
    %v3214 = vsel %vm688, %v3206, %v3207
    %v3215 = vsel %vm688, %v3205, %v3206
    %v3216 = vsel %vm688, %v3204, %v3205
    %v3217 = vsel %vm688, %v3203, %v3204
    %v3218 = vsel %vm688, %v3202, %v3203
    %v3219 = vsel %vm688, %v3201, %v3202
    %v3220 = vsel %vm688, %v3200, %v3201
    %v3221 = vsel %vm688, %v3199, %v3200
    %v3222 = vsel %vm688, %v3198, %v3199
    %v3223 = vsel %vm688, %v3197, %v3198
    %v3224 = vsel %vm688, %v3196, %v3197
    %v3225 = vsel %vm688, %v3195, %v3196
    %v3226 = vsel %vm688, %v3210, %v3195
    %v3227 = vsel %vm737, %v3225, %v1546
    %v3228 = vsel %vm738, %v3224, %v1547
    %v3229 = vsel %vm739, %v3223, %v1548
    %v3230 = vsel %vm740, %v3222, %v1549
    %v3231 = vsel %vm741, %v3221, %v1550
    %v3232 = vsel %vm742, %v3220, %v1551
    %v3233 = vsel %vm743, %v3219, %v1552
    %v3234 = vsel %vm744, %v3218, %v1553
    %v3235 = vsel %vm745, %v3217, %v1554
    %v3236 = vsel %vm746, %v3216, %v1555
    %v3237 = vsel %vm747, %v3215, %v1556
    %v3238 = vsel %vm748, %v3214, %v1557
    %v3239 = vsel %vm749, %v3213, %v1558
    %v3240 = vsel %vm750, %v3212, %v1559
    %v3241 = vsel %vm751, %v3211, %v1560
    %v3242 = vsel %vm752, %v3226, %v1561
    %v3243 = vmax.f32 %v3179, %v3227
    %v3244 = vmax.f32 %v3180, %v3228
    %v3245 = vmax.f32 %v3181, %v3229
    %v3246 = vmax.f32 %v3182, %v3230
    %v3247 = vmax.f32 %v3183, %v3231
    %v3248 = vmax.f32 %v3184, %v3232
    %v3249 = vmax.f32 %v3185, %v3233
    %v3250 = vmax.f32 %v3186, %v3234
    %v3251 = vmax.f32 %v3187, %v3235
    %v3252 = vmax.f32 %v3188, %v3236
    %v3253 = vmax.f32 %v3189, %v3237
    %v3254 = vmax.f32 %v3190, %v3238
    %v3255 = vmax.f32 %v3191, %v3239
    %v3256 = vmax.f32 %v3192, %v3240
    %v3257 = vmax.f32 %v3193, %v3241
    %v3258 = vmax.f32 %v3194, %v3242
    %v3259 = vpack.c.bf16 %v3244, %v3243
    %v3260 = vpack.c.bf16 %v3246, %v3245
    %v3261 = vpack.c.bf16 %v3248, %v3247
    %v3262 = vpack.c.bf16 %v3250, %v3249
    %v3263 = vpack.c.bf16 %v3252, %v3251
    %v3264 = vpack.c.bf16 %v3254, %v3253
    %v3265 = vpack.c.bf16 %v3256, %v3255
    %v3266 = vpack.c.bf16 %v3258, %v3257
    %v3267 = vld [vmem:[%s9] sm:$0xf]
    %v3268 = vld [vmem:[%s9 + $0x4] sm:$0xf]
    %v3269 = vld [vmem:[%s9 + $0x8] sm:$0xf]
    %v3270 = vld [vmem:[%s9 + $0xc] sm:$0xf]
    %v3271 = vld [vmem:[%s9 + $0x10] sm:$0xf]
    %v3272 = vld [vmem:[%s9 + $0x14] sm:$0xf]
    %v3273 = vld [vmem:[%s9 + $0x18] sm:$0xf]
    %v3274 = vld [vmem:[%s9 + $0x1c] sm:$0xf]
    %v3275 = vld [vmem:[%s10] sm:$0x1]
    %v3277 = vperm.slane %v3275, 0
    %v3287 = vunpack.c.l.b16 %v3267
    %v3288 = vunpack.c.l.b16 %v3268
    %v3289 = vunpack.c.l.b16 %v3269
    %v3290 = vunpack.c.l.b16 %v3270
    %v3291 = vunpack.c.l.b16 %v3271
    %v3292 = vunpack.c.l.b16 %v3272
    %v3293 = vunpack.c.l.b16 %v3273
    %v3294 = vunpack.c.l.b16 %v3274
    %v3295 = vpack.c.b16 %v3288, %v3287
    %v3296 = vpack.c.b16 %v3290, %v3289
    %v3297 = vpack.c.b16 %v3292, %v3291
    %v3298 = vpack.c.b16 %v3294, %v3293
    %v3304 = vsel %vm1624, %v3259, 0
    %v3307 = vsel %vm1624, %v3260, 0
    %v3310 = vsel %vm1624, %v3261, 0
    %v3313 = vsel %vm1624, %v3262, 0
    %v3316 = vsel %vm1624, %v3263, 0
    %v3319 = vsel %vm1624, %v3264, 0
    %v3322 = vsel %vm1624, %v3265, 0
    %v3325 = vsel %vm1624, %v3266, 0
    %3327 = vmatpush.bf16.msra.mxu0 0
    %3328 = vmatpush.bf16.msra.mxu0 0
    %3329 = vmatpush.bf16.msra.mxu0 0
    %3330 = vmatpush.bf16.msra.mxu0 0
    %3331 = vmatpush.bf16.msra.mxu0 %v3298
    %3332 = vmatpush.bf16.msra.mxu0 %v3297
    %3333 = vmatpush.bf16.msra.mxu0 %v3296
    %3334 = vmatpush.bf16.msra.mxu0 %v3295
    %3335 = vmatmul.bf16.gmra.mxu0 %v3304
    %v3336 = vpop.f32.mrf.mxu0
    %v3337 = vadd.f32 %v3277, %v3336
    %v3338 = vpop.f32.mrf.mxu0
    %v3339 = vadd.f32 %v3277, %v3338
    %3340 = vmatmul.bf16.gmra.mxu0 %v3307
    %v3341 = vpop.f32.mrf.mxu0
    %v3342 = vadd.f32 %v3277, %v3341
    %v3343 = vpop.f32.mrf.mxu0
    %v3344 = vadd.f32 %v3277, %v3343
    %3345 = vmatmul.bf16.gmra.mxu0 %v3310
    %v3346 = vpop.f32.mrf.mxu0
    %v3347 = vadd.f32 %v3277, %v3346
    %v3348 = vpop.f32.mrf.mxu0
    %v3349 = vadd.f32 %v3277, %v3348
    %3350 = vmatmul.bf16.gmra.mxu0 %v3313
    %v3351 = vpop.f32.mrf.mxu0
    %v3352 = vadd.f32 %v3277, %v3351
    %v3353 = vpop.f32.mrf.mxu0
    %v3354 = vadd.f32 %v3277, %v3353
    %3355 = vmatmul.bf16.gmra.mxu0 %v3316
    %v3356 = vpop.f32.mrf.mxu0
    %v3357 = vadd.f32 %v3277, %v3356
    %v3358 = vpop.f32.mrf.mxu0
    %v3359 = vadd.f32 %v3277, %v3358
    %3360 = vmatmul.bf16.gmra.mxu0 %v3319
    %v3361 = vpop.f32.mrf.mxu0
    %v3362 = vadd.f32 %v3277, %v3361
    %v3363 = vpop.f32.mrf.mxu0
    %v3364 = vadd.f32 %v3277, %v3363
    %3365 = vmatmul.bf16.gmra.mxu0 %v3322
    %v3366 = vpop.f32.mrf.mxu0
    %v3367 = vadd.f32 %v3277, %v3366
    %v3368 = vpop.f32.mrf.mxu0
    %v3369 = vadd.f32 %v3277, %v3368
    %3370 = vmatmul.bf16.gmra.mxu0 %v3325
    %v3371 = vpop.f32.mrf.mxu0
    %v3372 = vadd.f32 %v3277, %v3371
    %v3373 = vpop.f32.mrf.mxu0
    %v3374 = vadd.f32 %v3277, %v3373
    %3375 = vdwg.mxu0
    %3392 = vrot.lane.b32.xlu0 %v2290, 64
    %v3393 = vpop.permute.xlu0 %3392
    %3394 = vrot.lane.b32.xlu0 %v2291, 64
    %v3395 = vpop.permute.xlu0 %3394
    %3396 = vrot.lane.b32.xlu0 %v2292, 64
    %v3397 = vpop.permute.xlu0 %3396
    %3398 = vrot.lane.b32.xlu0 %v2293, 64
    %v3399 = vpop.permute.xlu0 %3398
    %3400 = vrot.lane.b32.xlu0 %v2294, 64
    %v3401 = vpop.permute.xlu0 %3400
    %3402 = vrot.lane.b32.xlu0 %v2295, 64
    %v3403 = vpop.permute.xlu0 %3402
    %3404 = vrot.lane.b32.xlu0 %v2296, 64
    %v3405 = vpop.permute.xlu0 %3404
    %3406 = vrot.lane.b32.xlu0 %v2297, 64
    %v3407 = vpop.permute.xlu0 %3406
    %3408 = vrot.lane.b32.xlu0 %v2298, 64
    %v3409 = vpop.permute.xlu0 %3408
    %3410 = vrot.lane.b32.xlu0 %v2299, 64
    %v3411 = vpop.permute.xlu0 %3410
    %3412 = vrot.lane.b32.xlu0 %v2300, 64
    %v3413 = vpop.permute.xlu0 %3412
    %3414 = vrot.lane.b32.xlu0 %v2301, 64
    %v3415 = vpop.permute.xlu0 %3414
    %3416 = vrot.lane.b32.xlu0 %v2302, 64
    %v3417 = vpop.permute.xlu0 %3416
    %3418 = vrot.lane.b32.xlu0 %v2303, 64
    %v3419 = vpop.permute.xlu0 %3418
    %3420 = vrot.lane.b32.xlu0 %v2304, 64
    %v3421 = vpop.permute.xlu0 %3420
    %3422 = vrot.lane.b32.xlu0 %v2305, 64
    %v3423 = vpop.permute.xlu0 %3422
    %3456 = vrot.lane.b32.xlu0 %v3337, 64
    %v3457 = vpop.permute.xlu0 %3456
    %3458 = vrot.lane.b32.xlu0 %v3339, 64
    %v3459 = vpop.permute.xlu0 %3458
    %3460 = vrot.lane.b32.xlu0 %v3342, 64
    %v3461 = vpop.permute.xlu0 %3460
    %3462 = vrot.lane.b32.xlu0 %v3344, 64
    %v3463 = vpop.permute.xlu0 %3462
    %3464 = vrot.lane.b32.xlu0 %v3347, 64
    %v3465 = vpop.permute.xlu0 %3464
    %3466 = vrot.lane.b32.xlu0 %v3349, 64
    %v3467 = vpop.permute.xlu0 %3466
    %3468 = vrot.lane.b32.xlu0 %v3352, 64
    %v3469 = vpop.permute.xlu0 %3468
    %3470 = vrot.lane.b32.xlu0 %v3354, 64
    %v3471 = vpop.permute.xlu0 %3470
    %3472 = vrot.lane.b32.xlu0 %v3357, 64
    %v3473 = vpop.permute.xlu0 %3472
    %3474 = vrot.lane.b32.xlu0 %v3359, 64
    %v3475 = vpop.permute.xlu0 %3474
    %3476 = vrot.lane.b32.xlu0 %v3362, 64
    %v3477 = vpop.permute.xlu0 %3476
    %3478 = vrot.lane.b32.xlu0 %v3364, 64
    %v3479 = vpop.permute.xlu0 %3478
    %3480 = vrot.lane.b32.xlu0 %v3367, 64
    %v3481 = vpop.permute.xlu0 %3480
    %3482 = vrot.lane.b32.xlu0 %v3369, 64
    %v3483 = vpop.permute.xlu0 %3482
    %3484 = vrot.lane.b32.xlu0 %v3372, 64
    %v3485 = vpop.permute.xlu0 %3484
    %3486 = vrot.lane.b32.xlu0 %v3374, 64
    %v3487 = vpop.permute.xlu0 %3486
    %v3504 = vsel %vm1624, %v1659, %v3393
    %v3505 = vsel %vm1624, %v1661, %v3395
    %v3506 = vsel %vm1624, %v1664, %v3397
    %v3507 = vsel %vm1624, %v1666, %v3399
    %v3508 = vsel %vm1624, %v1669, %v3401
    %v3509 = vsel %vm1624, %v1671, %v3403
    %v3510 = vsel %vm1624, %v1674, %v3405
    %v3511 = vsel %vm1624, %v1676, %v3407
    %v3512 = vsel %vm1624, %v1679, %v3409
    %v3513 = vsel %vm1624, %v1681, %v3411
    %v3514 = vsel %vm1624, %v1684, %v3413
    %v3515 = vsel %vm1624, %v1686, %v3415
    %v3516 = vsel %vm1624, %v1689, %v3417
    %v3517 = vsel %vm1624, %v1691, %v3419
    %v3518 = vsel %vm1624, %v1694, %v3421
    %v3519 = vsel %vm1624, %v1696, %v3423
    %v3520 = vsel %vm1624, %v3115, %v3457
    %v3521 = vsel %vm1624, %v3116, %v3459
    %v3522 = vsel %vm1624, %v3117, %v3461
    %v3523 = vsel %vm1624, %v3118, %v3463
    %v3524 = vsel %vm1624, %v3119, %v3465
    %v3525 = vsel %vm1624, %v3120, %v3467
    %v3526 = vsel %vm1624, %v3121, %v3469
    %v3527 = vsel %vm1624, %v3122, %v3471
    %v3528 = vsel %vm1624, %v3123, %v3473
    %v3529 = vsel %vm1624, %v3124, %v3475
    %v3530 = vsel %vm1624, %v3125, %v3477
    %v3531 = vsel %vm1624, %v3126, %v3479
    %v3532 = vsel %vm1624, %v3127, %v3481
    %v3533 = vsel %vm1624, %v3128, %v3483
    %v3534 = vsel %vm1624, %v3129, %v3485
    %v3535 = vsel %vm1624, %v3130, %v3487
    %v3536 = vpack.c.bf16 %v3505, %v3504
    %v3537 = vpack.c.bf16 %v3521, %v3520
    %v3538 = vpack.c.bf16 %v3507, %v3506
    %v3539 = vpack.c.bf16 %v3523, %v3522
    %v3540 = vpack.c.bf16 %v3509, %v3508
    %v3541 = vpack.c.bf16 %v3525, %v3524
    %v3542 = vpack.c.bf16 %v3511, %v3510
    %v3543 = vpack.c.bf16 %v3527, %v3526
    %v3544 = vpack.c.bf16 %v3513, %v3512
    %v3545 = vpack.c.bf16 %v3529, %v3528
    %v3546 = vpack.c.bf16 %v3515, %v3514
    %v3547 = vpack.c.bf16 %v3531, %v3530
    %v3548 = vpack.c.bf16 %v3517, %v3516
    %v3549 = vpack.c.bf16 %v3533, %v3532
    %v3550 = vpack.c.bf16 %v3519, %v3518
    %v3551 = vpack.c.bf16 %v3535, %v3534
    %v3552 = vld [vmem:[%s11] sm:$0xff]
    %v3553 = vld [vmem:[%s11 + $0x8] sm:$0xf]
    %v3554 = vld [vmem:[%s11 + $0xc] sm:$0xff]
    %v3555 = vld [vmem:[%s11 + $0x14] sm:$0xf]
    %v3556 = vld [vmem:[%s11 + $0x18] sm:$0xff]
    %v3557 = vld [vmem:[%s11 + $0x20] sm:$0xf]
    %v3558 = vld [vmem:[%s11 + $0x24] sm:$0xff]
    %v3559 = vld [vmem:[%s11 + $0x2c] sm:$0xf]
    %v3560 = vld [vmem:[%s11 + $0x30] sm:$0xff]
    %v3561 = vld [vmem:[%s11 + $0x38] sm:$0xf]
    %v3562 = vld [vmem:[%s11 + $0x3c] sm:$0xff]
    %v3563 = vld [vmem:[%s11 + $0x44] sm:$0xf]
    %v3564 = vld [vmem:[%s11 + $0x48] sm:$0xff]
    %v3565 = vld [vmem:[%s11 + $0x50] sm:$0xf]
    %v3566 = vld [vmem:[%s11 + $0x54] sm:$0xff]
    %v3567 = vld [vmem:[%s11 + $0x5c] sm:$0xf]
    %v3568 = vld [vmem:[%s11 + $0x60] sm:$0xff]
    %v3569 = vld [vmem:[%s11 + $0x68] sm:$0xf]
    %v3570 = vld [vmem:[%s11 + $0x6c] sm:$0xff]
    %v3571 = vld [vmem:[%s11 + $0x74] sm:$0xf]
    %v3572 = vld [vmem:[%s11 + $0x78] sm:$0xff]
    %v3573 = vld [vmem:[%s11 + $0x80] sm:$0xf]
    %v3574 = vld [vmem:[%s11 + $0x84] sm:$0xff]
    %v3575 = vld [vmem:[%s11 + $0x8c] sm:$0xf]
    %v3576 = vld [vmem:[%s11 + $0x90] sm:$0xff]
    %v3577 = vld [vmem:[%s11 + $0x98] sm:$0xf]
    %v3578 = vld [vmem:[%s11 + $0x9c] sm:$0xff]
    %v3579 = vld [vmem:[%s11 + $0xa4] sm:$0xf]
    %v3580 = vld [vmem:[%s11 + $0xa8] sm:$0xff]
    %v3581 = vld [vmem:[%s11 + $0xb0] sm:$0xf]
    %v3582 = vld [vmem:[%s11 + $0xb4] sm:$0xff]
    %v3583 = vld [vmem:[%s11 + $0xbc] sm:$0xf]
    %v3584 = vld [vmem:[%s11 + $0xc0] sm:$0xff]
    %v3585 = vld [vmem:[%s11 + $0xc8] sm:$0xf]
    %v3586 = vld [vmem:[%s11 + $0xcc] sm:$0xff]
    %v3587 = vld [vmem:[%s11 + $0xd4] sm:$0xf]
    %v3588 = vld [vmem:[%s11 + $0xd8] sm:$0xff]
    %v3589 = vld [vmem:[%s11 + $0xe0] sm:$0xf]
    %v3590 = vld [vmem:[%s11 + $0xe4] sm:$0xff]
    %v3591 = vld [vmem:[%s11 + $0xec] sm:$0xf]
    %v3592 = vld [vmem:[%s11 + $0xf0] sm:$0xff]
    %v3593 = vld [vmem:[%s11 + $0xf8] sm:$0xf]
    %v3594 = vld [vmem:[%s11 + $0xfc] sm:$0xff]
    %v3595 = vld [vmem:[%s11 + $0x104] sm:$0xf]
    %v3596 = vld [vmem:[%s11 + $0x108] sm:$0xff]
    %v3597 = vld [vmem:[%s11 + $0x110] sm:$0xf]
    %v3598 = vld [vmem:[%s11 + $0x114] sm:$0xff]
    %v3599 = vld [vmem:[%s11 + $0x11c] sm:$0xf]
    %v3600 = vld [vmem:[%s11 + $0x120] sm:$0xff]
    %v3601 = vld [vmem:[%s11 + $0x128] sm:$0xf]
    %v3602 = vld [vmem:[%s11 + $0x12c] sm:$0xff]
    %v3603 = vld [vmem:[%s11 + $0x134] sm:$0xf]
    %v3604 = vld [vmem:[%s11 + $0x138] sm:$0xff]
    %v3605 = vld [vmem:[%s11 + $0x140] sm:$0xf]
    %v3606 = vld [vmem:[%s11 + $0x144] sm:$0xff]
    %v3607 = vld [vmem:[%s11 + $0x14c] sm:$0xf]
    %v3608 = vld [vmem:[%s11 + $0x150] sm:$0xff]
    %v3609 = vld [vmem:[%s11 + $0x158] sm:$0xf]
    %v3610 = vld [vmem:[%s11 + $0x15c] sm:$0xff]
    %v3611 = vld [vmem:[%s11 + $0x164] sm:$0xf]
    %v3612 = vld [vmem:[%s11 + $0x168] sm:$0xff]
    %v3613 = vld [vmem:[%s11 + $0x170] sm:$0xf]
    %v3614 = vld [vmem:[%s11 + $0x174] sm:$0xff]
    %v3615 = vld [vmem:[%s11 + $0x17c] sm:$0xf]
    %v3616 = vld [vmem:[%s12] sm:$0x7]
    %v3618 = vperm.slane %v3616, 0
    %v3619 = vperm.slane %v3616, 1
    %v3620 = vperm.slane %v3616, 2
    %v3688 = vunpack.c.l.b16 %v3552
    %v3689 = vunpack.c.h.b16 %v3552
    %v3690 = vunpack.c.l.b16 %v3553
    %v3691 = vunpack.c.l.b16 %v3554
    %v3692 = vunpack.c.h.b16 %v3554
    %v3693 = vunpack.c.l.b16 %v3555
    %v3694 = vunpack.c.l.b16 %v3556
    %v3695 = vunpack.c.h.b16 %v3556
    %v3696 = vunpack.c.l.b16 %v3557
    %v3697 = vunpack.c.l.b16 %v3558
    %v3698 = vunpack.c.h.b16 %v3558
    %v3699 = vunpack.c.l.b16 %v3559
    %v3700 = vunpack.c.l.b16 %v3560
    %v3701 = vunpack.c.h.b16 %v3560
    %v3702 = vunpack.c.l.b16 %v3561
    %v3703 = vunpack.c.l.b16 %v3562
    %v3704 = vunpack.c.h.b16 %v3562
    %v3705 = vunpack.c.l.b16 %v3563
    %v3706 = vunpack.c.l.b16 %v3564
    %v3707 = vunpack.c.h.b16 %v3564
    %v3708 = vunpack.c.l.b16 %v3565
    %v3709 = vunpack.c.l.b16 %v3566
    %v3710 = vunpack.c.h.b16 %v3566
    %v3711 = vunpack.c.l.b16 %v3567
    %v3712 = vunpack.c.l.b16 %v3568
    %v3713 = vunpack.c.h.b16 %v3568
    %v3714 = vunpack.c.l.b16 %v3569
    %v3715 = vunpack.c.l.b16 %v3570
    %v3716 = vunpack.c.h.b16 %v3570
    %v3717 = vunpack.c.l.b16 %v3571
    %v3718 = vunpack.c.l.b16 %v3572
    %v3719 = vunpack.c.h.b16 %v3572
    %v3720 = vunpack.c.l.b16 %v3573
    %v3721 = vunpack.c.l.b16 %v3574
    %v3722 = vunpack.c.h.b16 %v3574
    %v3723 = vunpack.c.l.b16 %v3575
    %v3724 = vunpack.c.l.b16 %v3576
    %v3725 = vunpack.c.h.b16 %v3576
    %v3726 = vunpack.c.l.b16 %v3577
    %v3727 = vunpack.c.l.b16 %v3578
    %v3728 = vunpack.c.h.b16 %v3578
    %v3729 = vunpack.c.l.b16 %v3579
    %v3730 = vunpack.c.l.b16 %v3580
    %v3731 = vunpack.c.h.b16 %v3580
    %v3732 = vunpack.c.l.b16 %v3581
    %v3733 = vunpack.c.l.b16 %v3582
    %v3734 = vunpack.c.h.b16 %v3582
    %v3735 = vunpack.c.l.b16 %v3583
    %v3736 = vunpack.c.l.b16 %v3584
    %v3737 = vunpack.c.h.b16 %v3584
    %v3738 = vunpack.c.l.b16 %v3585
    %v3739 = vunpack.c.l.b16 %v3586
    %v3740 = vunpack.c.h.b16 %v3586
    %v3741 = vunpack.c.l.b16 %v3587
    %v3742 = vunpack.c.l.b16 %v3588
    %v3743 = vunpack.c.h.b16 %v3588
    %v3744 = vunpack.c.l.b16 %v3589
    %v3745 = vunpack.c.l.b16 %v3590
    %v3746 = vunpack.c.h.b16 %v3590
    %v3747 = vunpack.c.l.b16 %v3591
    %v3748 = vunpack.c.l.b16 %v3592
    %v3749 = vunpack.c.h.b16 %v3592
    %v3750 = vunpack.c.l.b16 %v3593
    %v3751 = vunpack.c.l.b16 %v3594
    %v3752 = vunpack.c.h.b16 %v3594
    %v3753 = vunpack.c.l.b16 %v3595
    %v3754 = vunpack.c.l.b16 %v3596
    %v3755 = vunpack.c.h.b16 %v3596
    %v3756 = vunpack.c.l.b16 %v3597
    %v3757 = vunpack.c.l.b16 %v3598
    %v3758 = vunpack.c.h.b16 %v3598
    %v3759 = vunpack.c.l.b16 %v3599
    %v3760 = vunpack.c.l.b16 %v3600
    %v3761 = vunpack.c.h.b16 %v3600
    %v3762 = vunpack.c.l.b16 %v3601
    %v3763 = vunpack.c.l.b16 %v3602
    %v3764 = vunpack.c.h.b16 %v3602
    %v3765 = vunpack.c.l.b16 %v3603
    %v3766 = vunpack.c.l.b16 %v3604
    %v3767 = vunpack.c.h.b16 %v3604
    %v3768 = vunpack.c.l.b16 %v3605
    %v3769 = vunpack.c.l.b16 %v3606
    %v3770 = vunpack.c.h.b16 %v3606
    %v3771 = vunpack.c.l.b16 %v3607
    %v3772 = vunpack.c.l.b16 %v3608
    %v3773 = vunpack.c.h.b16 %v3608
    %v3774 = vunpack.c.l.b16 %v3609
    %v3775 = vunpack.c.l.b16 %v3610
    %v3776 = vunpack.c.h.b16 %v3610
    %v3777 = vunpack.c.l.b16 %v3611
    %v3778 = vunpack.c.l.b16 %v3612
    %v3779 = vunpack.c.h.b16 %v3612
    %v3780 = vunpack.c.l.b16 %v3613
    %v3781 = vunpack.c.l.b16 %v3614
    %v3782 = vunpack.c.h.b16 %v3614
    %v3783 = vunpack.c.l.b16 %v3615
    %v3784 = vpack.c.b16 %v3691, %v3688
    %v3785 = vpack.c.b16 %v3692, %v3689
    %v3786 = vpack.c.b16 %v3693, %v3690
    %v3787 = vpack.c.b16 %v3697, %v3694
    %v3788 = vpack.c.b16 %v3698, %v3695
    %v3789 = vpack.c.b16 %v3699, %v3696
    %v3790 = vpack.c.b16 %v3703, %v3700
    %v3791 = vpack.c.b16 %v3704, %v3701
    %v3792 = vpack.c.b16 %v3705, %v3702
    %v3793 = vpack.c.b16 %v3709, %v3706
    %v3794 = vpack.c.b16 %v3710, %v3707
    %v3795 = vpack.c.b16 %v3711, %v3708
    %v3796 = vpack.c.b16 %v3715, %v3712
    %v3797 = vpack.c.b16 %v3716, %v3713
    %v3798 = vpack.c.b16 %v3717, %v3714
    %v3799 = vpack.c.b16 %v3721, %v3718
    %v3800 = vpack.c.b16 %v3722, %v3719
    %v3801 = vpack.c.b16 %v3723, %v3720
    %v3802 = vpack.c.b16 %v3727, %v3724
    %v3803 = vpack.c.b16 %v3728, %v3725
    %v3804 = vpack.c.b16 %v3729, %v3726
    %v3805 = vpack.c.b16 %v3733, %v3730
    %v3806 = vpack.c.b16 %v3734, %v3731
    %v3807 = vpack.c.b16 %v3735, %v3732
    %v3808 = vpack.c.b16 %v3739, %v3736
    %v3809 = vpack.c.b16 %v3740, %v3737
    %v3810 = vpack.c.b16 %v3741, %v3738
    %v3811 = vpack.c.b16 %v3745, %v3742
    %v3812 = vpack.c.b16 %v3746, %v3743
    %v3813 = vpack.c.b16 %v3747, %v3744
    %v3814 = vpack.c.b16 %v3751, %v3748
    %v3815 = vpack.c.b16 %v3752, %v3749
    %v3816 = vpack.c.b16 %v3753, %v3750
    %v3817 = vpack.c.b16 %v3757, %v3754
    %v3818 = vpack.c.b16 %v3758, %v3755
    %v3819 = vpack.c.b16 %v3759, %v3756
    %v3820 = vpack.c.b16 %v3763, %v3760
    %v3821 = vpack.c.b16 %v3764, %v3761
    %v3822 = vpack.c.b16 %v3765, %v3762
    %v3823 = vpack.c.b16 %v3769, %v3766
    %v3824 = vpack.c.b16 %v3770, %v3767
    %v3825 = vpack.c.b16 %v3771, %v3768
    %v3826 = vpack.c.b16 %v3775, %v3772
    %v3827 = vpack.c.b16 %v3776, %v3773
    %v3828 = vpack.c.b16 %v3777, %v3774
    %v3829 = vpack.c.b16 %v3781, %v3778
    %v3830 = vpack.c.b16 %v3782, %v3779
    %v3831 = vpack.c.b16 %v3783, %v3780
    %3880 = vmatpush.bf16.msra.mxu0 %v3805
    %3881 = vmatpush.bf16.msra.mxu0 %v3802
    %3882 = vmatpush.bf16.msra.mxu0 %v3799
    %3883 = vmatpush.bf16.msra.mxu0 %v3796
    %3884 = vmatpush.bf16.msra.mxu0 %v3793
    %3885 = vmatpush.bf16.msra.mxu0 %v3790
    %3886 = vmatpush.bf16.msra.mxu0 %v3787
    %3887 = vmatpush.bf16.msra.mxu0 %v3784
    %3888 = vmatmul.bf16.gmra.mxu0 %v3536
    %v3889 = vpop.f32.mrf.mxu0
    %v3890 = vadd.f32 %v3618, %v3889
    %v3891 = vpop.f32.mrf.mxu0
    %v3892 = vadd.f32 %v3618, %v3891
    %3893 = vmatmul.bf16.gmra.mxu0 %v3538
    %v3894 = vpop.f32.mrf.mxu0
    %v3895 = vadd.f32 %v3618, %v3894
    %v3896 = vpop.f32.mrf.mxu0
    %v3897 = vadd.f32 %v3618, %v3896
    %3898 = vmatmul.bf16.gmra.mxu0 %v3540
    %v3899 = vpop.f32.mrf.mxu0
    %v3900 = vadd.f32 %v3618, %v3899
    %v3901 = vpop.f32.mrf.mxu0
    %v3902 = vadd.f32 %v3618, %v3901
    %3903 = vmatmul.bf16.gmra.mxu0 %v3542
    %v3904 = vpop.f32.mrf.mxu0
    %v3905 = vadd.f32 %v3618, %v3904
    %v3906 = vpop.f32.mrf.mxu0
    %v3907 = vadd.f32 %v3618, %v3906
    %3908 = vmatmul.bf16.gmra.mxu0 %v3544
    %v3909 = vpop.f32.mrf.mxu0
    %v3910 = vadd.f32 %v3618, %v3909
    %v3911 = vpop.f32.mrf.mxu0
    %v3912 = vadd.f32 %v3618, %v3911
    %3913 = vmatmul.bf16.gmra.mxu0 %v3546
    %v3914 = vpop.f32.mrf.mxu0
    %v3915 = vadd.f32 %v3618, %v3914
    %v3916 = vpop.f32.mrf.mxu0
    %v3917 = vadd.f32 %v3618, %v3916
    %3918 = vmatmul.bf16.gmra.mxu0 %v3548
    %v3919 = vpop.f32.mrf.mxu0
    %v3920 = vadd.f32 %v3618, %v3919
    %v3921 = vpop.f32.mrf.mxu0
    %v3922 = vadd.f32 %v3618, %v3921
    %3923 = vmatmul.bf16.gmra.mxu0 %v3550
    %v3924 = vpop.f32.mrf.mxu0
    %v3925 = vadd.f32 %v3618, %v3924
    %v3926 = vpop.f32.mrf.mxu0
    %v3927 = vadd.f32 %v3618, %v3926
    %3928 = vdwg.mxu0
    %3929 = vmatpush.bf16.msra.mxu0 %v3829
    %3930 = vmatpush.bf16.msra.mxu0 %v3826
    %3931 = vmatpush.bf16.msra.mxu0 %v3823
    %3932 = vmatpush.bf16.msra.mxu0 %v3820
    %3933 = vmatpush.bf16.msra.mxu0 %v3817
    %3934 = vmatpush.bf16.msra.mxu0 %v3814
    %3935 = vmatpush.bf16.msra.mxu0 %v3811
    %3936 = vmatpush.bf16.msra.mxu0 %v3808
    %3937 = vmatmul.bf16.gmra.mxu0 %v3537
    %v3938 = vpop.f32.mrf.mxu0
    %v3939 = vadd.f32 %v3890, %v3938
    %v3940 = vpop.f32.mrf.mxu0
    %v3941 = vadd.f32 %v3892, %v3940
    %3942 = vmatmul.bf16.gmra.mxu0 %v3539
    %v3943 = vpop.f32.mrf.mxu0
    %v3944 = vadd.f32 %v3895, %v3943
    %v3945 = vpop.f32.mrf.mxu0
    %v3946 = vadd.f32 %v3897, %v3945
    %3947 = vmatmul.bf16.gmra.mxu0 %v3541
    %v3948 = vpop.f32.mrf.mxu0
    %v3949 = vadd.f32 %v3900, %v3948
    %v3950 = vpop.f32.mrf.mxu0
    %v3951 = vadd.f32 %v3902, %v3950
    %3952 = vmatmul.bf16.gmra.mxu0 %v3543
    %v3953 = vpop.f32.mrf.mxu0
    %v3954 = vadd.f32 %v3905, %v3953
    %v3955 = vpop.f32.mrf.mxu0
    %v3956 = vadd.f32 %v3907, %v3955
    %3957 = vmatmul.bf16.gmra.mxu0 %v3545
    %v3958 = vpop.f32.mrf.mxu0
    %v3959 = vadd.f32 %v3910, %v3958
    %v3960 = vpop.f32.mrf.mxu0
    %v3961 = vadd.f32 %v3912, %v3960
    %3962 = vmatmul.bf16.gmra.mxu0 %v3547
    %v3963 = vpop.f32.mrf.mxu0
    %v3964 = vadd.f32 %v3915, %v3963
    %v3965 = vpop.f32.mrf.mxu0
    %v3966 = vadd.f32 %v3917, %v3965
    %3967 = vmatmul.bf16.gmra.mxu0 %v3549
    %v3968 = vpop.f32.mrf.mxu0
    %v3969 = vadd.f32 %v3920, %v3968
    %v3970 = vpop.f32.mrf.mxu0
    %v3971 = vadd.f32 %v3922, %v3970
    %3972 = vmatmul.bf16.gmra.mxu0 %v3551
    %v3973 = vpop.f32.mrf.mxu0
    %v3974 = vadd.f32 %v3925, %v3973
    %v3975 = vpop.f32.mrf.mxu0
    %v3976 = vadd.f32 %v3927, %v3975
    %3977 = vdwg.mxu0
    %3978 = vmatpush.bf16.msra.mxu0 %v3806
    %3979 = vmatpush.bf16.msra.mxu0 %v3803
    %3980 = vmatpush.bf16.msra.mxu0 %v3800
    %3981 = vmatpush.bf16.msra.mxu0 %v3797
    %3982 = vmatpush.bf16.msra.mxu0 %v3794
    %3983 = vmatpush.bf16.msra.mxu0 %v3791
    %3984 = vmatpush.bf16.msra.mxu0 %v3788
    %3985 = vmatpush.bf16.msra.mxu0 %v3785
    %3986 = vmatmul.bf16.gmra.mxu0 %v3536
    %v3987 = vpop.f32.mrf.mxu0
    %v3988 = vadd.f32 %v3619, %v3987
    %v3989 = vpop.f32.mrf.mxu0
    %v3990 = vadd.f32 %v3619, %v3989
    %3991 = vmatmul.bf16.gmra.mxu0 %v3538
    %v3992 = vpop.f32.mrf.mxu0
    %v3993 = vadd.f32 %v3619, %v3992
    %v3994 = vpop.f32.mrf.mxu0
    %v3995 = vadd.f32 %v3619, %v3994
    %3996 = vmatmul.bf16.gmra.mxu0 %v3540
    %v3997 = vpop.f32.mrf.mxu0
    %v3998 = vadd.f32 %v3619, %v3997
    %v3999 = vpop.f32.mrf.mxu0
    %v4000 = vadd.f32 %v3619, %v3999
    %4001 = vmatmul.bf16.gmra.mxu0 %v3542
    %v4002 = vpop.f32.mrf.mxu0
    %v4003 = vadd.f32 %v3619, %v4002
    %v4004 = vpop.f32.mrf.mxu0
    %v4005 = vadd.f32 %v3619, %v4004
    %4006 = vmatmul.bf16.gmra.mxu0 %v3544
    %v4007 = vpop.f32.mrf.mxu0
    %v4008 = vadd.f32 %v3619, %v4007
    %v4009 = vpop.f32.mrf.mxu0
    %v4010 = vadd.f32 %v3619, %v4009
    %4011 = vmatmul.bf16.gmra.mxu0 %v3546
    %v4012 = vpop.f32.mrf.mxu0
    %v4013 = vadd.f32 %v3619, %v4012
    %v4014 = vpop.f32.mrf.mxu0
    %v4015 = vadd.f32 %v3619, %v4014
    %4016 = vmatmul.bf16.gmra.mxu0 %v3548
    %v4017 = vpop.f32.mrf.mxu0
    %v4018 = vadd.f32 %v3619, %v4017
    %v4019 = vpop.f32.mrf.mxu0
    %v4020 = vadd.f32 %v3619, %v4019
    %4021 = vmatmul.bf16.gmra.mxu0 %v3550
    %v4022 = vpop.f32.mrf.mxu0
    %v4023 = vadd.f32 %v3619, %v4022
    %v4024 = vpop.f32.mrf.mxu0
    %v4025 = vadd.f32 %v3619, %v4024
    %4026 = vdwg.mxu0
    %4027 = vmatpush.bf16.msra.mxu0 %v3830
    %4028 = vmatpush.bf16.msra.mxu0 %v3827
    %4029 = vmatpush.bf16.msra.mxu0 %v3824
    %4030 = vmatpush.bf16.msra.mxu0 %v3821
    %4031 = vmatpush.bf16.msra.mxu0 %v3818
    %4032 = vmatpush.bf16.msra.mxu0 %v3815
    %4033 = vmatpush.bf16.msra.mxu0 %v3812
    %4034 = vmatpush.bf16.msra.mxu0 %v3809
    %4035 = vmatmul.bf16.gmra.mxu0 %v3537
    %v4036 = vpop.f32.mrf.mxu0
    %v4037 = vadd.f32 %v3988, %v4036
    %v4038 = vpop.f32.mrf.mxu0
    %v4039 = vadd.f32 %v3990, %v4038
    %4040 = vmatmul.bf16.gmra.mxu0 %v3539
    %v4041 = vpop.f32.mrf.mxu0
    %v4042 = vadd.f32 %v3993, %v4041
    %v4043 = vpop.f32.mrf.mxu0
    %v4044 = vadd.f32 %v3995, %v4043
    %4045 = vmatmul.bf16.gmra.mxu0 %v3541
    %v4046 = vpop.f32.mrf.mxu0
    %v4047 = vadd.f32 %v3998, %v4046
    %v4048 = vpop.f32.mrf.mxu0
    %v4049 = vadd.f32 %v4000, %v4048
    %4050 = vmatmul.bf16.gmra.mxu0 %v3543
    %v4051 = vpop.f32.mrf.mxu0
    %v4052 = vadd.f32 %v4003, %v4051
    %v4053 = vpop.f32.mrf.mxu0
    %v4054 = vadd.f32 %v4005, %v4053
    %4055 = vmatmul.bf16.gmra.mxu0 %v3545
    %v4056 = vpop.f32.mrf.mxu0
    %v4057 = vadd.f32 %v4008, %v4056
    %v4058 = vpop.f32.mrf.mxu0
    %v4059 = vadd.f32 %v4010, %v4058
    %4060 = vmatmul.bf16.gmra.mxu0 %v3547
    %v4061 = vpop.f32.mrf.mxu0
    %v4062 = vadd.f32 %v4013, %v4061
    %v4063 = vpop.f32.mrf.mxu0
    %v4064 = vadd.f32 %v4015, %v4063
    %4065 = vmatmul.bf16.gmra.mxu0 %v3549
    %v4066 = vpop.f32.mrf.mxu0
    %v4067 = vadd.f32 %v4018, %v4066
    %v4068 = vpop.f32.mrf.mxu0
    %v4069 = vadd.f32 %v4020, %v4068
    %4070 = vmatmul.bf16.gmra.mxu0 %v3551
    %v4071 = vpop.f32.mrf.mxu0
    %v4072 = vadd.f32 %v4023, %v4071
    %v4073 = vpop.f32.mrf.mxu0
    %v4074 = vadd.f32 %v4025, %v4073
    %4075 = vdwg.mxu0
    %4076 = vmatpush.bf16.msra.mxu0 %v3807
    %4077 = vmatpush.bf16.msra.mxu0 %v3804
    %4078 = vmatpush.bf16.msra.mxu0 %v3801
    %4079 = vmatpush.bf16.msra.mxu0 %v3798
    %4080 = vmatpush.bf16.msra.mxu0 %v3795
    %4081 = vmatpush.bf16.msra.mxu0 %v3792
    %4082 = vmatpush.bf16.msra.mxu0 %v3789
    %4083 = vmatpush.bf16.msra.mxu0 %v3786
    %4084 = vmatmul.bf16.gmra.mxu0 %v3536
    %v4085 = vpop.f32.mrf.mxu0
    %v4086 = vadd.f32 %v3620, %v4085
    %v4087 = vpop.f32.mrf.mxu0
    %v4088 = vadd.f32 %v3620, %v4087
    %4089 = vmatmul.bf16.gmra.mxu0 %v3538
    %v4090 = vpop.f32.mrf.mxu0
    %v4091 = vadd.f32 %v3620, %v4090
    %v4092 = vpop.f32.mrf.mxu0
    %v4093 = vadd.f32 %v3620, %v4092
    %4094 = vmatmul.bf16.gmra.mxu0 %v3540
    %v4095 = vpop.f32.mrf.mxu0
    %v4096 = vadd.f32 %v3620, %v4095
    %v4097 = vpop.f32.mrf.mxu0
    %v4098 = vadd.f32 %v3620, %v4097
    %4099 = vmatmul.bf16.gmra.mxu0 %v3542
    %v4100 = vpop.f32.mrf.mxu0
    %v4101 = vadd.f32 %v3620, %v4100
    %v4102 = vpop.f32.mrf.mxu0
    %v4103 = vadd.f32 %v3620, %v4102
    %4104 = vmatmul.bf16.gmra.mxu0 %v3544
    %v4105 = vpop.f32.mrf.mxu0
    %v4106 = vadd.f32 %v3620, %v4105
    %v4107 = vpop.f32.mrf.mxu0
    %v4108 = vadd.f32 %v3620, %v4107
    %4109 = vmatmul.bf16.gmra.mxu0 %v3546
    %v4110 = vpop.f32.mrf.mxu0
    %v4111 = vadd.f32 %v3620, %v4110
    %v4112 = vpop.f32.mrf.mxu0
    %v4113 = vadd.f32 %v3620, %v4112
    %4114 = vmatmul.bf16.gmra.mxu0 %v3548
    %v4115 = vpop.f32.mrf.mxu0
    %v4116 = vadd.f32 %v3620, %v4115
    %v4117 = vpop.f32.mrf.mxu0
    %v4118 = vadd.f32 %v3620, %v4117
    %4119 = vmatmul.bf16.gmra.mxu0 %v3550
    %v4120 = vpop.f32.mrf.mxu0
    %v4121 = vadd.f32 %v3620, %v4120
    %v4122 = vpop.f32.mrf.mxu0
    %v4123 = vadd.f32 %v3620, %v4122
    %4124 = vdwg.mxu0
    %4125 = vmatpush.bf16.msra.mxu0 %v3831
    %4126 = vmatpush.bf16.msra.mxu0 %v3828
    %4127 = vmatpush.bf16.msra.mxu0 %v3825
    %4128 = vmatpush.bf16.msra.mxu0 %v3822
    %4129 = vmatpush.bf16.msra.mxu0 %v3819
    %4130 = vmatpush.bf16.msra.mxu0 %v3816
    %4131 = vmatpush.bf16.msra.mxu0 %v3813
    %4132 = vmatpush.bf16.msra.mxu0 %v3810
    %4133 = vmatmul.bf16.gmra.mxu0 %v3537
    %v4134 = vpop.f32.mrf.mxu0
    %v4135 = vadd.f32 %v4086, %v4134
    %v4136 = vpop.f32.mrf.mxu0
    %v4137 = vadd.f32 %v4088, %v4136
    %4138 = vmatmul.bf16.gmra.mxu0 %v3539
    %v4139 = vpop.f32.mrf.mxu0
    %v4140 = vadd.f32 %v4091, %v4139
    %v4141 = vpop.f32.mrf.mxu0
    %v4142 = vadd.f32 %v4093, %v4141
    %4143 = vmatmul.bf16.gmra.mxu0 %v3541
    %v4144 = vpop.f32.mrf.mxu0
    %v4145 = vadd.f32 %v4096, %v4144
    %v4146 = vpop.f32.mrf.mxu0
    %v4147 = vadd.f32 %v4098, %v4146
    %4148 = vmatmul.bf16.gmra.mxu0 %v3543
    %v4149 = vpop.f32.mrf.mxu0
    %v4150 = vadd.f32 %v4101, %v4149
    %v4151 = vpop.f32.mrf.mxu0
    %v4152 = vadd.f32 %v4103, %v4151
    %4153 = vmatmul.bf16.gmra.mxu0 %v3545
    %v4154 = vpop.f32.mrf.mxu0
    %v4155 = vadd.f32 %v4106, %v4154
    %v4156 = vpop.f32.mrf.mxu0
    %v4157 = vadd.f32 %v4108, %v4156
    %4158 = vmatmul.bf16.gmra.mxu0 %v3547
    %v4159 = vpop.f32.mrf.mxu0
    %v4160 = vadd.f32 %v4111, %v4159
    %v4161 = vpop.f32.mrf.mxu0
    %v4162 = vadd.f32 %v4113, %v4161
    %4163 = vmatmul.bf16.gmra.mxu0 %v3549
    %v4164 = vpop.f32.mrf.mxu0
    %v4165 = vadd.f32 %v4116, %v4164
    %v4166 = vpop.f32.mrf.mxu0
    %v4167 = vadd.f32 %v4118, %v4166
    %4168 = vmatmul.bf16.gmra.mxu0 %v3551
    %v4169 = vpop.f32.mrf.mxu0
    %v4170 = vadd.f32 %v4121, %v4169
    %v4171 = vpop.f32.mrf.mxu0
    %v4172 = vadd.f32 %v4123, %v4171
    %4173 = vdwg.mxu0
    %v4174 = vrot.slane %v4037, 7
    %v4175 = vrot.slane %v4039, 7
    %v4176 = vrot.slane %v4042, 7
    %v4177 = vrot.slane %v4044, 7
    %v4178 = vrot.slane %v4047, 7
    %v4179 = vrot.slane %v4049, 7
    %v4180 = vrot.slane %v4052, 7
    %v4181 = vrot.slane %v4054, 7
    %v4182 = vrot.slane %v4057, 7
    %v4183 = vrot.slane %v4059, 7
    %v4184 = vrot.slane %v4062, 7
    %v4185 = vrot.slane %v4064, 7
    %v4186 = vrot.slane %v4067, 7
    %v4187 = vrot.slane %v4069, 7
    %v4188 = vrot.slane %v4072, 7
    %v4189 = vrot.slane %v4074, 7
    %v4190 = vsel %vm591, %v4188, %v4189
    %v4191 = vsel %vm591, %v4187, %v4188
    %v4192 = vsel %vm591, %v4186, %v4187
    %v4193 = vsel %vm591, %v4185, %v4186
    %v4194 = vsel %vm591, %v4184, %v4185
    %v4195 = vsel %vm591, %v4183, %v4184
    %v4196 = vsel %vm591, %v4182, %v4183
    %v4197 = vsel %vm591, %v4181, %v4182
    %v4198 = vsel %vm591, %v4180, %v4181
    %v4199 = vsel %vm591, %v4179, %v4180
    %v4200 = vsel %vm591, %v4178, %v4179
    %v4201 = vsel %vm591, %v4177, %v4178
    %v4202 = vsel %vm591, %v4176, %v4177
    %v4203 = vsel %vm591, %v4175, %v4176
    %v4204 = vsel %vm591, %v4174, %v4175
    %v4205 = vsel %vm591, %v4189, %v4174
    %v4206 = vsel %vm640, %v4205, 0.0
    %v4207 = vsel %vm641, %v4204, 0.0
    %v4208 = vsel %vm642, %v4203, 0.0
    %v4209 = vsel %vm643, %v4202, 0.0
    %v4210 = vsel %vm644, %v4201, 0.0
    %v4211 = vsel %vm645, %v4200, 0.0
    %v4212 = vsel %vm646, %v4199, 0.0
    %v4213 = vsel %vm647, %v4198, 0.0
    %v4214 = vsel %vm648, %v4197, 0.0
    %v4215 = vsel %vm649, %v4196, 0.0
    %v4216 = vsel %vm650, %v4195, 0.0
    %v4217 = vsel %vm651, %v4194, 0.0
    %v4218 = vsel %vm652, %v4193, 0.0
    %v4219 = vsel %vm653, %v4192, 0.0
    %v4220 = vsel %vm654, %v4191, 0.0
    %v4221 = vsel %vm655, %v4190, 0.0
    %v4222 = vpack.c.bf16 %v4207, %v4206
    %v4223 = vpack.c.bf16 %v4209, %v4208
    %v4224 = vpack.c.bf16 %v4211, %v4210
    %v4225 = vpack.c.bf16 %v4213, %v4212
    %v4226 = vpack.c.bf16 %v4215, %v4214
    %v4227 = vpack.c.bf16 %v4217, %v4216
    %v4228 = vpack.c.bf16 %v4219, %v4218
    %v4229 = vpack.c.bf16 %v4221, %v4220
    %v4230 = vld [vmem:[%s13] sm:$0xf]
    %v4231 = vld [vmem:[%s13 + $0x4] sm:$0xf]
    %v4232 = vld [vmem:[%s13 + $0x8] sm:$0xf]
    %v4233 = vld [vmem:[%s13 + $0xc] sm:$0xf]
    %v4234 = vld [vmem:[%s13 + $0x10] sm:$0xf]
    %v4235 = vld [vmem:[%s13 + $0x14] sm:$0xf]
    %v4236 = vld [vmem:[%s13 + $0x18] sm:$0xf]
    %v4237 = vld [vmem:[%s13 + $0x1c] sm:$0xf]
    %v4238 = vld [vmem:[%s13 + $0x20] sm:$0xf]
    %v4239 = vld [vmem:[%s13 + $0x24] sm:$0xf]
    %v4240 = vld [vmem:[%s13 + $0x28] sm:$0xf]
    %v4241 = vld [vmem:[%s13 + $0x2c] sm:$0xf]
    %v4242 = vld [vmem:[%s13 + $0x30] sm:$0xf]
    %v4243 = vld [vmem:[%s13 + $0x34] sm:$0xf]
    %v4244 = vld [vmem:[%s13 + $0x38] sm:$0xf]
    %v4245 = vld [vmem:[%s13 + $0x3c] sm:$0xf]
    %v4246 = vpack.c.bf16 %v4039, %v4037
    %v4247 = vpack.c.bf16 %v4044, %v4042
    %v4248 = vpack.c.bf16 %v4049, %v4047
    %v4249 = vpack.c.bf16 %v4054, %v4052
    %v4250 = vpack.c.bf16 %v4059, %v4057
    %v4251 = vpack.c.bf16 %v4064, %v4062
    %v4252 = vpack.c.bf16 %v4069, %v4067
    %v4253 = vpack.c.bf16 %v4074, %v4072
    %v4254 = vld [vmem:[%s13 + $0x40] sm:$0xf]
    %v4255 = vld [vmem:[%s13 + $0x44] sm:$0xf]
    %v4256 = vld [vmem:[%s13 + $0x48] sm:$0xf]
    %v4257 = vld [vmem:[%s13 + $0x4c] sm:$0xf]
    %v4258 = vld [vmem:[%s13 + $0x50] sm:$0xf]
    %v4259 = vld [vmem:[%s13 + $0x54] sm:$0xf]
    %v4260 = vld [vmem:[%s13 + $0x58] sm:$0xf]
    %v4261 = vld [vmem:[%s13 + $0x5c] sm:$0xf]
    %v4262 = vld [vmem:[%s13 + $0x60] sm:$0xf]
    %v4263 = vld [vmem:[%s13 + $0x64] sm:$0xf]
    %v4264 = vld [vmem:[%s13 + $0x68] sm:$0xf]
    %v4265 = vld [vmem:[%s13 + $0x6c] sm:$0xf]
    %v4266 = vld [vmem:[%s13 + $0x70] sm:$0xf]
    %v4267 = vld [vmem:[%s13 + $0x74] sm:$0xf]
    %v4268 = vld [vmem:[%s13 + $0x78] sm:$0xf]
    %v4269 = vld [vmem:[%s13 + $0x7c] sm:$0xf]
    %v4286 = vunpack.c.l.b16 %v4254
    %v4287 = vunpack.c.l.b16 %v4255
    %v4288 = vunpack.c.l.b16 %v4256
    %v4289 = vunpack.c.l.b16 %v4257
    %v4290 = vunpack.c.l.b16 %v4258
    %v4291 = vunpack.c.l.b16 %v4259
    %v4292 = vunpack.c.l.b16 %v4260
    %v4293 = vunpack.c.l.b16 %v4261
    %v4294 = vunpack.c.l.b16 %v4262
    %v4295 = vunpack.c.l.b16 %v4263
    %v4296 = vunpack.c.l.b16 %v4264
    %v4297 = vunpack.c.l.b16 %v4265
    %v4298 = vunpack.c.l.b16 %v4266
    %v4299 = vunpack.c.l.b16 %v4267
    %v4300 = vunpack.c.l.b16 %v4268
    %v4301 = vunpack.c.l.b16 %v4269
    %v4302 = vpack.c.b16 %v4287, %v4286
    %v4303 = vpack.c.b16 %v4289, %v4288
    %v4304 = vpack.c.b16 %v4291, %v4290
    %v4305 = vpack.c.b16 %v4293, %v4292
    %v4306 = vpack.c.b16 %v4295, %v4294
    %v4307 = vpack.c.b16 %v4297, %v4296
    %v4308 = vpack.c.b16 %v4299, %v4298
    %v4309 = vpack.c.b16 %v4301, %v4300
    %4318 = vmatpush.bf16.msra.mxu0 %v4309
    %4319 = vmatpush.bf16.msra.mxu0 %v4308
    %4320 = vmatpush.bf16.msra.mxu0 %v4307
    %4321 = vmatpush.bf16.msra.mxu0 %v4306
    %4322 = vmatpush.bf16.msra.mxu0 %v4305
    %4323 = vmatpush.bf16.msra.mxu0 %v4304
    %4324 = vmatpush.bf16.msra.mxu0 %v4303
    %4325 = vmatpush.bf16.msra.mxu0 %v4302
    %4326 = vmatmul.bf16.gmra.mxu0 %v4246
    %v4327 = vpop.f32.mrf.mxu0
    %v4328 = vadd.f32 0.0, %v4327
    %v4329 = vpop.f32.mrf.mxu0
    %v4330 = vadd.f32 0.0, %v4329
    %4331 = vmatmul.bf16.gmra.mxu0 %v4247
    %v4332 = vpop.f32.mrf.mxu0
    %v4333 = vadd.f32 0.0, %v4332
    %v4334 = vpop.f32.mrf.mxu0
    %v4335 = vadd.f32 0.0, %v4334
    %4336 = vmatmul.bf16.gmra.mxu0 %v4248
    %v4337 = vpop.f32.mrf.mxu0
    %v4338 = vadd.f32 0.0, %v4337
    %v4339 = vpop.f32.mrf.mxu0
    %v4340 = vadd.f32 0.0, %v4339
    %4341 = vmatmul.bf16.gmra.mxu0 %v4249
    %v4342 = vpop.f32.mrf.mxu0
    %v4343 = vadd.f32 0.0, %v4342
    %v4344 = vpop.f32.mrf.mxu0
    %v4345 = vadd.f32 0.0, %v4344
    %4346 = vmatmul.bf16.gmra.mxu0 %v4250
    %v4347 = vpop.f32.mrf.mxu0
    %v4348 = vadd.f32 0.0, %v4347
    %v4349 = vpop.f32.mrf.mxu0
    %v4350 = vadd.f32 0.0, %v4349
    %4351 = vmatmul.bf16.gmra.mxu0 %v4251
    %v4352 = vpop.f32.mrf.mxu0
    %v4353 = vadd.f32 0.0, %v4352
    %v4354 = vpop.f32.mrf.mxu0
    %v4355 = vadd.f32 0.0, %v4354
    %4356 = vmatmul.bf16.gmra.mxu0 %v4252
    %v4357 = vpop.f32.mrf.mxu0
    %v4358 = vadd.f32 0.0, %v4357
    %v4359 = vpop.f32.mrf.mxu0
    %v4360 = vadd.f32 0.0, %v4359
    %4361 = vmatmul.bf16.gmra.mxu0 %v4253
    %v4362 = vpop.f32.mrf.mxu0
    %v4363 = vadd.f32 0.0, %v4362
    %v4364 = vpop.f32.mrf.mxu0
    %v4365 = vadd.f32 0.0, %v4364
    %4366 = vdwg.mxu0
    %v4383 = vunpack.c.l.b16 %v4230
    %v4384 = vunpack.c.l.b16 %v4231
    %v4385 = vunpack.c.l.b16 %v4232
    %v4386 = vunpack.c.l.b16 %v4233
    %v4387 = vunpack.c.l.b16 %v4234
    %v4388 = vunpack.c.l.b16 %v4235
    %v4389 = vunpack.c.l.b16 %v4236
    %v4390 = vunpack.c.l.b16 %v4237
    %v4391 = vunpack.c.l.b16 %v4238
    %v4392 = vunpack.c.l.b16 %v4239
    %v4393 = vunpack.c.l.b16 %v4240
    %v4394 = vunpack.c.l.b16 %v4241
    %v4395 = vunpack.c.l.b16 %v4242
    %v4396 = vunpack.c.l.b16 %v4243
    %v4397 = vunpack.c.l.b16 %v4244
    %v4398 = vunpack.c.l.b16 %v4245
    %v4399 = vpack.c.b16 %v4384, %v4383
    %v4400 = vpack.c.b16 %v4386, %v4385
    %v4401 = vpack.c.b16 %v4388, %v4387
    %v4402 = vpack.c.b16 %v4390, %v4389
    %v4403 = vpack.c.b16 %v4392, %v4391
    %v4404 = vpack.c.b16 %v4394, %v4393
    %v4405 = vpack.c.b16 %v4396, %v4395
    %v4406 = vpack.c.b16 %v4398, %v4397
    %4415 = vmatpush.bf16.msra.mxu0 %v4406
    %4416 = vmatpush.bf16.msra.mxu0 %v4405
    %4417 = vmatpush.bf16.msra.mxu0 %v4404
    %4418 = vmatpush.bf16.msra.mxu0 %v4403
    %4419 = vmatpush.bf16.msra.mxu0 %v4402
    %4420 = vmatpush.bf16.msra.mxu0 %v4401
    %4421 = vmatpush.bf16.msra.mxu0 %v4400
    %4422 = vmatpush.bf16.msra.mxu0 %v4399
    %4423 = vmatmul.bf16.gmra.mxu0 %v4222
    %v4424 = vpop.f32.mrf.mxu0
    %v4425 = vadd.f32 %v4328, %v4424
    %v4426 = vpop.f32.mrf.mxu0
    %v4427 = vadd.f32 %v4330, %v4426
    %4428 = vmatmul.bf16.gmra.mxu0 %v4223
    %v4429 = vpop.f32.mrf.mxu0
    %v4430 = vadd.f32 %v4333, %v4429
    %v4431 = vpop.f32.mrf.mxu0
    %v4432 = vadd.f32 %v4335, %v4431
    %4433 = vmatmul.bf16.gmra.mxu0 %v4224
    %v4434 = vpop.f32.mrf.mxu0
    %v4435 = vadd.f32 %v4338, %v4434
    %v4436 = vpop.f32.mrf.mxu0
    %v4437 = vadd.f32 %v4340, %v4436
    %4438 = vmatmul.bf16.gmra.mxu0 %v4225
    %v4439 = vpop.f32.mrf.mxu0
    %v4440 = vadd.f32 %v4343, %v4439
    %v4441 = vpop.f32.mrf.mxu0
    %v4442 = vadd.f32 %v4345, %v4441
    %4443 = vmatmul.bf16.gmra.mxu0 %v4226
    %v4444 = vpop.f32.mrf.mxu0
    %v4445 = vadd.f32 %v4348, %v4444
    %v4446 = vpop.f32.mrf.mxu0
    %v4447 = vadd.f32 %v4350, %v4446
    %4448 = vmatmul.bf16.gmra.mxu0 %v4227
    %v4449 = vpop.f32.mrf.mxu0
    %v4450 = vadd.f32 %v4353, %v4449
    %v4451 = vpop.f32.mrf.mxu0
    %v4452 = vadd.f32 %v4355, %v4451
    %4453 = vmatmul.bf16.gmra.mxu0 %v4228
    %v4454 = vpop.f32.mrf.mxu0
    %v4455 = vadd.f32 %v4358, %v4454
    %v4456 = vpop.f32.mrf.mxu0
    %v4457 = vadd.f32 %v4360, %v4456
    %4458 = vmatmul.bf16.gmra.mxu0 %v4229
    %v4459 = vpop.f32.mrf.mxu0
    %v4460 = vadd.f32 %v4363, %v4459
    %v4461 = vpop.f32.mrf.mxu0
    %v4462 = vadd.f32 %v4365, %v4461
    %4463 = vdwg.mxu0
    %v4464 = vrot.slane %v4037, 1
    %v4465 = vrot.slane %v4039, 1
    %v4466 = vrot.slane %v4042, 1
    %v4467 = vrot.slane %v4044, 1
    %v4468 = vrot.slane %v4047, 1
    %v4469 = vrot.slane %v4049, 1
    %v4470 = vrot.slane %v4052, 1
    %v4471 = vrot.slane %v4054, 1
    %v4472 = vrot.slane %v4057, 1
    %v4473 = vrot.slane %v4059, 1
    %v4474 = vrot.slane %v4062, 1
    %v4475 = vrot.slane %v4064, 1
    %v4476 = vrot.slane %v4067, 1
    %v4477 = vrot.slane %v4069, 1
    %v4478 = vrot.slane %v4072, 1
    %v4479 = vrot.slane %v4074, 1
    %v4480 = vsel %vm688, %v4478, %v4479
    %v4481 = vsel %vm688, %v4477, %v4478
    %v4482 = vsel %vm688, %v4476, %v4477
    %v4483 = vsel %vm688, %v4475, %v4476
    %v4484 = vsel %vm688, %v4474, %v4475
    %v4485 = vsel %vm688, %v4473, %v4474
    %v4486 = vsel %vm688, %v4472, %v4473
    %v4487 = vsel %vm688, %v4471, %v4472
    %v4488 = vsel %vm688, %v4470, %v4471
    %v4489 = vsel %vm688, %v4469, %v4470
    %v4490 = vsel %vm688, %v4468, %v4469
    %v4491 = vsel %vm688, %v4467, %v4468
    %v4492 = vsel %vm688, %v4466, %v4467
    %v4493 = vsel %vm688, %v4465, %v4466
    %v4494 = vsel %vm688, %v4464, %v4465
    %v4495 = vsel %vm688, %v4479, %v4464
    %v4496 = vsel %vm737, %v4494, 0.0
    %v4497 = vsel %vm738, %v4493, 0.0
    %v4498 = vsel %vm739, %v4492, 0.0
    %v4499 = vsel %vm740, %v4491, 0.0
    %v4500 = vsel %vm741, %v4490, 0.0
    %v4501 = vsel %vm742, %v4489, 0.0
    %v4502 = vsel %vm743, %v4488, 0.0
    %v4503 = vsel %vm744, %v4487, 0.0
    %v4504 = vsel %vm745, %v4486, 0.0
    %v4505 = vsel %vm746, %v4485, 0.0
    %v4506 = vsel %vm747, %v4484, 0.0
    %v4507 = vsel %vm748, %v4483, 0.0
    %v4508 = vsel %vm749, %v4482, 0.0
    %v4509 = vsel %vm750, %v4481, 0.0
    %v4510 = vsel %vm751, %v4480, 0.0
    %v4511 = vsel %vm752, %v4495, 0.0
    %v4512 = vpack.c.bf16 %v4497, %v4496
    %v4513 = vpack.c.bf16 %v4499, %v4498
    %v4514 = vpack.c.bf16 %v4501, %v4500
    %v4515 = vpack.c.bf16 %v4503, %v4502
    %v4516 = vpack.c.bf16 %v4505, %v4504
    %v4517 = vpack.c.bf16 %v4507, %v4506
    %v4518 = vpack.c.bf16 %v4509, %v4508
    %v4519 = vpack.c.bf16 %v4511, %v4510
    %v4520 = vld [vmem:[%s13 + $0x80] sm:$0xf]
    %v4521 = vld [vmem:[%s13 + $0x84] sm:$0xf]
    %v4522 = vld [vmem:[%s13 + $0x88] sm:$0xf]
    %v4523 = vld [vmem:[%s13 + $0x8c] sm:$0xf]
    %v4524 = vld [vmem:[%s13 + $0x90] sm:$0xf]
    %v4525 = vld [vmem:[%s13 + $0x94] sm:$0xf]
    %v4526 = vld [vmem:[%s13 + $0x98] sm:$0xf]
    %v4527 = vld [vmem:[%s13 + $0x9c] sm:$0xf]
    %v4528 = vld [vmem:[%s13 + $0xa0] sm:$0xf]
    %v4529 = vld [vmem:[%s13 + $0xa4] sm:$0xf]
    %v4530 = vld [vmem:[%s13 + $0xa8] sm:$0xf]
    %v4531 = vld [vmem:[%s13 + $0xac] sm:$0xf]
    %v4532 = vld [vmem:[%s13 + $0xb0] sm:$0xf]
    %v4533 = vld [vmem:[%s13 + $0xb4] sm:$0xf]
    %v4534 = vld [vmem:[%s13 + $0xb8] sm:$0xf]
    %v4535 = vld [vmem:[%s13 + $0xbc] sm:$0xf]
    %v4552 = vunpack.c.l.b16 %v4520
    %v4553 = vunpack.c.l.b16 %v4521
    %v4554 = vunpack.c.l.b16 %v4522
    %v4555 = vunpack.c.l.b16 %v4523
    %v4556 = vunpack.c.l.b16 %v4524
    %v4557 = vunpack.c.l.b16 %v4525
    %v4558 = vunpack.c.l.b16 %v4526
    %v4559 = vunpack.c.l.b16 %v4527
    %v4560 = vunpack.c.l.b16 %v4528
    %v4561 = vunpack.c.l.b16 %v4529
    %v4562 = vunpack.c.l.b16 %v4530
    %v4563 = vunpack.c.l.b16 %v4531
    %v4564 = vunpack.c.l.b16 %v4532
    %v4565 = vunpack.c.l.b16 %v4533
    %v4566 = vunpack.c.l.b16 %v4534
    %v4567 = vunpack.c.l.b16 %v4535
    %v4568 = vpack.c.b16 %v4553, %v4552
    %v4569 = vpack.c.b16 %v4555, %v4554
    %v4570 = vpack.c.b16 %v4557, %v4556
    %v4571 = vpack.c.b16 %v4559, %v4558
    %v4572 = vpack.c.b16 %v4561, %v4560
    %v4573 = vpack.c.b16 %v4563, %v4562
    %v4574 = vpack.c.b16 %v4565, %v4564
    %v4575 = vpack.c.b16 %v4567, %v4566
    %4584 = vmatpush.bf16.msra.mxu0 %v4575
    %4585 = vmatpush.bf16.msra.mxu0 %v4574
    %4586 = vmatpush.bf16.msra.mxu0 %v4573
    %4587 = vmatpush.bf16.msra.mxu0 %v4572
    %4588 = vmatpush.bf16.msra.mxu0 %v4571
    %4589 = vmatpush.bf16.msra.mxu0 %v4570
    %4590 = vmatpush.bf16.msra.mxu0 %v4569
    %4591 = vmatpush.bf16.msra.mxu0 %v4568
    %4592 = vmatmul.bf16.gmra.mxu0 %v4512
    %v4593 = vpop.f32.mrf.mxu0
    %v4594 = vadd.f32 0.0, %v4593
    %v4595 = vpop.f32.mrf.mxu0
    %v4596 = vadd.f32 0.0, %v4595
    %4597 = vmatmul.bf16.gmra.mxu0 %v4513
    %v4598 = vpop.f32.mrf.mxu0
    %v4599 = vadd.f32 0.0, %v4598
    %v4600 = vpop.f32.mrf.mxu0
    %v4601 = vadd.f32 0.0, %v4600
    %4602 = vmatmul.bf16.gmra.mxu0 %v4514
    %v4603 = vpop.f32.mrf.mxu0
    %v4604 = vadd.f32 0.0, %v4603
    %v4605 = vpop.f32.mrf.mxu0
    %v4606 = vadd.f32 0.0, %v4605
    %4607 = vmatmul.bf16.gmra.mxu0 %v4515
    %v4608 = vpop.f32.mrf.mxu0
    %v4609 = vadd.f32 0.0, %v4608
    %v4610 = vpop.f32.mrf.mxu0
    %v4611 = vadd.f32 0.0, %v4610
    %4612 = vmatmul.bf16.gmra.mxu0 %v4516
    %v4613 = vpop.f32.mrf.mxu0
    %v4614 = vadd.f32 0.0, %v4613
    %v4615 = vpop.f32.mrf.mxu0
    %v4616 = vadd.f32 0.0, %v4615
    %4617 = vmatmul.bf16.gmra.mxu0 %v4517
    %v4618 = vpop.f32.mrf.mxu0
    %v4619 = vadd.f32 0.0, %v4618
    %v4620 = vpop.f32.mrf.mxu0
    %v4621 = vadd.f32 0.0, %v4620
    %4622 = vmatmul.bf16.gmra.mxu0 %v4518
    %v4623 = vpop.f32.mrf.mxu0
    %v4624 = vadd.f32 0.0, %v4623
    %v4625 = vpop.f32.mrf.mxu0
    %v4626 = vadd.f32 0.0, %v4625
    %4627 = vmatmul.bf16.gmra.mxu0 %v4519
    %v4628 = vpop.f32.mrf.mxu0
    %v4629 = vadd.f32 0.0, %v4628
    %v4630 = vpop.f32.mrf.mxu0
    %v4631 = vadd.f32 0.0, %v4630
    %4632 = vdwg.mxu0
    %v4633 = vadd.f32 %v4425, %v4594
    %v4634 = vadd.f32 %v4427, %v4596
    %v4635 = vadd.f32 %v4430, %v4599
    %v4636 = vadd.f32 %v4432, %v4601
    %v4637 = vadd.f32 %v4435, %v4604
    %v4638 = vadd.f32 %v4437, %v4606
    %v4639 = vadd.f32 %v4440, %v4609
    %v4640 = vadd.f32 %v4442, %v4611
    %v4641 = vadd.f32 %v4445, %v4614
    %v4642 = vadd.f32 %v4447, %v4616
    %v4643 = vadd.f32 %v4450, %v4619
    %v4644 = vadd.f32 %v4452, %v4621
    %v4645 = vadd.f32 %v4455, %v4624
    %v4646 = vadd.f32 %v4457, %v4626
    %v4647 = vadd.f32 %v4460, %v4629
    %v4648 = vadd.f32 %v4462, %v4631
    %v4649 = vld [vmem:[%s14] sm:$0x1]
    %v4651 = vperm.slane %v4649, 0
    %v4653 = vadd.f32 %v4633, %v4651
    %v4654 = vadd.f32 %v4634, %v4651
    %v4655 = vadd.f32 %v4635, %v4651
    %v4656 = vadd.f32 %v4636, %v4651
    %v4657 = vadd.f32 %v4637, %v4651
    %v4658 = vadd.f32 %v4638, %v4651
    %v4659 = vadd.f32 %v4639, %v4651
    %v4660 = vadd.f32 %v4640, %v4651
    %v4661 = vadd.f32 %v4641, %v4651
    %v4662 = vadd.f32 %v4642, %v4651
    %v4663 = vadd.f32 %v4643, %v4651
    %v4664 = vadd.f32 %v4644, %v4651
    %v4665 = vadd.f32 %v4645, %v4651
    %v4666 = vadd.f32 %v4646, %v4651
    %v4667 = vadd.f32 %v4647, %v4651
    %v4668 = vadd.f32 %v4648, %v4651
    %v4669 = vrot.slane %v4135, 6
    %v4670 = vrot.slane %v4137, 6
    %v4671 = vrot.slane %v4140, 6
    %v4672 = vrot.slane %v4142, 6
    %v4673 = vrot.slane %v4145, 6
    %v4674 = vrot.slane %v4147, 6
    %v4675 = vrot.slane %v4150, 6
    %v4676 = vrot.slane %v4152, 6
    %v4677 = vrot.slane %v4155, 6
    %v4678 = vrot.slane %v4157, 6
    %v4679 = vrot.slane %v4160, 6
    %v4680 = vrot.slane %v4162, 6
    %v4681 = vrot.slane %v4165, 6
    %v4682 = vrot.slane %v4167, 6
    %v4683 = vrot.slane %v4170, 6
    %v4684 = vrot.slane %v4172, 6
    %v4685 = vsel %vm494, %v4683, %v4684
    %v4686 = vsel %vm494, %v4682, %v4683
    %v4687 = vsel %vm494, %v4681, %v4682
    %v4688 = vsel %vm494, %v4680, %v4681
    %v4689 = vsel %vm494, %v4679, %v4680
    %v4690 = vsel %vm494, %v4678, %v4679
    %v4691 = vsel %vm494, %v4677, %v4678
    %v4692 = vsel %vm494, %v4676, %v4677
    %v4693 = vsel %vm494, %v4675, %v4676
    %v4694 = vsel %vm494, %v4674, %v4675
    %v4695 = vsel %vm494, %v4673, %v4674
    %v4696 = vsel %vm494, %v4672, %v4673
    %v4697 = vsel %vm494, %v4671, %v4672
    %v4698 = vsel %vm494, %v4670, %v4671
    %v4699 = vsel %vm494, %v4669, %v4670
    %v4700 = vsel %vm494, %v4684, %v4669
    %v4701 = vsel %vm543, %v4700, 0.0
    %v4702 = vsel %vm544, %v4699, 0.0
    %v4703 = vsel %vm545, %v4698, 0.0
    %v4704 = vsel %vm546, %v4697, 0.0
    %v4705 = vsel %vm547, %v4696, 0.0
    %v4706 = vsel %vm548, %v4695, 0.0
    %v4707 = vsel %vm549, %v4694, 0.0
    %v4708 = vsel %vm550, %v4693, 0.0
    %v4709 = vsel %vm551, %v4692, 0.0
    %v4710 = vsel %vm552, %v4691, 0.0
    %v4711 = vsel %vm553, %v4690, 0.0
    %v4712 = vsel %vm554, %v4689, 0.0
    %v4713 = vsel %vm555, %v4688, 0.0
    %v4714 = vsel %vm556, %v4687, 0.0
    %v4715 = vsel %vm557, %v4686, 0.0
    %v4716 = vsel %vm558, %v4685, 0.0
    %v4717 = vpack.c.bf16 %v4702, %v4701
    %v4718 = vpack.c.bf16 %v4704, %v4703
    %v4719 = vpack.c.bf16 %v4706, %v4705
    %v4720 = vpack.c.bf16 %v4708, %v4707
    %v4721 = vpack.c.bf16 %v4710, %v4709
    %v4722 = vpack.c.bf16 %v4712, %v4711
    %v4723 = vpack.c.bf16 %v4714, %v4713
    %v4724 = vpack.c.bf16 %v4716, %v4715
    %v4725 = vld [vmem:[%s15] sm:$0xf]
    %v4726 = vld [vmem:[%s15 + $0x4] sm:$0xf]
    %v4727 = vld [vmem:[%s15 + $0x8] sm:$0xf]
    %v4728 = vld [vmem:[%s15 + $0xc] sm:$0xf]
    %v4729 = vld [vmem:[%s15 + $0x10] sm:$0xf]
    %v4730 = vld [vmem:[%s15 + $0x14] sm:$0xf]
    %v4731 = vld [vmem:[%s15 + $0x18] sm:$0xf]
    %v4732 = vld [vmem:[%s15 + $0x1c] sm:$0xf]
    %v4733 = vld [vmem:[%s15 + $0x20] sm:$0xf]
    %v4734 = vld [vmem:[%s15 + $0x24] sm:$0xf]
    %v4735 = vld [vmem:[%s15 + $0x28] sm:$0xf]
    %v4736 = vld [vmem:[%s15 + $0x2c] sm:$0xf]
    %v4737 = vld [vmem:[%s15 + $0x30] sm:$0xf]
    %v4738 = vld [vmem:[%s15 + $0x34] sm:$0xf]
    %v4739 = vld [vmem:[%s15 + $0x38] sm:$0xf]
    %v4740 = vld [vmem:[%s15 + $0x3c] sm:$0xf]
    %v4741 = vrot.slane %v4135, 7
    %v4742 = vrot.slane %v4137, 7
    %v4743 = vrot.slane %v4140, 7
    %v4744 = vrot.slane %v4142, 7
    %v4745 = vrot.slane %v4145, 7
    %v4746 = vrot.slane %v4147, 7
    %v4747 = vrot.slane %v4150, 7
    %v4748 = vrot.slane %v4152, 7
    %v4749 = vrot.slane %v4155, 7
    %v4750 = vrot.slane %v4157, 7
    %v4751 = vrot.slane %v4160, 7
    %v4752 = vrot.slane %v4162, 7
    %v4753 = vrot.slane %v4165, 7
    %v4754 = vrot.slane %v4167, 7
    %v4755 = vrot.slane %v4170, 7
    %v4756 = vrot.slane %v4172, 7
    %v4757 = vsel %vm591, %v4755, %v4756
    %v4758 = vsel %vm591, %v4754, %v4755
    %v4759 = vsel %vm591, %v4753, %v4754
    %v4760 = vsel %vm591, %v4752, %v4753
    %v4761 = vsel %vm591, %v4751, %v4752
    %v4762 = vsel %vm591, %v4750, %v4751
    %v4763 = vsel %vm591, %v4749, %v4750
    %v4764 = vsel %vm591, %v4748, %v4749
    %v4765 = vsel %vm591, %v4747, %v4748
    %v4766 = vsel %vm591, %v4746, %v4747
    %v4767 = vsel %vm591, %v4745, %v4746
    %v4768 = vsel %vm591, %v4744, %v4745
    %v4769 = vsel %vm591, %v4743, %v4744
    %v4770 = vsel %vm591, %v4742, %v4743
    %v4771 = vsel %vm591, %v4741, %v4742
    %v4772 = vsel %vm591, %v4756, %v4741
    %v4773 = vsel %vm640, %v4772, 0.0
    %v4774 = vsel %vm641, %v4771, 0.0
    %v4775 = vsel %vm642, %v4770, 0.0
    %v4776 = vsel %vm643, %v4769, 0.0
    %v4777 = vsel %vm644, %v4768, 0.0
    %v4778 = vsel %vm645, %v4767, 0.0
    %v4779 = vsel %vm646, %v4766, 0.0
    %v4780 = vsel %vm647, %v4765, 0.0
    %v4781 = vsel %vm648, %v4764, 0.0
    %v4782 = vsel %vm649, %v4763, 0.0
    %v4783 = vsel %vm650, %v4762, 0.0
    %v4784 = vsel %vm651, %v4761, 0.0
    %v4785 = vsel %vm652, %v4760, 0.0
    %v4786 = vsel %vm653, %v4759, 0.0
    %v4787 = vsel %vm654, %v4758, 0.0
    %v4788 = vsel %vm655, %v4757, 0.0
    %v4789 = vpack.c.bf16 %v4774, %v4773
    %v4790 = vpack.c.bf16 %v4776, %v4775
    %v4791 = vpack.c.bf16 %v4778, %v4777
    %v4792 = vpack.c.bf16 %v4780, %v4779
    %v4793 = vpack.c.bf16 %v4782, %v4781
    %v4794 = vpack.c.bf16 %v4784, %v4783
    %v4795 = vpack.c.bf16 %v4786, %v4785
    %v4796 = vpack.c.bf16 %v4788, %v4787
    %v4797 = vld [vmem:[%s15 + $0x40] sm:$0xf]
    %v4798 = vld [vmem:[%s15 + $0x44] sm:$0xf]
    %v4799 = vld [vmem:[%s15 + $0x48] sm:$0xf]
    %v4800 = vld [vmem:[%s15 + $0x4c] sm:$0xf]
    %v4801 = vld [vmem:[%s15 + $0x50] sm:$0xf]
    %v4802 = vld [vmem:[%s15 + $0x54] sm:$0xf]
    %v4803 = vld [vmem:[%s15 + $0x58] sm:$0xf]
    %v4804 = vld [vmem:[%s15 + $0x5c] sm:$0xf]
    %v4805 = vld [vmem:[%s15 + $0x60] sm:$0xf]
    %v4806 = vld [vmem:[%s15 + $0x64] sm:$0xf]
    %v4807 = vld [vmem:[%s15 + $0x68] sm:$0xf]
    %v4808 = vld [vmem:[%s15 + $0x6c] sm:$0xf]
    %v4809 = vld [vmem:[%s15 + $0x70] sm:$0xf]
    %v4810 = vld [vmem:[%s15 + $0x74] sm:$0xf]
    %v4811 = vld [vmem:[%s15 + $0x78] sm:$0xf]
    %v4812 = vld [vmem:[%s15 + $0x7c] sm:$0xf]
    %v4829 = vunpack.c.l.b16 %v4797
    %v4830 = vunpack.c.l.b16 %v4798
    %v4831 = vunpack.c.l.b16 %v4799
    %v4832 = vunpack.c.l.b16 %v4800
    %v4833 = vunpack.c.l.b16 %v4801
    %v4834 = vunpack.c.l.b16 %v4802
    %v4835 = vunpack.c.l.b16 %v4803
    %v4836 = vunpack.c.l.b16 %v4804
    %v4837 = vunpack.c.l.b16 %v4805
    %v4838 = vunpack.c.l.b16 %v4806
    %v4839 = vunpack.c.l.b16 %v4807
    %v4840 = vunpack.c.l.b16 %v4808
    %v4841 = vunpack.c.l.b16 %v4809
    %v4842 = vunpack.c.l.b16 %v4810
    %v4843 = vunpack.c.l.b16 %v4811
    %v4844 = vunpack.c.l.b16 %v4812
    %v4845 = vpack.c.b16 %v4830, %v4829
    %v4846 = vpack.c.b16 %v4832, %v4831
    %v4847 = vpack.c.b16 %v4834, %v4833
    %v4848 = vpack.c.b16 %v4836, %v4835
    %v4849 = vpack.c.b16 %v4838, %v4837
    %v4850 = vpack.c.b16 %v4840, %v4839
    %v4851 = vpack.c.b16 %v4842, %v4841
    %v4852 = vpack.c.b16 %v4844, %v4843
    %4861 = vmatpush.bf16.msra.mxu0 %v4852
    %4862 = vmatpush.bf16.msra.mxu0 %v4851
    %4863 = vmatpush.bf16.msra.mxu0 %v4850
    %4864 = vmatpush.bf16.msra.mxu0 %v4849
    %4865 = vmatpush.bf16.msra.mxu0 %v4848
    %4866 = vmatpush.bf16.msra.mxu0 %v4847
    %4867 = vmatpush.bf16.msra.mxu0 %v4846
    %4868 = vmatpush.bf16.msra.mxu0 %v4845
    %4869 = vmatmul.bf16.gmra.mxu0 %v4789
    %v4870 = vpop.f32.mrf.mxu0
    %v4871 = vadd.f32 0.0, %v4870
    %v4872 = vpop.f32.mrf.mxu0
    %v4873 = vadd.f32 0.0, %v4872
    %4874 = vmatmul.bf16.gmra.mxu0 %v4790
    %v4875 = vpop.f32.mrf.mxu0
    %v4876 = vadd.f32 0.0, %v4875
    %v4877 = vpop.f32.mrf.mxu0
    %v4878 = vadd.f32 0.0, %v4877
    %4879 = vmatmul.bf16.gmra.mxu0 %v4791
    %v4880 = vpop.f32.mrf.mxu0
    %v4881 = vadd.f32 0.0, %v4880
    %v4882 = vpop.f32.mrf.mxu0
    %v4883 = vadd.f32 0.0, %v4882
    %4884 = vmatmul.bf16.gmra.mxu0 %v4792
    %v4885 = vpop.f32.mrf.mxu0
    %v4886 = vadd.f32 0.0, %v4885
    %v4887 = vpop.f32.mrf.mxu0
    %v4888 = vadd.f32 0.0, %v4887
    %4889 = vmatmul.bf16.gmra.mxu0 %v4793
    %v4890 = vpop.f32.mrf.mxu0
    %v4891 = vadd.f32 0.0, %v4890
    %v4892 = vpop.f32.mrf.mxu0
    %v4893 = vadd.f32 0.0, %v4892
    %4894 = vmatmul.bf16.gmra.mxu0 %v4794
    %v4895 = vpop.f32.mrf.mxu0
    %v4896 = vadd.f32 0.0, %v4895
    %v4897 = vpop.f32.mrf.mxu0
    %v4898 = vadd.f32 0.0, %v4897
    %4899 = vmatmul.bf16.gmra.mxu0 %v4795
    %v4900 = vpop.f32.mrf.mxu0
    %v4901 = vadd.f32 0.0, %v4900
    %v4902 = vpop.f32.mrf.mxu0
    %v4903 = vadd.f32 0.0, %v4902
    %4904 = vmatmul.bf16.gmra.mxu0 %v4796
    %v4905 = vpop.f32.mrf.mxu0
    %v4906 = vadd.f32 0.0, %v4905
    %v4907 = vpop.f32.mrf.mxu0
    %v4908 = vadd.f32 0.0, %v4907
    %4909 = vdwg.mxu0
    %v4926 = vunpack.c.l.b16 %v4725
    %v4927 = vunpack.c.l.b16 %v4726
    %v4928 = vunpack.c.l.b16 %v4727
    %v4929 = vunpack.c.l.b16 %v4728
    %v4930 = vunpack.c.l.b16 %v4729
    %v4931 = vunpack.c.l.b16 %v4730
    %v4932 = vunpack.c.l.b16 %v4731
    %v4933 = vunpack.c.l.b16 %v4732
    %v4934 = vunpack.c.l.b16 %v4733
    %v4935 = vunpack.c.l.b16 %v4734
    %v4936 = vunpack.c.l.b16 %v4735
    %v4937 = vunpack.c.l.b16 %v4736
    %v4938 = vunpack.c.l.b16 %v4737
    %v4939 = vunpack.c.l.b16 %v4738
    %v4940 = vunpack.c.l.b16 %v4739
    %v4941 = vunpack.c.l.b16 %v4740
    %v4942 = vpack.c.b16 %v4927, %v4926
    %v4943 = vpack.c.b16 %v4929, %v4928
    %v4944 = vpack.c.b16 %v4931, %v4930
    %v4945 = vpack.c.b16 %v4933, %v4932
    %v4946 = vpack.c.b16 %v4935, %v4934
    %v4947 = vpack.c.b16 %v4937, %v4936
    %v4948 = vpack.c.b16 %v4939, %v4938
    %v4949 = vpack.c.b16 %v4941, %v4940
    %4958 = vmatpush.bf16.msra.mxu0 %v4949
    %4959 = vmatpush.bf16.msra.mxu0 %v4948
    %4960 = vmatpush.bf16.msra.mxu0 %v4947
    %4961 = vmatpush.bf16.msra.mxu0 %v4946
    %4962 = vmatpush.bf16.msra.mxu0 %v4945
    %4963 = vmatpush.bf16.msra.mxu0 %v4944
    %4964 = vmatpush.bf16.msra.mxu0 %v4943
    %4965 = vmatpush.bf16.msra.mxu0 %v4942
    %4966 = vmatmul.bf16.gmra.mxu0 %v4717
    %v4967 = vpop.f32.mrf.mxu0
    %v4968 = vadd.f32 %v4871, %v4967
    %v4969 = vpop.f32.mrf.mxu0
    %v4970 = vadd.f32 %v4873, %v4969
    %4971 = vmatmul.bf16.gmra.mxu0 %v4718
    %v4972 = vpop.f32.mrf.mxu0
    %v4973 = vadd.f32 %v4876, %v4972
    %v4974 = vpop.f32.mrf.mxu0
    %v4975 = vadd.f32 %v4878, %v4974
    %4976 = vmatmul.bf16.gmra.mxu0 %v4719
    %v4977 = vpop.f32.mrf.mxu0
    %v4978 = vadd.f32 %v4881, %v4977
    %v4979 = vpop.f32.mrf.mxu0
    %v4980 = vadd.f32 %v4883, %v4979
    %4981 = vmatmul.bf16.gmra.mxu0 %v4720
    %v4982 = vpop.f32.mrf.mxu0
    %v4983 = vadd.f32 %v4886, %v4982
    %v4984 = vpop.f32.mrf.mxu0
    %v4985 = vadd.f32 %v4888, %v4984
    %4986 = vmatmul.bf16.gmra.mxu0 %v4721
    %v4987 = vpop.f32.mrf.mxu0
    %v4988 = vadd.f32 %v4891, %v4987
    %v4989 = vpop.f32.mrf.mxu0
    %v4990 = vadd.f32 %v4893, %v4989
    %4991 = vmatmul.bf16.gmra.mxu0 %v4722
    %v4992 = vpop.f32.mrf.mxu0
    %v4993 = vadd.f32 %v4896, %v4992
    %v4994 = vpop.f32.mrf.mxu0
    %v4995 = vadd.f32 %v4898, %v4994
    %4996 = vmatmul.bf16.gmra.mxu0 %v4723
    %v4997 = vpop.f32.mrf.mxu0
    %v4998 = vadd.f32 %v4901, %v4997
    %v4999 = vpop.f32.mrf.mxu0
    %v5000 = vadd.f32 %v4903, %v4999
    %5001 = vmatmul.bf16.gmra.mxu0 %v4724
    %v5002 = vpop.f32.mrf.mxu0
    %v5003 = vadd.f32 %v4906, %v5002
    %v5004 = vpop.f32.mrf.mxu0
    %v5005 = vadd.f32 %v4908, %v5004
    %5006 = vdwg.mxu0
    %v5007 = vpack.c.bf16 %v4137, %v4135
    %v5008 = vpack.c.bf16 %v4142, %v4140
    %v5009 = vpack.c.bf16 %v4147, %v4145
    %v5010 = vpack.c.bf16 %v4152, %v4150
    %v5011 = vpack.c.bf16 %v4157, %v4155
    %v5012 = vpack.c.bf16 %v4162, %v4160
    %v5013 = vpack.c.bf16 %v4167, %v4165
    %v5014 = vpack.c.bf16 %v4172, %v4170
    %v5015 = vld [vmem:[%s15 + $0x80] sm:$0xf]
    %v5016 = vld [vmem:[%s15 + $0x84] sm:$0xf]
    %v5017 = vld [vmem:[%s15 + $0x88] sm:$0xf]
    %v5018 = vld [vmem:[%s15 + $0x8c] sm:$0xf]
    %v5019 = vld [vmem:[%s15 + $0x90] sm:$0xf]
    %v5020 = vld [vmem:[%s15 + $0x94] sm:$0xf]
    %v5021 = vld [vmem:[%s15 + $0x98] sm:$0xf]
    %v5022 = vld [vmem:[%s15 + $0x9c] sm:$0xf]
    %v5023 = vld [vmem:[%s15 + $0xa0] sm:$0xf]
    %v5024 = vld [vmem:[%s15 + $0xa4] sm:$0xf]
    %v5025 = vld [vmem:[%s15 + $0xa8] sm:$0xf]
    %v5026 = vld [vmem:[%s15 + $0xac] sm:$0xf]
    %v5027 = vld [vmem:[%s15 + $0xb0] sm:$0xf]
    %v5028 = vld [vmem:[%s15 + $0xb4] sm:$0xf]
    %v5029 = vld [vmem:[%s15 + $0xb8] sm:$0xf]
    %v5030 = vld [vmem:[%s15 + $0xbc] sm:$0xf]
    %v5047 = vunpack.c.l.b16 %v5015
    %v5048 = vunpack.c.l.b16 %v5016
    %v5049 = vunpack.c.l.b16 %v5017
    %v5050 = vunpack.c.l.b16 %v5018
    %v5051 = vunpack.c.l.b16 %v5019
    %v5052 = vunpack.c.l.b16 %v5020
    %v5053 = vunpack.c.l.b16 %v5021
    %v5054 = vunpack.c.l.b16 %v5022
    %v5055 = vunpack.c.l.b16 %v5023
    %v5056 = vunpack.c.l.b16 %v5024
    %v5057 = vunpack.c.l.b16 %v5025
    %v5058 = vunpack.c.l.b16 %v5026
    %v5059 = vunpack.c.l.b16 %v5027
    %v5060 = vunpack.c.l.b16 %v5028
    %v5061 = vunpack.c.l.b16 %v5029
    %v5062 = vunpack.c.l.b16 %v5030
    %v5063 = vpack.c.b16 %v5048, %v5047
    %v5064 = vpack.c.b16 %v5050, %v5049
    %v5065 = vpack.c.b16 %v5052, %v5051
    %v5066 = vpack.c.b16 %v5054, %v5053
    %v5067 = vpack.c.b16 %v5056, %v5055
    %v5068 = vpack.c.b16 %v5058, %v5057
    %v5069 = vpack.c.b16 %v5060, %v5059
    %v5070 = vpack.c.b16 %v5062, %v5061
    %5079 = vmatpush.bf16.msra.mxu0 %v5070
    %5080 = vmatpush.bf16.msra.mxu0 %v5069
    %5081 = vmatpush.bf16.msra.mxu0 %v5068
    %5082 = vmatpush.bf16.msra.mxu0 %v5067
    %5083 = vmatpush.bf16.msra.mxu0 %v5066
    %5084 = vmatpush.bf16.msra.mxu0 %v5065
    %5085 = vmatpush.bf16.msra.mxu0 %v5064
    %5086 = vmatpush.bf16.msra.mxu0 %v5063
    %5087 = vmatmul.bf16.gmra.mxu0 %v5007
    %v5088 = vpop.f32.mrf.mxu0
    %v5089 = vadd.f32 0.0, %v5088
    %v5090 = vpop.f32.mrf.mxu0
    %v5091 = vadd.f32 0.0, %v5090
    %5092 = vmatmul.bf16.gmra.mxu0 %v5008
    %v5093 = vpop.f32.mrf.mxu0
    %v5094 = vadd.f32 0.0, %v5093
    %v5095 = vpop.f32.mrf.mxu0
    %v5096 = vadd.f32 0.0, %v5095
    %5097 = vmatmul.bf16.gmra.mxu0 %v5009
    %v5098 = vpop.f32.mrf.mxu0
    %v5099 = vadd.f32 0.0, %v5098
    %v5100 = vpop.f32.mrf.mxu0
    %v5101 = vadd.f32 0.0, %v5100
    %5102 = vmatmul.bf16.gmra.mxu0 %v5010
    %v5103 = vpop.f32.mrf.mxu0
    %v5104 = vadd.f32 0.0, %v5103
    %v5105 = vpop.f32.mrf.mxu0
    %v5106 = vadd.f32 0.0, %v5105
    %5107 = vmatmul.bf16.gmra.mxu0 %v5011
    %v5108 = vpop.f32.mrf.mxu0
    %v5109 = vadd.f32 0.0, %v5108
    %v5110 = vpop.f32.mrf.mxu0
    %v5111 = vadd.f32 0.0, %v5110
    %5112 = vmatmul.bf16.gmra.mxu0 %v5012
    %v5113 = vpop.f32.mrf.mxu0
    %v5114 = vadd.f32 0.0, %v5113
    %v5115 = vpop.f32.mrf.mxu0
    %v5116 = vadd.f32 0.0, %v5115
    %5117 = vmatmul.bf16.gmra.mxu0 %v5013
    %v5118 = vpop.f32.mrf.mxu0
    %v5119 = vadd.f32 0.0, %v5118
    %v5120 = vpop.f32.mrf.mxu0
    %v5121 = vadd.f32 0.0, %v5120
    %5122 = vmatmul.bf16.gmra.mxu0 %v5014
    %v5123 = vpop.f32.mrf.mxu0
    %v5124 = vadd.f32 0.0, %v5123
    %v5125 = vpop.f32.mrf.mxu0
    %v5126 = vadd.f32 0.0, %v5125
    %5127 = vdwg.mxu0
    %v5128 = vadd.f32 %v4968, %v5089
    %v5129 = vadd.f32 %v4970, %v5091
    %v5130 = vadd.f32 %v4973, %v5094
    %v5131 = vadd.f32 %v4975, %v5096
    %v5132 = vadd.f32 %v4978, %v5099
    %v5133 = vadd.f32 %v4980, %v5101
    %v5134 = vadd.f32 %v4983, %v5104
    %v5135 = vadd.f32 %v4985, %v5106
    %v5136 = vadd.f32 %v4988, %v5109
    %v5137 = vadd.f32 %v4990, %v5111
    %v5138 = vadd.f32 %v4993, %v5114
    %v5139 = vadd.f32 %v4995, %v5116
    %v5140 = vadd.f32 %v4998, %v5119
    %v5141 = vadd.f32 %v5000, %v5121
    %v5142 = vadd.f32 %v5003, %v5124
    %v5143 = vadd.f32 %v5005, %v5126
    %v5144 = vrot.slane %v4135, 1
    %v5145 = vrot.slane %v4137, 1
    %v5146 = vrot.slane %v4140, 1
    %v5147 = vrot.slane %v4142, 1
    %v5148 = vrot.slane %v4145, 1
    %v5149 = vrot.slane %v4147, 1
    %v5150 = vrot.slane %v4150, 1
    %v5151 = vrot.slane %v4152, 1
    %v5152 = vrot.slane %v4155, 1
    %v5153 = vrot.slane %v4157, 1
    %v5154 = vrot.slane %v4160, 1
    %v5155 = vrot.slane %v4162, 1
    %v5156 = vrot.slane %v4165, 1
    %v5157 = vrot.slane %v4167, 1
    %v5158 = vrot.slane %v4170, 1
    %v5159 = vrot.slane %v4172, 1
    %v5160 = vsel %vm688, %v5158, %v5159
    %v5161 = vsel %vm688, %v5157, %v5158
    %v5162 = vsel %vm688, %v5156, %v5157
    %v5163 = vsel %vm688, %v5155, %v5156
    %v5164 = vsel %vm688, %v5154, %v5155
    %v5165 = vsel %vm688, %v5153, %v5154
    %v5166 = vsel %vm688, %v5152, %v5153
    %v5167 = vsel %vm688, %v5151, %v5152
    %v5168 = vsel %vm688, %v5150, %v5151
    %v5169 = vsel %vm688, %v5149, %v5150
    %v5170 = vsel %vm688, %v5148, %v5149
    %v5171 = vsel %vm688, %v5147, %v5148
    %v5172 = vsel %vm688, %v5146, %v5147
    %v5173 = vsel %vm688, %v5145, %v5146
    %v5174 = vsel %vm688, %v5144, %v5145
    %v5175 = vsel %vm688, %v5159, %v5144
    %v5176 = vsel %vm737, %v5174, 0.0
    %v5177 = vsel %vm738, %v5173, 0.0
    %v5178 = vsel %vm739, %v5172, 0.0
    %v5179 = vsel %vm740, %v5171, 0.0
    %v5180 = vsel %vm741, %v5170, 0.0
    %v5181 = vsel %vm742, %v5169, 0.0
    %v5182 = vsel %vm743, %v5168, 0.0
    %v5183 = vsel %vm744, %v5167, 0.0
    %v5184 = vsel %vm745, %v5166, 0.0
    %v5185 = vsel %vm746, %v5165, 0.0
    %v5186 = vsel %vm747, %v5164, 0.0
    %v5187 = vsel %vm748, %v5163, 0.0
    %v5188 = vsel %vm749, %v5162, 0.0
    %v5189 = vsel %vm750, %v5161, 0.0
    %v5190 = vsel %vm751, %v5160, 0.0
    %v5191 = vsel %vm752, %v5175, 0.0
    %v5192 = vpack.c.bf16 %v5177, %v5176
    %v5193 = vpack.c.bf16 %v5179, %v5178
    %v5194 = vpack.c.bf16 %v5181, %v5180
    %v5195 = vpack.c.bf16 %v5183, %v5182
    %v5196 = vpack.c.bf16 %v5185, %v5184
    %v5197 = vpack.c.bf16 %v5187, %v5186
    %v5198 = vpack.c.bf16 %v5189, %v5188
    %v5199 = vpack.c.bf16 %v5191, %v5190
    %v5200 = vld [vmem:[%s15 + $0xc0] sm:$0xf]
    %v5201 = vld [vmem:[%s15 + $0xc4] sm:$0xf]
    %v5202 = vld [vmem:[%s15 + $0xc8] sm:$0xf]
    %v5203 = vld [vmem:[%s15 + $0xcc] sm:$0xf]
    %v5204 = vld [vmem:[%s15 + $0xd0] sm:$0xf]
    %v5205 = vld [vmem:[%s15 + $0xd4] sm:$0xf]
    %v5206 = vld [vmem:[%s15 + $0xd8] sm:$0xf]
    %v5207 = vld [vmem:[%s15 + $0xdc] sm:$0xf]
    %v5208 = vld [vmem:[%s15 + $0xe0] sm:$0xf]
    %v5209 = vld [vmem:[%s15 + $0xe4] sm:$0xf]
    %v5210 = vld [vmem:[%s15 + $0xe8] sm:$0xf]
    %v5211 = vld [vmem:[%s15 + $0xec] sm:$0xf]
    %v5212 = vld [vmem:[%s15 + $0xf0] sm:$0xf]
    %v5213 = vld [vmem:[%s15 + $0xf4] sm:$0xf]
    %v5214 = vld [vmem:[%s15 + $0xf8] sm:$0xf]
    %v5215 = vld [vmem:[%s15 + $0xfc] sm:$0xf]
    %v5232 = vunpack.c.l.b16 %v5200
    %v5233 = vunpack.c.l.b16 %v5201
    %v5234 = vunpack.c.l.b16 %v5202
    %v5235 = vunpack.c.l.b16 %v5203
    %v5236 = vunpack.c.l.b16 %v5204
    %v5237 = vunpack.c.l.b16 %v5205
    %v5238 = vunpack.c.l.b16 %v5206
    %v5239 = vunpack.c.l.b16 %v5207
    %v5240 = vunpack.c.l.b16 %v5208
    %v5241 = vunpack.c.l.b16 %v5209
    %v5242 = vunpack.c.l.b16 %v5210
    %v5243 = vunpack.c.l.b16 %v5211
    %v5244 = vunpack.c.l.b16 %v5212
    %v5245 = vunpack.c.l.b16 %v5213
    %v5246 = vunpack.c.l.b16 %v5214
    %v5247 = vunpack.c.l.b16 %v5215
    %v5248 = vpack.c.b16 %v5233, %v5232
    %v5249 = vpack.c.b16 %v5235, %v5234
    %v5250 = vpack.c.b16 %v5237, %v5236
    %v5251 = vpack.c.b16 %v5239, %v5238
    %v5252 = vpack.c.b16 %v5241, %v5240
    %v5253 = vpack.c.b16 %v5243, %v5242
    %v5254 = vpack.c.b16 %v5245, %v5244
    %v5255 = vpack.c.b16 %v5247, %v5246
    %5264 = vmatpush.bf16.msra.mxu0 %v5255
    %5265 = vmatpush.bf16.msra.mxu0 %v5254
    %5266 = vmatpush.bf16.msra.mxu0 %v5253
    %5267 = vmatpush.bf16.msra.mxu0 %v5252
    %5268 = vmatpush.bf16.msra.mxu0 %v5251
    %5269 = vmatpush.bf16.msra.mxu0 %v5250
    %5270 = vmatpush.bf16.msra.mxu0 %v5249
    %5271 = vmatpush.bf16.msra.mxu0 %v5248
    %5272 = vmatmul.bf16.gmra.mxu0 %v5192
    %v5273 = vpop.f32.mrf.mxu0
    %v5274 = vadd.f32 0.0, %v5273
    %v5275 = vpop.f32.mrf.mxu0
    %v5276 = vadd.f32 0.0, %v5275
    %5277 = vmatmul.bf16.gmra.mxu0 %v5193
    %v5278 = vpop.f32.mrf.mxu0
    %v5279 = vadd.f32 0.0, %v5278
    %v5280 = vpop.f32.mrf.mxu0
    %v5281 = vadd.f32 0.0, %v5280
    %5282 = vmatmul.bf16.gmra.mxu0 %v5194
    %v5283 = vpop.f32.mrf.mxu0
    %v5284 = vadd.f32 0.0, %v5283
    %v5285 = vpop.f32.mrf.mxu0
    %v5286 = vadd.f32 0.0, %v5285
    %5287 = vmatmul.bf16.gmra.mxu0 %v5195
    %v5288 = vpop.f32.mrf.mxu0
    %v5289 = vadd.f32 0.0, %v5288
    %v5290 = vpop.f32.mrf.mxu0
    %v5291 = vadd.f32 0.0, %v5290
    %5292 = vmatmul.bf16.gmra.mxu0 %v5196
    %v5293 = vpop.f32.mrf.mxu0
    %v5294 = vadd.f32 0.0, %v5293
    %v5295 = vpop.f32.mrf.mxu0
    %v5296 = vadd.f32 0.0, %v5295
    %5297 = vmatmul.bf16.gmra.mxu0 %v5197
    %v5298 = vpop.f32.mrf.mxu0
    %v5299 = vadd.f32 0.0, %v5298
    %v5300 = vpop.f32.mrf.mxu0
    %v5301 = vadd.f32 0.0, %v5300
    %5302 = vmatmul.bf16.gmra.mxu0 %v5198
    %v5303 = vpop.f32.mrf.mxu0
    %v5304 = vadd.f32 0.0, %v5303
    %v5305 = vpop.f32.mrf.mxu0
    %v5306 = vadd.f32 0.0, %v5305
    %5307 = vmatmul.bf16.gmra.mxu0 %v5199
    %v5308 = vpop.f32.mrf.mxu0
    %v5309 = vadd.f32 0.0, %v5308
    %v5310 = vpop.f32.mrf.mxu0
    %v5311 = vadd.f32 0.0, %v5310
    %5312 = vdwg.mxu0
    %v5313 = vadd.f32 %v5128, %v5274
    %v5314 = vadd.f32 %v5129, %v5276
    %v5315 = vadd.f32 %v5130, %v5279
    %v5316 = vadd.f32 %v5131, %v5281
    %v5317 = vadd.f32 %v5132, %v5284
    %v5318 = vadd.f32 %v5133, %v5286
    %v5319 = vadd.f32 %v5134, %v5289
    %v5320 = vadd.f32 %v5135, %v5291
    %v5321 = vadd.f32 %v5136, %v5294
    %v5322 = vadd.f32 %v5137, %v5296
    %v5323 = vadd.f32 %v5138, %v5299
    %v5324 = vadd.f32 %v5139, %v5301
    %v5325 = vadd.f32 %v5140, %v5304
    %v5326 = vadd.f32 %v5141, %v5306
    %v5327 = vadd.f32 %v5142, %v5309
    %v5328 = vadd.f32 %v5143, %v5311
    %v5329 = vrot.slane %v4135, 2
    %v5330 = vrot.slane %v4137, 2
    %v5331 = vrot.slane %v4140, 2
    %v5332 = vrot.slane %v4142, 2
    %v5333 = vrot.slane %v4145, 2
    %v5334 = vrot.slane %v4147, 2
    %v5335 = vrot.slane %v4150, 2
    %v5336 = vrot.slane %v4152, 2
    %v5337 = vrot.slane %v4155, 2
    %v5338 = vrot.slane %v4157, 2
    %v5339 = vrot.slane %v4160, 2
    %v5340 = vrot.slane %v4162, 2
    %v5341 = vrot.slane %v4165, 2
    %v5342 = vrot.slane %v4167, 2
    %v5343 = vrot.slane %v4170, 2
    %v5344 = vrot.slane %v4172, 2
    %v5345 = vsel %vm785, %v5343, %v5344
    %v5346 = vsel %vm785, %v5342, %v5343
    %v5347 = vsel %vm785, %v5341, %v5342
    %v5348 = vsel %vm785, %v5340, %v5341
    %v5349 = vsel %vm785, %v5339, %v5340
    %v5350 = vsel %vm785, %v5338, %v5339
    %v5351 = vsel %vm785, %v5337, %v5338
    %v5352 = vsel %vm785, %v5336, %v5337
    %v5353 = vsel %vm785, %v5335, %v5336
    %v5354 = vsel %vm785, %v5334, %v5335
    %v5355 = vsel %vm785, %v5333, %v5334
    %v5356 = vsel %vm785, %v5332, %v5333
    %v5357 = vsel %vm785, %v5331, %v5332
    %v5358 = vsel %vm785, %v5330, %v5331
    %v5359 = vsel %vm785, %v5329, %v5330
    %v5360 = vsel %vm785, %v5344, %v5329
    %v5361 = vsel %vm834, %v5359, 0.0
    %v5362 = vsel %vm835, %v5358, 0.0
    %v5363 = vsel %vm836, %v5357, 0.0
    %v5364 = vsel %vm837, %v5356, 0.0
    %v5365 = vsel %vm838, %v5355, 0.0
    %v5366 = vsel %vm839, %v5354, 0.0
    %v5367 = vsel %vm840, %v5353, 0.0
    %v5368 = vsel %vm841, %v5352, 0.0
    %v5369 = vsel %vm842, %v5351, 0.0
    %v5370 = vsel %vm843, %v5350, 0.0
    %v5371 = vsel %vm844, %v5349, 0.0
    %v5372 = vsel %vm845, %v5348, 0.0
    %v5373 = vsel %vm846, %v5347, 0.0
    %v5374 = vsel %vm847, %v5346, 0.0
    %v5375 = vsel %vm848, %v5345, 0.0
    %v5376 = vsel %vm849, %v5360, 0.0
    %v5377 = vpack.c.bf16 %v5362, %v5361
    %v5378 = vpack.c.bf16 %v5364, %v5363
    %v5379 = vpack.c.bf16 %v5366, %v5365
    %v5380 = vpack.c.bf16 %v5368, %v5367
    %v5381 = vpack.c.bf16 %v5370, %v5369
    %v5382 = vpack.c.bf16 %v5372, %v5371
    %v5383 = vpack.c.bf16 %v5374, %v5373
    %v5384 = vpack.c.bf16 %v5376, %v5375
    %v5385 = vld [vmem:[%s15 + $0x100] sm:$0xf]
    %v5386 = vld [vmem:[%s15 + $0x104] sm:$0xf]
    %v5387 = vld [vmem:[%s15 + $0x108] sm:$0xf]
    %v5388 = vld [vmem:[%s15 + $0x10c] sm:$0xf]
    %v5389 = vld [vmem:[%s15 + $0x110] sm:$0xf]
    %v5390 = vld [vmem:[%s15 + $0x114] sm:$0xf]
    %v5391 = vld [vmem:[%s15 + $0x118] sm:$0xf]
    %v5392 = vld [vmem:[%s15 + $0x11c] sm:$0xf]
    %v5393 = vld [vmem:[%s15 + $0x120] sm:$0xf]
    %v5394 = vld [vmem:[%s15 + $0x124] sm:$0xf]
    %v5395 = vld [vmem:[%s15 + $0x128] sm:$0xf]
    %v5396 = vld [vmem:[%s15 + $0x12c] sm:$0xf]
    %v5397 = vld [vmem:[%s15 + $0x130] sm:$0xf]
    %v5398 = vld [vmem:[%s15 + $0x134] sm:$0xf]
    %v5399 = vld [vmem:[%s15 + $0x138] sm:$0xf]
    %v5400 = vld [vmem:[%s15 + $0x13c] sm:$0xf]
    %v5417 = vunpack.c.l.b16 %v5385
    %v5418 = vunpack.c.l.b16 %v5386
    %v5419 = vunpack.c.l.b16 %v5387
    %v5420 = vunpack.c.l.b16 %v5388
    %v5421 = vunpack.c.l.b16 %v5389
    %v5422 = vunpack.c.l.b16 %v5390
    %v5423 = vunpack.c.l.b16 %v5391
    %v5424 = vunpack.c.l.b16 %v5392
    %v5425 = vunpack.c.l.b16 %v5393
    %v5426 = vunpack.c.l.b16 %v5394
    %v5427 = vunpack.c.l.b16 %v5395
    %v5428 = vunpack.c.l.b16 %v5396
    %v5429 = vunpack.c.l.b16 %v5397
    %v5430 = vunpack.c.l.b16 %v5398
    %v5431 = vunpack.c.l.b16 %v5399
    %v5432 = vunpack.c.l.b16 %v5400
    %v5433 = vpack.c.b16 %v5418, %v5417
    %v5434 = vpack.c.b16 %v5420, %v5419
    %v5435 = vpack.c.b16 %v5422, %v5421
    %v5436 = vpack.c.b16 %v5424, %v5423
    %v5437 = vpack.c.b16 %v5426, %v5425
    %v5438 = vpack.c.b16 %v5428, %v5427
    %v5439 = vpack.c.b16 %v5430, %v5429
    %v5440 = vpack.c.b16 %v5432, %v5431
    %5449 = vmatpush.bf16.msra.mxu0 %v5440
    %5450 = vmatpush.bf16.msra.mxu0 %v5439
    %5451 = vmatpush.bf16.msra.mxu0 %v5438
    %5452 = vmatpush.bf16.msra.mxu0 %v5437
    %5453 = vmatpush.bf16.msra.mxu0 %v5436
    %5454 = vmatpush.bf16.msra.mxu0 %v5435
    %5455 = vmatpush.bf16.msra.mxu0 %v5434
    %5456 = vmatpush.bf16.msra.mxu0 %v5433
    %5457 = vmatmul.bf16.gmra.mxu0 %v5377
    %v5458 = vpop.f32.mrf.mxu0
    %v5459 = vadd.f32 0.0, %v5458
    %v5460 = vpop.f32.mrf.mxu0
    %v5461 = vadd.f32 0.0, %v5460
    %5462 = vmatmul.bf16.gmra.mxu0 %v5378
    %v5463 = vpop.f32.mrf.mxu0
    %v5464 = vadd.f32 0.0, %v5463
    %v5465 = vpop.f32.mrf.mxu0
    %v5466 = vadd.f32 0.0, %v5465
    %5467 = vmatmul.bf16.gmra.mxu0 %v5379
    %v5468 = vpop.f32.mrf.mxu0
    %v5469 = vadd.f32 0.0, %v5468
    %v5470 = vpop.f32.mrf.mxu0
    %v5471 = vadd.f32 0.0, %v5470
    %5472 = vmatmul.bf16.gmra.mxu0 %v5380
    %v5473 = vpop.f32.mrf.mxu0
    %v5474 = vadd.f32 0.0, %v5473
    %v5475 = vpop.f32.mrf.mxu0
    %v5476 = vadd.f32 0.0, %v5475
    %5477 = vmatmul.bf16.gmra.mxu0 %v5381
    %v5478 = vpop.f32.mrf.mxu0
    %v5479 = vadd.f32 0.0, %v5478
    %v5480 = vpop.f32.mrf.mxu0
    %v5481 = vadd.f32 0.0, %v5480
    %5482 = vmatmul.bf16.gmra.mxu0 %v5382
    %v5483 = vpop.f32.mrf.mxu0
    %v5484 = vadd.f32 0.0, %v5483
    %v5485 = vpop.f32.mrf.mxu0
    %v5486 = vadd.f32 0.0, %v5485
    %5487 = vmatmul.bf16.gmra.mxu0 %v5383
    %v5488 = vpop.f32.mrf.mxu0
    %v5489 = vadd.f32 0.0, %v5488
    %v5490 = vpop.f32.mrf.mxu0
    %v5491 = vadd.f32 0.0, %v5490
    %5492 = vmatmul.bf16.gmra.mxu0 %v5384
    %v5493 = vpop.f32.mrf.mxu0
    %v5494 = vadd.f32 0.0, %v5493
    %v5495 = vpop.f32.mrf.mxu0
    %v5496 = vadd.f32 0.0, %v5495
    %5497 = vdwg.mxu0
    %v5498 = vadd.f32 %v5313, %v5459
    %v5499 = vadd.f32 %v5314, %v5461
    %v5500 = vadd.f32 %v5315, %v5464
    %v5501 = vadd.f32 %v5316, %v5466
    %v5502 = vadd.f32 %v5317, %v5469
    %v5503 = vadd.f32 %v5318, %v5471
    %v5504 = vadd.f32 %v5319, %v5474
    %v5505 = vadd.f32 %v5320, %v5476
    %v5506 = vadd.f32 %v5321, %v5479
    %v5507 = vadd.f32 %v5322, %v5481
    %v5508 = vadd.f32 %v5323, %v5484
    %v5509 = vadd.f32 %v5324, %v5486
    %v5510 = vadd.f32 %v5325, %v5489
    %v5511 = vadd.f32 %v5326, %v5491
    %v5512 = vadd.f32 %v5327, %v5494
    %v5513 = vadd.f32 %v5328, %v5496
    %v5514 = vld [vmem:[%s16] sm:$0x1]
    %v5516 = vperm.slane %v5514, 0
    %v5518 = vadd.f32 %v5498, %v5516
    %v5519 = vadd.f32 %v5499, %v5516
    %v5520 = vadd.f32 %v5500, %v5516
    %v5521 = vadd.f32 %v5501, %v5516
    %v5522 = vadd.f32 %v5502, %v5516
    %v5523 = vadd.f32 %v5503, %v5516
    %v5524 = vadd.f32 %v5504, %v5516
    %v5525 = vadd.f32 %v5505, %v5516
    %v5526 = vadd.f32 %v5506, %v5516
    %v5527 = vadd.f32 %v5507, %v5516
    %v5528 = vadd.f32 %v5508, %v5516
    %v5529 = vadd.f32 %v5509, %v5516
    %v5530 = vadd.f32 %v5510, %v5516
    %v5531 = vadd.f32 %v5511, %v5516
    %v5532 = vadd.f32 %v5512, %v5516
    %v5533 = vadd.f32 %v5513, %v5516
    %v5534 = vrot.slane %v3504, 7
    %v5535 = vrot.slane %v3520, 7
    %v5536 = vrot.slane %v3505, 7
    %v5537 = vrot.slane %v3521, 7
    %v5538 = vrot.slane %v3506, 7
    %v5539 = vrot.slane %v3522, 7
    %v5540 = vrot.slane %v3507, 7
    %v5541 = vrot.slane %v3523, 7
    %v5542 = vrot.slane %v3508, 7
    %v5543 = vrot.slane %v3524, 7
    %v5544 = vrot.slane %v3509, 7
    %v5545 = vrot.slane %v3525, 7
    %v5546 = vrot.slane %v3510, 7
    %v5547 = vrot.slane %v3526, 7
    %v5548 = vrot.slane %v3511, 7
    %v5549 = vrot.slane %v3527, 7
    %v5550 = vrot.slane %v3512, 7
    %v5551 = vrot.slane %v3528, 7
    %v5552 = vrot.slane %v3513, 7
    %v5553 = vrot.slane %v3529, 7
    %v5554 = vrot.slane %v3514, 7
    %v5555 = vrot.slane %v3530, 7
    %v5556 = vrot.slane %v3515, 7
    %v5557 = vrot.slane %v3531, 7
    %v5558 = vrot.slane %v3516, 7
    %v5559 = vrot.slane %v3532, 7
    %v5560 = vrot.slane %v3517, 7
    %v5561 = vrot.slane %v3533, 7
    %v5562 = vrot.slane %v3518, 7
    %v5563 = vrot.slane %v3534, 7
    %v5564 = vrot.slane %v3519, 7
    %v5565 = vrot.slane %v3535, 7
    %v5566 = vsel %vm591, %v5562, %v5564
    %v5567 = vsel %vm591, %v5563, %v5565
    %v5568 = vsel %vm591, %v5560, %v5562
    %v5569 = vsel %vm591, %v5561, %v5563
    %v5570 = vsel %vm591, %v5558, %v5560
    %v5571 = vsel %vm591, %v5559, %v5561
    %v5572 = vsel %vm591, %v5556, %v5558
    %v5573 = vsel %vm591, %v5557, %v5559
    %v5574 = vsel %vm591, %v5554, %v5556
    %v5575 = vsel %vm591, %v5555, %v5557
    %v5576 = vsel %vm591, %v5552, %v5554
    %v5577 = vsel %vm591, %v5553, %v5555
    %v5578 = vsel %vm591, %v5550, %v5552
    %v5579 = vsel %vm591, %v5551, %v5553
    %v5580 = vsel %vm591, %v5548, %v5550
    %v5581 = vsel %vm591, %v5549, %v5551
    %v5582 = vsel %vm591, %v5546, %v5548
    %v5583 = vsel %vm591, %v5547, %v5549
    %v5584 = vsel %vm591, %v5544, %v5546
    %v5585 = vsel %vm591, %v5545, %v5547
    %v5586 = vsel %vm591, %v5542, %v5544
    %v5587 = vsel %vm591, %v5543, %v5545
    %v5588 = vsel %vm591, %v5540, %v5542
    %v5589 = vsel %vm591, %v5541, %v5543
    %v5590 = vsel %vm591, %v5538, %v5540
    %v5591 = vsel %vm591, %v5539, %v5541
    %v5592 = vsel %vm591, %v5536, %v5538
    %v5593 = vsel %vm591, %v5537, %v5539
    %v5594 = vsel %vm591, %v5534, %v5536
    %v5595 = vsel %vm591, %v5535, %v5537
    %v5596 = vsel %vm591, %v5564, %v5534
    %v5597 = vsel %vm591, %v5565, %v5535
    %v5598 = vsel %vm640, %v5596, %v3504
    %v5599 = vsel %vm640, %v5597, %v3520
    %v5600 = vsel %vm641, %v5594, %v3505
    %v5601 = vsel %vm641, %v5595, %v3521
    %v5602 = vsel %vm642, %v5592, %v3506
    %v5603 = vsel %vm642, %v5593, %v3522
    %v5604 = vsel %vm643, %v5590, %v3507
    %v5605 = vsel %vm643, %v5591, %v3523
    %v5606 = vsel %vm644, %v5588, %v3508
    %v5607 = vsel %vm644, %v5589, %v3524
    %v5608 = vsel %vm645, %v5586, %v3509
    %v5609 = vsel %vm645, %v5587, %v3525
    %v5610 = vsel %vm646, %v5584, %v3510
    %v5611 = vsel %vm646, %v5585, %v3526
    %v5612 = vsel %vm647, %v5582, %v3511
    %v5613 = vsel %vm647, %v5583, %v3527
    %v5614 = vsel %vm648, %v5580, %v3512
    %v5615 = vsel %vm648, %v5581, %v3528
    %v5616 = vsel %vm649, %v5578, %v3513
    %v5617 = vsel %vm649, %v5579, %v3529
    %v5618 = vsel %vm650, %v5576, %v3514
    %v5619 = vsel %vm650, %v5577, %v3530
    %v5620 = vsel %vm651, %v5574, %v3515
    %v5621 = vsel %vm651, %v5575, %v3531
    %v5622 = vsel %vm652, %v5572, %v3516
    %v5623 = vsel %vm652, %v5573, %v3532
    %v5624 = vsel %vm653, %v5570, %v3517
    %v5625 = vsel %vm653, %v5571, %v3533
    %v5626 = vsel %vm654, %v5568, %v3518
    %v5627 = vsel %vm654, %v5569, %v3534
    %v5628 = vsel %vm655, %v5566, %v3519
    %v5629 = vsel %vm655, %v5567, %v3535
    %v5630 = vmax.f32 %v5598, %v3504
    %v5631 = vmax.f32 %v5599, %v3520
    %v5632 = vmax.f32 %v5600, %v3505
    %v5633 = vmax.f32 %v5601, %v3521
    %v5634 = vmax.f32 %v5602, %v3506
    %v5635 = vmax.f32 %v5603, %v3522
    %v5636 = vmax.f32 %v5604, %v3507
    %v5637 = vmax.f32 %v5605, %v3523
    %v5638 = vmax.f32 %v5606, %v3508
    %v5639 = vmax.f32 %v5607, %v3524
    %v5640 = vmax.f32 %v5608, %v3509
    %v5641 = vmax.f32 %v5609, %v3525
    %v5642 = vmax.f32 %v5610, %v3510
    %v5643 = vmax.f32 %v5611, %v3526
    %v5644 = vmax.f32 %v5612, %v3511
    %v5645 = vmax.f32 %v5613, %v3527
    %v5646 = vmax.f32 %v5614, %v3512
    %v5647 = vmax.f32 %v5615, %v3528
    %v5648 = vmax.f32 %v5616, %v3513
    %v5649 = vmax.f32 %v5617, %v3529
    %v5650 = vmax.f32 %v5618, %v3514
    %v5651 = vmax.f32 %v5619, %v3530
    %v5652 = vmax.f32 %v5620, %v3515
    %v5653 = vmax.f32 %v5621, %v3531
    %v5654 = vmax.f32 %v5622, %v3516
    %v5655 = vmax.f32 %v5623, %v3532
    %v5656 = vmax.f32 %v5624, %v3517
    %v5657 = vmax.f32 %v5625, %v3533
    %v5658 = vmax.f32 %v5626, %v3518
    %v5659 = vmax.f32 %v5627, %v3534
    %v5660 = vmax.f32 %v5628, %v3519
    %v5661 = vmax.f32 %v5629, %v3535
    %v5662 = vrot.slane %v3504, 1
    %v5663 = vrot.slane %v3520, 1
    %v5664 = vrot.slane %v3505, 1
    %v5665 = vrot.slane %v3521, 1
    %v5666 = vrot.slane %v3506, 1
    %v5667 = vrot.slane %v3522, 1
    %v5668 = vrot.slane %v3507, 1
    %v5669 = vrot.slane %v3523, 1
    %v5670 = vrot.slane %v3508, 1
    %v5671 = vrot.slane %v3524, 1
    %v5672 = vrot.slane %v3509, 1
    %v5673 = vrot.slane %v3525, 1
    %v5674 = vrot.slane %v3510, 1
    %v5675 = vrot.slane %v3526, 1
    %v5676 = vrot.slane %v3511, 1
    %v5677 = vrot.slane %v3527, 1
    %v5678 = vrot.slane %v3512, 1
    %v5679 = vrot.slane %v3528, 1
    %v5680 = vrot.slane %v3513, 1
    %v5681 = vrot.slane %v3529, 1
    %v5682 = vrot.slane %v3514, 1
    %v5683 = vrot.slane %v3530, 1
    %v5684 = vrot.slane %v3515, 1
    %v5685 = vrot.slane %v3531, 1
    %v5686 = vrot.slane %v3516, 1
    %v5687 = vrot.slane %v3532, 1
    %v5688 = vrot.slane %v3517, 1
    %v5689 = vrot.slane %v3533, 1
    %v5690 = vrot.slane %v3518, 1
    %v5691 = vrot.slane %v3534, 1
    %v5692 = vrot.slane %v3519, 1
    %v5693 = vrot.slane %v3535, 1
    %v5694 = vsel %vm688, %v5690, %v5692
    %v5695 = vsel %vm688, %v5691, %v5693
    %v5696 = vsel %vm688, %v5688, %v5690
    %v5697 = vsel %vm688, %v5689, %v5691
    %v5698 = vsel %vm688, %v5686, %v5688
    %v5699 = vsel %vm688, %v5687, %v5689
    %v5700 = vsel %vm688, %v5684, %v5686
    %v5701 = vsel %vm688, %v5685, %v5687
    %v5702 = vsel %vm688, %v5682, %v5684
    %v5703 = vsel %vm688, %v5683, %v5685
    %v5704 = vsel %vm688, %v5680, %v5682
    %v5705 = vsel %vm688, %v5681, %v5683
    %v5706 = vsel %vm688, %v5678, %v5680
    %v5707 = vsel %vm688, %v5679, %v5681
    %v5708 = vsel %vm688, %v5676, %v5678
    %v5709 = vsel %vm688, %v5677, %v5679
    %v5710 = vsel %vm688, %v5674, %v5676
    %v5711 = vsel %vm688, %v5675, %v5677
    %v5712 = vsel %vm688, %v5672, %v5674
    %v5713 = vsel %vm688, %v5673, %v5675
    %v5714 = vsel %vm688, %v5670, %v5672
    %v5715 = vsel %vm688, %v5671, %v5673
    %v5716 = vsel %vm688, %v5668, %v5670
    %v5717 = vsel %vm688, %v5669, %v5671
    %v5718 = vsel %vm688, %v5666, %v5668
    %v5719 = vsel %vm688, %v5667, %v5669
    %v5720 = vsel %vm688, %v5664, %v5666
    %v5721 = vsel %vm688, %v5665, %v5667
    %v5722 = vsel %vm688, %v5662, %v5664
    %v5723 = vsel %vm688, %v5663, %v5665
    %v5724 = vsel %vm688, %v5692, %v5662
    %v5725 = vsel %vm688, %v5693, %v5663
    %v5726 = vsel %vm737, %v5722, %v3504
    %v5727 = vsel %vm737, %v5723, %v3520
    %v5728 = vsel %vm738, %v5720, %v3505
    %v5729 = vsel %vm738, %v5721, %v3521
    %v5730 = vsel %vm739, %v5718, %v3506
    %v5731 = vsel %vm739, %v5719, %v3522
    %v5732 = vsel %vm740, %v5716, %v3507
    %v5733 = vsel %vm740, %v5717, %v3523
    %v5734 = vsel %vm741, %v5714, %v3508
    %v5735 = vsel %vm741, %v5715, %v3524
    %v5736 = vsel %vm742, %v5712, %v3509
    %v5737 = vsel %vm742, %v5713, %v3525
    %v5738 = vsel %vm743, %v5710, %v3510
    %v5739 = vsel %vm743, %v5711, %v3526
    %v5740 = vsel %vm744, %v5708, %v3511
    %v5741 = vsel %vm744, %v5709, %v3527
    %v5742 = vsel %vm745, %v5706, %v3512
    %v5743 = vsel %vm745, %v5707, %v3528
    %v5744 = vsel %vm746, %v5704, %v3513
    %v5745 = vsel %vm746, %v5705, %v3529
    %v5746 = vsel %vm747, %v5702, %v3514
    %v5747 = vsel %vm747, %v5703, %v3530
    %v5748 = vsel %vm748, %v5700, %v3515
    %v5749 = vsel %vm748, %v5701, %v3531
    %v5750 = vsel %vm749, %v5698, %v3516
    %v5751 = vsel %vm749, %v5699, %v3532
    %v5752 = vsel %vm750, %v5696, %v3517
    %v5753 = vsel %vm750, %v5697, %v3533
    %v5754 = vsel %vm751, %v5694, %v3518
    %v5755 = vsel %vm751, %v5695, %v3534
    %v5756 = vsel %vm752, %v5724, %v3519
    %v5757 = vsel %vm752, %v5725, %v3535
    %v5758 = vmax.f32 %v5630, %v5726
    %v5759 = vmax.f32 %v5631, %v5727
    %v5760 = vmax.f32 %v5632, %v5728
    %v5761 = vmax.f32 %v5633, %v5729
    %v5762 = vmax.f32 %v5634, %v5730
    %v5763 = vmax.f32 %v5635, %v5731
    %v5764 = vmax.f32 %v5636, %v5732
    %v5765 = vmax.f32 %v5637, %v5733
    %v5766 = vmax.f32 %v5638, %v5734
    %v5767 = vmax.f32 %v5639, %v5735
    %v5768 = vmax.f32 %v5640, %v5736
    %v5769 = vmax.f32 %v5641, %v5737
    %v5770 = vmax.f32 %v5642, %v5738
    %v5771 = vmax.f32 %v5643, %v5739
    %v5772 = vmax.f32 %v5644, %v5740
    %v5773 = vmax.f32 %v5645, %v5741
    %v5774 = vmax.f32 %v5646, %v5742
    %v5775 = vmax.f32 %v5647, %v5743
    %v5776 = vmax.f32 %v5648, %v5744
    %v5777 = vmax.f32 %v5649, %v5745
    %v5778 = vmax.f32 %v5650, %v5746
    %v5779 = vmax.f32 %v5651, %v5747
    %v5780 = vmax.f32 %v5652, %v5748
    %v5781 = vmax.f32 %v5653, %v5749
    %v5782 = vmax.f32 %v5654, %v5750
    %v5783 = vmax.f32 %v5655, %v5751
    %v5784 = vmax.f32 %v5656, %v5752
    %v5785 = vmax.f32 %v5657, %v5753
    %v5786 = vmax.f32 %v5658, %v5754
    %v5787 = vmax.f32 %v5659, %v5755
    %v5788 = vmax.f32 %v5660, %v5756
    %v5789 = vmax.f32 %v5661, %v5757
    %v5790 = vpack.c.bf16 %v5760, %v5758
    %v5791 = vpack.c.bf16 %v5761, %v5759
    %v5792 = vpack.c.bf16 %v5764, %v5762
    %v5793 = vpack.c.bf16 %v5765, %v5763
    %v5794 = vpack.c.bf16 %v5768, %v5766
    %v5795 = vpack.c.bf16 %v5769, %v5767
    %v5796 = vpack.c.bf16 %v5772, %v5770
    %v5797 = vpack.c.bf16 %v5773, %v5771
    %v5798 = vpack.c.bf16 %v5776, %v5774
    %v5799 = vpack.c.bf16 %v5777, %v5775
    %v5800 = vpack.c.bf16 %v5780, %v5778
    %v5801 = vpack.c.bf16 %v5781, %v5779
    %v5802 = vpack.c.bf16 %v5784, %v5782
    %v5803 = vpack.c.bf16 %v5785, %v5783
    %v5804 = vpack.c.bf16 %v5788, %v5786
    %v5805 = vpack.c.bf16 %v5789, %v5787
    %v5806 = vld [vmem:[%s17] sm:$0xf]
    %v5807 = vld [vmem:[%s17 + $0x4] sm:$0xf]
    %v5808 = vld [vmem:[%s17 + $0x8] sm:$0xf]
    %v5809 = vld [vmem:[%s17 + $0xc] sm:$0xf]
    %v5810 = vld [vmem:[%s17 + $0x10] sm:$0xf]
    %v5811 = vld [vmem:[%s17 + $0x14] sm:$0xf]
    %v5812 = vld [vmem:[%s17 + $0x18] sm:$0xf]
    %v5813 = vld [vmem:[%s17 + $0x1c] sm:$0xf]
    %v5814 = vld [vmem:[%s17 + $0x20] sm:$0xf]
    %v5815 = vld [vmem:[%s17 + $0x24] sm:$0xf]
    %v5816 = vld [vmem:[%s17 + $0x28] sm:$0xf]
    %v5817 = vld [vmem:[%s17 + $0x2c] sm:$0xf]
    %v5818 = vld [vmem:[%s17 + $0x30] sm:$0xf]
    %v5819 = vld [vmem:[%s17 + $0x34] sm:$0xf]
    %v5820 = vld [vmem:[%s17 + $0x38] sm:$0xf]
    %v5821 = vld [vmem:[%s17 + $0x3c] sm:$0xf]
    %v5822 = vld [vmem:[%s17 + $0x40] sm:$0xf]
    %v5823 = vld [vmem:[%s17 + $0x44] sm:$0xf]
    %v5824 = vld [vmem:[%s17 + $0x48] sm:$0xf]
    %v5825 = vld [vmem:[%s17 + $0x4c] sm:$0xf]
    %v5826 = vld [vmem:[%s17 + $0x50] sm:$0xf]
    %v5827 = vld [vmem:[%s17 + $0x54] sm:$0xf]
    %v5828 = vld [vmem:[%s17 + $0x58] sm:$0xf]
    %v5829 = vld [vmem:[%s17 + $0x5c] sm:$0xf]
    %v5830 = vld [vmem:[%s17 + $0x60] sm:$0xf]
    %v5831 = vld [vmem:[%s17 + $0x64] sm:$0xf]
    %v5832 = vld [vmem:[%s17 + $0x68] sm:$0xf]
    %v5833 = vld [vmem:[%s17 + $0x6c] sm:$0xf]
    %v5834 = vld [vmem:[%s17 + $0x70] sm:$0xf]
    %v5835 = vld [vmem:[%s17 + $0x74] sm:$0xf]
    %v5836 = vld [vmem:[%s17 + $0x78] sm:$0xf]
    %v5837 = vld [vmem:[%s17 + $0x7c] sm:$0xf]
    %v5838 = vld [vmem:[%s18] sm:$0x1]
    %v5840 = vperm.slane %v5838, 0
    %v5874 = vunpack.c.l.b16 %v5806
    %v5875 = vunpack.c.l.b16 %v5807
    %v5876 = vunpack.c.l.b16 %v5808
    %v5877 = vunpack.c.l.b16 %v5809
    %v5878 = vunpack.c.l.b16 %v5810
    %v5879 = vunpack.c.l.b16 %v5811
    %v5880 = vunpack.c.l.b16 %v5812
    %v5881 = vunpack.c.l.b16 %v5813
    %v5882 = vunpack.c.l.b16 %v5814
    %v5883 = vunpack.c.l.b16 %v5815
    %v5884 = vunpack.c.l.b16 %v5816
    %v5885 = vunpack.c.l.b16 %v5817
    %v5886 = vunpack.c.l.b16 %v5818
    %v5887 = vunpack.c.l.b16 %v5819
    %v5888 = vunpack.c.l.b16 %v5820
    %v5889 = vunpack.c.l.b16 %v5821
    %v5890 = vunpack.c.l.b16 %v5822
    %v5891 = vunpack.c.l.b16 %v5823
    %v5892 = vunpack.c.l.b16 %v5824
    %v5893 = vunpack.c.l.b16 %v5825
    %v5894 = vunpack.c.l.b16 %v5826
    %v5895 = vunpack.c.l.b16 %v5827
    %v5896 = vunpack.c.l.b16 %v5828
    %v5897 = vunpack.c.l.b16 %v5829
    %v5898 = vunpack.c.l.b16 %v5830
    %v5899 = vunpack.c.l.b16 %v5831
    %v5900 = vunpack.c.l.b16 %v5832
    %v5901 = vunpack.c.l.b16 %v5833
    %v5902 = vunpack.c.l.b16 %v5834
    %v5903 = vunpack.c.l.b16 %v5835
    %v5904 = vunpack.c.l.b16 %v5836
    %v5905 = vunpack.c.l.b16 %v5837
    %v5906 = vpack.c.b16 %v5875, %v5874
    %v5907 = vpack.c.b16 %v5877, %v5876
    %v5908 = vpack.c.b16 %v5879, %v5878
    %v5909 = vpack.c.b16 %v5881, %v5880
    %v5910 = vpack.c.b16 %v5883, %v5882
    %v5911 = vpack.c.b16 %v5885, %v5884
    %v5912 = vpack.c.b16 %v5887, %v5886
    %v5913 = vpack.c.b16 %v5889, %v5888
    %v5914 = vpack.c.b16 %v5891, %v5890
    %v5915 = vpack.c.b16 %v5893, %v5892
    %v5916 = vpack.c.b16 %v5895, %v5894
    %v5917 = vpack.c.b16 %v5897, %v5896
    %v5918 = vpack.c.b16 %v5899, %v5898
    %v5919 = vpack.c.b16 %v5901, %v5900
    %v5920 = vpack.c.b16 %v5903, %v5902
    %v5921 = vpack.c.b16 %v5905, %v5904
    %5938 = vmatpush.bf16.msra.mxu0 %v5913
    %5939 = vmatpush.bf16.msra.mxu0 %v5912
    %5940 = vmatpush.bf16.msra.mxu0 %v5911
    %5941 = vmatpush.bf16.msra.mxu0 %v5910
    %5942 = vmatpush.bf16.msra.mxu0 %v5909
    %5943 = vmatpush.bf16.msra.mxu0 %v5908
    %5944 = vmatpush.bf16.msra.mxu0 %v5907
    %5945 = vmatpush.bf16.msra.mxu0 %v5906
    %5946 = vmatmul.bf16.gmra.mxu0 %v5790
    %v5947 = vpop.f32.mrf.mxu0
    %v5948 = vadd.f32 %v5840, %v5947
    %v5949 = vpop.f32.mrf.mxu0
    %v5950 = vadd.f32 %v5840, %v5949
    %5951 = vmatmul.bf16.gmra.mxu0 %v5792
    %v5952 = vpop.f32.mrf.mxu0
    %v5953 = vadd.f32 %v5840, %v5952
    %v5954 = vpop.f32.mrf.mxu0
    %v5955 = vadd.f32 %v5840, %v5954
    %5956 = vmatmul.bf16.gmra.mxu0 %v5794
    %v5957 = vpop.f32.mrf.mxu0
    %v5958 = vadd.f32 %v5840, %v5957
    %v5959 = vpop.f32.mrf.mxu0
    %v5960 = vadd.f32 %v5840, %v5959
    %5961 = vmatmul.bf16.gmra.mxu0 %v5796
    %v5962 = vpop.f32.mrf.mxu0
    %v5963 = vadd.f32 %v5840, %v5962
    %v5964 = vpop.f32.mrf.mxu0
    %v5965 = vadd.f32 %v5840, %v5964
    %5966 = vmatmul.bf16.gmra.mxu0 %v5798
    %v5967 = vpop.f32.mrf.mxu0
    %v5968 = vadd.f32 %v5840, %v5967
    %v5969 = vpop.f32.mrf.mxu0
    %v5970 = vadd.f32 %v5840, %v5969
    %5971 = vmatmul.bf16.gmra.mxu0 %v5800
    %v5972 = vpop.f32.mrf.mxu0
    %v5973 = vadd.f32 %v5840, %v5972
    %v5974 = vpop.f32.mrf.mxu0
    %v5975 = vadd.f32 %v5840, %v5974
    %5976 = vmatmul.bf16.gmra.mxu0 %v5802
    %v5977 = vpop.f32.mrf.mxu0
    %v5978 = vadd.f32 %v5840, %v5977
    %v5979 = vpop.f32.mrf.mxu0
    %v5980 = vadd.f32 %v5840, %v5979
    %5981 = vmatmul.bf16.gmra.mxu0 %v5804
    %v5982 = vpop.f32.mrf.mxu0
    %v5983 = vadd.f32 %v5840, %v5982
    %v5984 = vpop.f32.mrf.mxu0
    %v5985 = vadd.f32 %v5840, %v5984
    %5986 = vdwg.mxu0
    %5987 = vmatpush.bf16.msra.mxu0 %v5921
    %5988 = vmatpush.bf16.msra.mxu0 %v5920
    %5989 = vmatpush.bf16.msra.mxu0 %v5919
    %5990 = vmatpush.bf16.msra.mxu0 %v5918
    %5991 = vmatpush.bf16.msra.mxu0 %v5917
    %5992 = vmatpush.bf16.msra.mxu0 %v5916
    %5993 = vmatpush.bf16.msra.mxu0 %v5915
    %5994 = vmatpush.bf16.msra.mxu0 %v5914
    %5995 = vmatmul.bf16.gmra.mxu0 %v5791
    %v5996 = vpop.f32.mrf.mxu0
    %v5997 = vadd.f32 %v5948, %v5996
    %v5998 = vpop.f32.mrf.mxu0
    %v5999 = vadd.f32 %v5950, %v5998
    %6000 = vmatmul.bf16.gmra.mxu0 %v5793
    %v6001 = vpop.f32.mrf.mxu0
    %v6002 = vadd.f32 %v5953, %v6001
    %v6003 = vpop.f32.mrf.mxu0
    %v6004 = vadd.f32 %v5955, %v6003
    %6005 = vmatmul.bf16.gmra.mxu0 %v5795
    %v6006 = vpop.f32.mrf.mxu0
    %v6007 = vadd.f32 %v5958, %v6006
    %v6008 = vpop.f32.mrf.mxu0
    %v6009 = vadd.f32 %v5960, %v6008
    %6010 = vmatmul.bf16.gmra.mxu0 %v5797
    %v6011 = vpop.f32.mrf.mxu0
    %v6012 = vadd.f32 %v5963, %v6011
    %v6013 = vpop.f32.mrf.mxu0
    %v6014 = vadd.f32 %v5965, %v6013
    %6015 = vmatmul.bf16.gmra.mxu0 %v5799
    %v6016 = vpop.f32.mrf.mxu0
    %v6017 = vadd.f32 %v5968, %v6016
    %v6018 = vpop.f32.mrf.mxu0
    %v6019 = vadd.f32 %v5970, %v6018
    %6020 = vmatmul.bf16.gmra.mxu0 %v5801
    %v6021 = vpop.f32.mrf.mxu0
    %v6022 = vadd.f32 %v5973, %v6021
    %v6023 = vpop.f32.mrf.mxu0
    %v6024 = vadd.f32 %v5975, %v6023
    %6025 = vmatmul.bf16.gmra.mxu0 %v5803
    %v6026 = vpop.f32.mrf.mxu0
    %v6027 = vadd.f32 %v5978, %v6026
    %v6028 = vpop.f32.mrf.mxu0
    %v6029 = vadd.f32 %v5980, %v6028
    %6030 = vmatmul.bf16.gmra.mxu0 %v5805
    %v6031 = vpop.f32.mrf.mxu0
    %v6032 = vadd.f32 %v5983, %v6031
    %v6033 = vpop.f32.mrf.mxu0
    %v6034 = vadd.f32 %v5985, %v6033
    %6035 = vdwg.mxu0
    %v6036 = vadd.f32 %v3939, %v3941
    %v6037 = vadd.f32 %v6036, %v3944
    %v6038 = vadd.f32 %v6037, %v3946
    %v6039 = vadd.f32 %v6038, %v3949
    %v6040 = vadd.f32 %v6039, %v3951
    %v6041 = vadd.f32 %v6040, %v3954
    %v6042 = vadd.f32 %v6041, %v3956
    %v6043 = vrot.slane %v6042, 4
    %v6044 = vadd.f32 %v6042, %v6043
    %v6045 = vrot.slane %v6044, 2
    %v6046 = vadd.f32 %v6044, %v6045
    %v6047 = vrot.slane %v6046, 1
    %v6048 = vadd.f32 %v6046, %v6047
    %v6049 = vadd.f32 %v4653, %v4654
    %v6050 = vadd.f32 %v6049, %v4655
    %v6051 = vadd.f32 %v6050, %v4656
    %v6052 = vadd.f32 %v6051, %v4657
    %v6053 = vadd.f32 %v6052, %v4658
    %v6054 = vadd.f32 %v6053, %v4659
    %v6055 = vadd.f32 %v6054, %v4660
    %v6056 = vrot.slane %v6055, 4
    %v6057 = vadd.f32 %v6055, %v6056
    %v6058 = vrot.slane %v6057, 2
    %v6059 = vadd.f32 %v6057, %v6058
    %v6060 = vrot.slane %v6059, 1
    %v6061 = vadd.f32 %v6059, %v6060
    %v6062 = vadd.f32 %v5518, %v5519
    %v6063 = vadd.f32 %v6062, %v5520
    %v6064 = vadd.f32 %v6063, %v5521
    %v6065 = vadd.f32 %v6064, %v5522
    %v6066 = vadd.f32 %v6065, %v5523
    %v6067 = vadd.f32 %v6066, %v5524
    %v6068 = vadd.f32 %v6067, %v5525
    %v6069 = vrot.slane %v6068, 4
    %v6070 = vadd.f32 %v6068, %v6069
    %v6071 = vrot.slane %v6070, 2
    %v6072 = vadd.f32 %v6070, %v6071
    %v6073 = vrot.slane %v6072, 1
    %v6074 = vadd.f32 %v6072, %v6073
    %v6075 = vadd.f32 %v5997, %v5999
    %v6076 = vadd.f32 %v6075, %v6002
    %v6077 = vadd.f32 %v6076, %v6004
    %v6078 = vadd.f32 %v6077, %v6007
    %v6079 = vadd.f32 %v6078, %v6009
    %v6080 = vadd.f32 %v6079, %v6012
    %v6081 = vadd.f32 %v6080, %v6014
    %v6082 = vrot.slane %v6081, 4
    %v6083 = vadd.f32 %v6081, %v6082
    %v6084 = vrot.slane %v6083, 2
    %v6085 = vadd.f32 %v6083, %v6084
    %v6086 = vrot.slane %v6085, 1
    %v6087 = vadd.f32 %v6085, %v6086
    %v6088 = vrcp.pop 64.0
    %v6089 = vmul.f32 64.0, %v6088
    %v6090 = vsub.f32 1.0, %v6089
    %v6091 = vmul.f32 %v6088, %v6090
    %v6092 = vadd.f32 %v6088, %v6091
    %vm6093 = vweird.f32 %v6088
    %v6094 = vsel %vm6093, %v6088, %v6092
    %v6095 = vmul.f32 %v6048, %v6094
    %v6096 = vmul.f32 %v6061, %v6094
    %v6097 = vmul.f32 %v6074, %v6094
    %v6098 = vmul.f32 %v6087, %v6094
    %v6099 = vadd.f32 %v3959, %v3961
    %v6100 = vadd.f32 %v6099, %v3964
    %v6101 = vadd.f32 %v6100, %v3966
    %v6102 = vadd.f32 %v6101, %v3969
    %v6103 = vadd.f32 %v6102, %v3971
    %v6104 = vadd.f32 %v6103, %v3974
    %v6105 = vadd.f32 %v6104, %v3976
    %v6106 = vrot.slane %v6105, 4
    %v6107 = vadd.f32 %v6105, %v6106
    %v6108 = vrot.slane %v6107, 2
    %v6109 = vadd.f32 %v6107, %v6108
    %v6110 = vrot.slane %v6109, 1
    %v6111 = vadd.f32 %v6109, %v6110
    %v6112 = vadd.f32 %v4661, %v4662
    %v6113 = vadd.f32 %v6112, %v4663
    %v6114 = vadd.f32 %v6113, %v4664
    %v6115 = vadd.f32 %v6114, %v4665
    %v6116 = vadd.f32 %v6115, %v4666
    %v6117 = vadd.f32 %v6116, %v4667
    %v6118 = vadd.f32 %v6117, %v4668
    %v6119 = vrot.slane %v6118, 4
    %v6120 = vadd.f32 %v6118, %v6119
    %v6121 = vrot.slane %v6120, 2
    %v6122 = vadd.f32 %v6120, %v6121
    %v6123 = vrot.slane %v6122, 1
    %v6124 = vadd.f32 %v6122, %v6123
    %v6125 = vadd.f32 %v5526, %v5527
    %v6126 = vadd.f32 %v6125, %v5528
    %v6127 = vadd.f32 %v6126, %v5529
    %v6128 = vadd.f32 %v6127, %v5530
    %v6129 = vadd.f32 %v6128, %v5531
    %v6130 = vadd.f32 %v6129, %v5532
    %v6131 = vadd.f32 %v6130, %v5533
    %v6132 = vrot.slane %v6131, 4
    %v6133 = vadd.f32 %v6131, %v6132
    %v6134 = vrot.slane %v6133, 2
    %v6135 = vadd.f32 %v6133, %v6134
    %v6136 = vrot.slane %v6135, 1
    %v6137 = vadd.f32 %v6135, %v6136
    %v6138 = vadd.f32 %v6017, %v6019
    %v6139 = vadd.f32 %v6138, %v6022
    %v6140 = vadd.f32 %v6139, %v6024
    %v6141 = vadd.f32 %v6140, %v6027
    %v6142 = vadd.f32 %v6141, %v6029
    %v6143 = vadd.f32 %v6142, %v6032
    %v6144 = vadd.f32 %v6143, %v6034
    %v6145 = vrot.slane %v6144, 4
    %v6146 = vadd.f32 %v6144, %v6145
    %v6147 = vrot.slane %v6146, 2
    %v6148 = vadd.f32 %v6146, %v6147
    %v6149 = vrot.slane %v6148, 1
    %v6150 = vadd.f32 %v6148, %v6149
    %v6151 = vmul.f32 %v6111, %v6094
    %v6152 = vmul.f32 %v6124, %v6094
    %v6153 = vmul.f32 %v6137, %v6094
    %v6154 = vmul.f32 %v6150, %v6094
    %vm6155 = vcmask 1040384
    %v6156 = vsel %vm6155, %v6095, %v6151
    %v6157 = vsel %vm6155, %v6096, %v6152
    %v6158 = vsel %vm6155, %v6097, %v6153
    %v6159 = vsel %vm6155, %v6098, %v6154
    %v6160 = vpack.c.bf16 %v6156, %v6156
    %v6161 = vpack.c.bf16 %v6157, %v6157
    %v6162 = vpack.c.bf16 %v6158, %v6158
    %v6163 = vpack.c.bf16 %v6159, %v6159
    %v6164 = vld [vmem:[%s19] sm:$0xf]
    %v6165 = vld [vmem:[%s19 + $0x4] sm:$0xf]
    %v6166 = vld [vmem:[%s19 + $0x8] sm:$0xf]
    %v6167 = vld [vmem:[%s19 + $0xc] sm:$0xf]
    %v6168 = vld [vmem:[%s19 + $0x10] sm:$0xf]
    %v6169 = vld [vmem:[%s19 + $0x14] sm:$0xf]
    %v6170 = vld [vmem:[%s19 + $0x18] sm:$0xf]
    %v6171 = vld [vmem:[%s19 + $0x1c] sm:$0xf]
    %v6172 = vld [vmem:[%s19 + $0x20] sm:$0xf]
    %v6173 = vld [vmem:[%s19 + $0x24] sm:$0xf]
    %v6174 = vld [vmem:[%s19 + $0x28] sm:$0xf]
    %v6175 = vld [vmem:[%s19 + $0x2c] sm:$0xf]
    %v6176 = vld [vmem:[%s19 + $0x30] sm:$0xf]
    %v6177 = vld [vmem:[%s19 + $0x34] sm:$0xf]
    %v6178 = vld [vmem:[%s19 + $0x38] sm:$0xf]
    %v6179 = vld [vmem:[%s19 + $0x3c] sm:$0xf]
    %v6180 = vld [vmem:[%s19 + $0x40] sm:$0xf]
    %v6181 = vld [vmem:[%s19 + $0x44] sm:$0xf]
    %v6182 = vld [vmem:[%s19 + $0x48] sm:$0xf]
    %v6183 = vld [vmem:[%s19 + $0x4c] sm:$0xf]
    %v6184 = vld [vmem:[%s19 + $0x50] sm:$0xf]
    %v6185 = vld [vmem:[%s19 + $0x54] sm:$0xf]
    %v6186 = vld [vmem:[%s19 + $0x58] sm:$0xf]
    %v6187 = vld [vmem:[%s19 + $0x5c] sm:$0xf]
    %v6188 = vld [vmem:[%s19 + $0x60] sm:$0xf]
    %v6189 = vld [vmem:[%s19 + $0x64] sm:$0xf]
    %v6190 = vld [vmem:[%s19 + $0x68] sm:$0xf]
    %v6191 = vld [vmem:[%s19 + $0x6c] sm:$0xf]
    %v6192 = vld [vmem:[%s19 + $0x70] sm:$0xf]
    %v6193 = vld [vmem:[%s19 + $0x74] sm:$0xf]
    %v6194 = vld [vmem:[%s19 + $0x78] sm:$0xf]
    %v6195 = vld [vmem:[%s19 + $0x7c] sm:$0xf]
    %v6196 = vld [vmem:[%s19 + $0x80] sm:$0xf]
    %v6197 = vld [vmem:[%s19 + $0x84] sm:$0xf]
    %v6198 = vld [vmem:[%s19 + $0x88] sm:$0xf]
    %v6199 = vld [vmem:[%s19 + $0x8c] sm:$0xf]
    %v6200 = vld [vmem:[%s19 + $0x90] sm:$0xf]
    %v6201 = vld [vmem:[%s19 + $0x94] sm:$0xf]
    %v6202 = vld [vmem:[%s19 + $0x98] sm:$0xf]
    %v6203 = vld [vmem:[%s19 + $0x9c] sm:$0xf]
    %v6204 = vld [vmem:[%s19 + $0xa0] sm:$0xf]
    %v6205 = vld [vmem:[%s19 + $0xa4] sm:$0xf]
    %v6206 = vld [vmem:[%s19 + $0xa8] sm:$0xf]
    %v6207 = vld [vmem:[%s19 + $0xac] sm:$0xf]
    %v6208 = vld [vmem:[%s19 + $0xb0] sm:$0xf]
    %v6209 = vld [vmem:[%s19 + $0xb4] sm:$0xf]
    %v6210 = vld [vmem:[%s19 + $0xb8] sm:$0xf]
    %v6211 = vld [vmem:[%s19 + $0xbc] sm:$0xf]
    %v6212 = vld [vmem:[%s19 + $0xc0] sm:$0xf]
    %v6213 = vld [vmem:[%s19 + $0xc4] sm:$0xf]
    %v6214 = vld [vmem:[%s19 + $0xc8] sm:$0xf]
    %v6215 = vld [vmem:[%s19 + $0xcc] sm:$0xf]
    %v6216 = vld [vmem:[%s19 + $0xd0] sm:$0xf]
    %v6217 = vld [vmem:[%s19 + $0xd4] sm:$0xf]
    %v6218 = vld [vmem:[%s19 + $0xd8] sm:$0xf]
    %v6219 = vld [vmem:[%s19 + $0xdc] sm:$0xf]
    %v6220 = vld [vmem:[%s19 + $0xe0] sm:$0xf]
    %v6221 = vld [vmem:[%s19 + $0xe4] sm:$0xf]
    %v6222 = vld [vmem:[%s19 + $0xe8] sm:$0xf]
    %v6223 = vld [vmem:[%s19 + $0xec] sm:$0xf]
    %v6224 = vld [vmem:[%s19 + $0xf0] sm:$0xf]
    %v6225 = vld [vmem:[%s19 + $0xf4] sm:$0xf]
    %v6226 = vld [vmem:[%s19 + $0xf8] sm:$0xf]
    %v6227 = vld [vmem:[%s19 + $0xfc] sm:$0xf]
    %v6228 = vld [vmem:[#allocation11] sm:$0x1]
    %v6230 = vperm.slane %v6228, 0
    %v6296 = vunpack.c.l.b16 %v6164
    %v6297 = vunpack.c.l.b16 %v6165
    %v6298 = vunpack.c.l.b16 %v6166
    %v6299 = vunpack.c.l.b16 %v6167
    %v6300 = vunpack.c.l.b16 %v6168
    %v6301 = vunpack.c.l.b16 %v6169
    %v6302 = vunpack.c.l.b16 %v6170
    %v6303 = vunpack.c.l.b16 %v6171
    %v6304 = vunpack.c.l.b16 %v6172
    %v6305 = vunpack.c.l.b16 %v6173
    %v6306 = vunpack.c.l.b16 %v6174
    %v6307 = vunpack.c.l.b16 %v6175
    %v6308 = vunpack.c.l.b16 %v6176
    %v6309 = vunpack.c.l.b16 %v6177
    %v6310 = vunpack.c.l.b16 %v6178
    %v6311 = vunpack.c.l.b16 %v6179
    %v6312 = vunpack.c.l.b16 %v6180
    %v6313 = vunpack.c.l.b16 %v6181
    %v6314 = vunpack.c.l.b16 %v6182
    %v6315 = vunpack.c.l.b16 %v6183
    %v6316 = vunpack.c.l.b16 %v6184
    %v6317 = vunpack.c.l.b16 %v6185
    %v6318 = vunpack.c.l.b16 %v6186
    %v6319 = vunpack.c.l.b16 %v6187
    %v6320 = vunpack.c.l.b16 %v6188
    %v6321 = vunpack.c.l.b16 %v6189
    %v6322 = vunpack.c.l.b16 %v6190
    %v6323 = vunpack.c.l.b16 %v6191
    %v6324 = vunpack.c.l.b16 %v6192
    %v6325 = vunpack.c.l.b16 %v6193
    %v6326 = vunpack.c.l.b16 %v6194
    %v6327 = vunpack.c.l.b16 %v6195
    %v6328 = vunpack.c.l.b16 %v6196
    %v6329 = vunpack.c.l.b16 %v6197
    %v6330 = vunpack.c.l.b16 %v6198
    %v6331 = vunpack.c.l.b16 %v6199
    %v6332 = vunpack.c.l.b16 %v6200
    %v6333 = vunpack.c.l.b16 %v6201
    %v6334 = vunpack.c.l.b16 %v6202
    %v6335 = vunpack.c.l.b16 %v6203
    %v6336 = vunpack.c.l.b16 %v6204
    %v6337 = vunpack.c.l.b16 %v6205
    %v6338 = vunpack.c.l.b16 %v6206
    %v6339 = vunpack.c.l.b16 %v6207
    %v6340 = vunpack.c.l.b16 %v6208
    %v6341 = vunpack.c.l.b16 %v6209
    %v6342 = vunpack.c.l.b16 %v6210
    %v6343 = vunpack.c.l.b16 %v6211
    %v6344 = vunpack.c.l.b16 %v6212
    %v6345 = vunpack.c.l.b16 %v6213
    %v6346 = vunpack.c.l.b16 %v6214
    %v6347 = vunpack.c.l.b16 %v6215
    %v6348 = vunpack.c.l.b16 %v6216
    %v6349 = vunpack.c.l.b16 %v6217
    %v6350 = vunpack.c.l.b16 %v6218
    %v6351 = vunpack.c.l.b16 %v6219
    %v6352 = vunpack.c.l.b16 %v6220
    %v6353 = vunpack.c.l.b16 %v6221
    %v6354 = vunpack.c.l.b16 %v6222
    %v6355 = vunpack.c.l.b16 %v6223
    %v6356 = vunpack.c.l.b16 %v6224
    %v6357 = vunpack.c.l.b16 %v6225
    %v6358 = vunpack.c.l.b16 %v6226
    %v6359 = vunpack.c.l.b16 %v6227
    %v6360 = vpack.c.b16 %v6297, %v6296
    %v6361 = vpack.c.b16 %v6299, %v6298
    %v6362 = vpack.c.b16 %v6301, %v6300
    %v6363 = vpack.c.b16 %v6303, %v6302
    %v6364 = vpack.c.b16 %v6305, %v6304
    %v6365 = vpack.c.b16 %v6307, %v6306
    %v6366 = vpack.c.b16 %v6309, %v6308
    %v6367 = vpack.c.b16 %v6311, %v6310
    %v6368 = vpack.c.b16 %v6313, %v6312
    %v6369 = vpack.c.b16 %v6315, %v6314
    %v6370 = vpack.c.b16 %v6317, %v6316
    %v6371 = vpack.c.b16 %v6319, %v6318
    %v6372 = vpack.c.b16 %v6321, %v6320
    %v6373 = vpack.c.b16 %v6323, %v6322
    %v6374 = vpack.c.b16 %v6325, %v6324
    %v6375 = vpack.c.b16 %v6327, %v6326
    %v6376 = vpack.c.b16 %v6329, %v6328
    %v6377 = vpack.c.b16 %v6331, %v6330
    %v6378 = vpack.c.b16 %v6333, %v6332
    %v6379 = vpack.c.b16 %v6335, %v6334
    %v6380 = vpack.c.b16 %v6337, %v6336
    %v6381 = vpack.c.b16 %v6339, %v6338
    %v6382 = vpack.c.b16 %v6341, %v6340
    %v6383 = vpack.c.b16 %v6343, %v6342
    %v6384 = vpack.c.b16 %v6345, %v6344
    %v6385 = vpack.c.b16 %v6347, %v6346
    %v6386 = vpack.c.b16 %v6349, %v6348
    %v6387 = vpack.c.b16 %v6351, %v6350
    %v6388 = vpack.c.b16 %v6353, %v6352
    %v6389 = vpack.c.b16 %v6355, %v6354
    %v6390 = vpack.c.b16 %v6357, %v6356
    %v6391 = vpack.c.b16 %v6359, %v6358
    %6424 = vmatpush.bf16.msra.mxu0 %v6367
    %6425 = vmatpush.bf16.msra.mxu0 %v6366
    %6426 = vmatpush.bf16.msra.mxu0 %v6365
    %6427 = vmatpush.bf16.msra.mxu0 %v6364
    %6428 = vmatpush.bf16.msra.mxu0 %v6363
    %6429 = vmatpush.bf16.msra.mxu0 %v6362
    %6430 = vmatpush.bf16.msra.mxu0 %v6361
    %6431 = vmatpush.bf16.msra.mxu0 %v6360
    %6432 = vmatmul.bf16.gmra.mxu0 %v6160
    %v6433 = vpop.f32.mrf.mxu0
    %v6434 = vadd.f32 %v6230, %v6433
    %v6435 = vpop.f32.mrf.mxu0
    %6436 = vdwg.mxu0
    %6437 = vmatpush.bf16.msra.mxu0 %v6375
    %6438 = vmatpush.bf16.msra.mxu0 %v6374
    %6439 = vmatpush.bf16.msra.mxu0 %v6373
    %6440 = vmatpush.bf16.msra.mxu0 %v6372
    %6441 = vmatpush.bf16.msra.mxu0 %v6371
    %6442 = vmatpush.bf16.msra.mxu0 %v6370
    %6443 = vmatpush.bf16.msra.mxu0 %v6369
    %6444 = vmatpush.bf16.msra.mxu0 %v6368
    %6445 = vmatmul.bf16.gmra.mxu0 %v6161
    %v6446 = vpop.f32.mrf.mxu0
    %v6447 = vadd.f32 %v6434, %v6446
    %v6448 = vpop.f32.mrf.mxu0
    %6449 = vdwg.mxu0
    %6450 = vmatpush.bf16.msra.mxu0 %v6383
    %6451 = vmatpush.bf16.msra.mxu0 %v6382
    %6452 = vmatpush.bf16.msra.mxu0 %v6381
    %6453 = vmatpush.bf16.msra.mxu0 %v6380
    %6454 = vmatpush.bf16.msra.mxu0 %v6379
    %6455 = vmatpush.bf16.msra.mxu0 %v6378
    %6456 = vmatpush.bf16.msra.mxu0 %v6377
    %6457 = vmatpush.bf16.msra.mxu0 %v6376
    %6458 = vmatmul.bf16.gmra.mxu0 %v6162
    %v6459 = vpop.f32.mrf.mxu0
    %v6460 = vadd.f32 %v6447, %v6459
    %v6461 = vpop.f32.mrf.mxu0
    %6462 = vdwg.mxu0
    %6463 = vmatpush.bf16.msra.mxu0 %v6391
    %6464 = vmatpush.bf16.msra.mxu0 %v6390
    %6465 = vmatpush.bf16.msra.mxu0 %v6389
    %6466 = vmatpush.bf16.msra.mxu0 %v6388
    %6467 = vmatpush.bf16.msra.mxu0 %v6387
    %6468 = vmatpush.bf16.msra.mxu0 %v6386
    %6469 = vmatpush.bf16.msra.mxu0 %v6385
    %6470 = vmatpush.bf16.msra.mxu0 %v6384
    %6471 = vmatmul.bf16.gmra.mxu0 %v6163
    %v6472 = vpop.f32.mrf.mxu0
    %v6473 = vadd.f32 %v6460, %v6472
    %v6474 = vpop.f32.mrf.mxu0
    %6475 = vdwg.mxu0
    %6476 = vst [vmem:[#allocation13] sm:$0x3] %v6473
    // Predicated region
    $region110: #{inception_classifier.1} parent=1 // pred_check
      _
    $region111: #{inception_classifier.1} parent=1 // pred_check_branch
      %6478 = sbr.rel (0) target = $region113
    $region112: #{inception_classifier.1} parent=1 // pred_region
      %6480 = vsyncadd [#allocation4], 0
      %s6482 = sshll.u32 [#allocation13], 4
      %s6483 = int_to_ptr.vmem [resolvable:$true] %s6482
      %s6484 = sshll.u32 %s21, 4
      %s6485 = int_to_ptr.hbm [resolvable:$true] %s6484
      %6487 = dma.vmem_to_hbm [thread:$0]  %s6483, 32, %s6485, [#allocation4]
    $region113: #{inception_classifier.1} parent=1 // pred_fallthru
      _
    // Predicated region
    $region114: #{inception_classifier.1} parent=1 // pred_check
      _
    $region115: #{inception_classifier.1} parent=1 // pred_check_branch
      %6489 = sbr.rel (0) target = $region117
    $region116: #{inception_classifier.1} parent=1 // pred_region
      %6491 = dma.done [#allocation4], 32
    $region117: #{inception_classifier.1} parent=1 // pred_fallthru
      _
    %6492 = vsyncpa [#allocation3], 1
    %6493 = vsyncpa [#allocation6], 1
    %6494 = vsyncpa [#allocation9], 1
    %6495 = vsyncpa [#allocation12], 1
    %6496 = vsyncpa [#allocation4], 1

</llo_original>
